<compile_context>
chip_gen: v5e
topology: v5e:2x2
jax: 0.10.0
libtpu: 0.0.40
codegen_flags: <defaults>
</compile_context>

<pallas_src>
import functools

import jax
import jax.numpy as jnp
from jax.experimental import pallas as pl
from jax.experimental.pallas import tpu as pltpu

EPS = 1e-5   # nn.InstanceNorm2d default eps
PAD = 8      # covers the largest dilation (8) of the 3x3 convs


# --------------------------------- kernel ------------------------------------
def _dmfb_kernel(x_ref, mrow_ref, mcol_ref, wc1_ref, bc1_ref, wd_ref, bd_ref,
                 wc2_ref, bc2_ref, out_ref, *, H, W, Wp, mxu_dtype):
    L = x_ref.shape[-1]                 # (H+2*PAD) * (W+2*PAD), flattened padded spatial
    inv_hw = 1.0 / float(H * W)

    x = x_ref[0]                        # (C, L)  zero-padded input, lane-dense, f32
    mrow = mrow_ref[...]                # (1, L)  interior mask (row form, zeroes o1 pad)
    mcol = mcol_ref[...]                # (L, 1)  interior mask (column form, MXU stats)

    def conv3x3(act_m, w_stacked, bias, r):
        # Factored dilated 3x3 "same" conv on the flat padded layout.
        #   act_m:     (Cin, L)  activation in the MXU dtype, pad region == 0
        #   w_stacked: (3*Cout, 3*Cin)  row block = kernel row ky, col block = kernel col kx
        #   bias:      (Cout, 1) f32
        # Column taps are fused into the contraction (one slab shared by all 3 rows);
        # row shifts are applied to the Cout-wide partial sums.  With PAD >= dilation no
        # interior output position ever wraps, so pltpu.roll is exact on the interior.
        cout = bias.shape[0]
        slab = jnp.concatenate(
            [pltpu.roll(act_m, shift=r, axis=1),        # kx=0 tap reads act[p - r]
             act_m,                                     # kx=1 tap reads act[p]
             pltpu.roll(act_m, shift=L - r, axis=1)],   # kx=2 tap reads act[p + r]
            axis=0)                                     # (3*Cin, L)
        py = jnp.dot(w_stacked, slab,
                     preferred_element_type=jnp.float32)          # (3*Cout, L), f32 acc
        top = pltpu.roll(py[0:cout], shift=r * Wp, axis=1)        # ky=0 partial
        mid = py[cout:2 * cout]                                   # ky=1 partial
        bot = pltpu.roll(py[2 * cout:3 * cout], shift=L - r * Wp, axis=1)  # ky=2 partial
        return top + mid + bot + bias   # pad region is garbage; masked out downstream

    def stats(y):
        # Masked per-channel mean / inverse std over the image interior only.
        # Reductions (and the mask multiply) ride the MXU as skinny (rows, L) @ (L, 1)
        # dots; var = E[y^2] - m^2 (biased, f32 sums).
        s1 = jnp.dot(y, mcol, preferred_element_type=jnp.float32)        # (rows, 1)
        s2 = jnp.dot(y * y, mcol, preferred_element_type=jnp.float32)    # (rows, 1)
        mu = s1 * inv_hw
        var = s2 * inv_hw - mu * mu
        return mu, jax.lax.rsqrt(var + EPS)

    # ---- stage 1: output1 = relu(IN(c1(x))) ;  pad region forced to exact zero -----
    y1 = conv3x3(x.astype(mxu_dtype), wc1_ref[...], bc1_ref[...], 1)      # (C4, L)
    mu1, rs1 = stats(y1)
    o1 = jnp.maximum((y1 - mu1) * rs1, 0.0) * mrow     # dilated taps need pad == 0

    # ---- stage 2: four dilated branches (1, 2, 4, 8) + dense combine ----------------
    o1m = o1.astype(mxu_dtype)
    wd = wd_ref[...]                                   # (4, 3*C4, 3*C4)
    bd = bd_ref[...]                                   # (4, C4, 1)
    d1 = conv3x3(o1m, wd[0], bd[0], 1)
    d2 = conv3x3(o1m, wd[1], bd[1], 2)
    d3 = conv3x3(o1m, wd[2], bd[2], 4)
    d4 = conv3x3(o1m, wd[3], bd[3], 8)
    add1 = d1 + d2
    add2 = add1 + d3
    add3 = add2 + d4
    combine = jnp.concatenate([d1, add1, add2, add3], axis=0)             # (C, L)

    # ---- stage 3: output2 = c2(relu(IN(combine))) ; no output mask needed -----------
    muc, rsc = stats(combine)
    oc = jnp.maximum((combine - muc) * rsc, 0.0)
    y2 = jnp.dot(wc2_ref[...], oc.astype(mxu_dtype),
                 preferred_element_type=jnp.float32) + bc2_ref[...]       # (C, L)

    # ---- stage 4: output = x + IN(output2) ; pad region cropped outside -------------
    muf, rsf = stats(y2)
    out_ref[0, :, :] = x + (y2 - muf) * rsf


# --------------------------------- wrapper -----------------------------------
def _batch_dimension_semantics():
    # Only CORE_PARALLEL actually splits a grid axis across v7x's two TensorCores
    # ("parallel" vs "arbitrary" is a codegen no-op); single-TC chips keep "parallel".
    try:
        kind = jax.devices()[0].device_kind.lower()
    except Exception:
        kind = ""
    if "v7" in kind:
        return (pltpu.CORE_PARALLEL,)
    return ("parallel",)


def dmfb_pallas(x, params, *, use_bf16_mxu=False):
    N, C, H, W = x.shape
    assert C % 4 == 0
    C4 = C // 4
    Hp, Wp = H + 2 * PAD, W + 2 * PAD
    L = Hp * Wp
    mxu_dtype = jnp.bfloat16 if use_bf16_mxu else jnp.float32

    # Zero-pad spatially, flatten spatial dims -> lane-dense (N, C, L).
    # (Negligible HBM traffic at this size; for large H/W, DMA the unpadded sample and
    # memset/copy the interior inside the kernel instead.)
    xpad = jnp.pad(x.astype(jnp.float32),
                   ((0, 0), (0, 0), (PAD, PAD), (PAD, PAD))).reshape(N, C, L)

    # Interior mask, row form (1, L) for zeroing o1's pad and column form (L, 1) so the
    # masked reductions become MXU dots.
    row = jnp.arange(Hp)
    col = jnp.arange(Wp)
    m2 = (((row >= PAD) & (row < PAD + H))[:, None] &
          ((col >= PAD) & (col < PAD + W))[None, :]).astype(jnp.float32)
    mrow = m2.reshape(1, L)
    mcol = m2.reshape(L, 1)

    def stack_w(w):
        # (O, I, 3, 3) -> (3*O, 3*I) with w_stacked[ky*O + o, kx*I + i] == w[o, i, ky, kx]
        o, i = w.shape[0], w.shape[1]
        return jnp.transpose(w, (2, 0, 3, 1)).reshape(3 * o, 3 * i)

    wc1 = stack_w(params["wc1"]).astype(mxu_dtype)                        # (3*C4, 3*C)
    bc1 = params["bc1"].reshape(C4, 1)
    wd = jnp.stack([stack_w(params[f"wd{j}"]) for j in (1, 2, 3, 4)]
                   ).astype(mxu_dtype)                                    # (4, 3*C4, 3*C4)
    bd = jnp.stack([params[f"bd{j}"] for j in (1, 2, 3, 4)]).reshape(4, C4, 1)
    wc2 = params["wc2"][:, :, 0, 0].astype(mxu_dtype)                     # (C, C)
    bc2 = params["bc2"].reshape(C, 1)

    kernel = functools.partial(_dmfb_kernel, H=H, W=W, Wp=Wp, mxu_dtype=mxu_dtype)
    out_flat = pl.pallas_call(
        kernel,
        out_shape=jax.ShapeDtypeStruct((N, C, L), jnp.float32),
        grid_spec=pltpu.PrefetchScalarGridSpec(
            num_scalar_prefetch=0,
            grid=(N,),
            in_specs=[
                pl.BlockSpec((1, C, L), lambda n: (n, 0, 0)),             # padded input
                pl.BlockSpec((1, L), lambda n: (0, 0)),                   # mask row
                pl.BlockSpec((L, 1), lambda n: (0, 0)),                   # mask column
                pl.BlockSpec((3 * C4, 3 * C), lambda n: (0, 0)),          # c1 weights
                pl.BlockSpec((C4, 1), lambda n: (0, 0)),                  # c1 bias
                pl.BlockSpec((4, 3 * C4, 3 * C4), lambda n: (0, 0, 0)),   # d1..d4 weights
                pl.BlockSpec((4, C4, 1), lambda n: (0, 0, 0)),            # d1..d4 biases
                pl.BlockSpec((C, C), lambda n: (0, 0)),                   # c2 weights
                pl.BlockSpec((C, 1), lambda n: (0, 0)),                   # c2 bias
            ],
            out_specs=pl.BlockSpec((1, C, L), lambda n: (n, 0, 0)),
        ),
        compiler_params=pltpu.CompilerParams(
            dimension_semantics=_batch_dimension_semantics()),
    )(xpad, mrow, mcol, wc1, bc1, wd, bd, wc2, bc2)

    # Crop the interior back to (N, C, H, W) in plain JAX (cheap HBM slice at this size).
    return out_flat.reshape(N, C, Hp, Wp)[:, :, PAD:PAD + H, PAD:PAD + W]


# ------------------------- pure-JAX reference (check) -------------------------
def _conv_ref(x, w, b, dilation=1):
    k = w.shape[-1]
    pad = dilation * (k - 1) // 2
    y = jax.lax.conv_general_dilated(
        x, w, window_strides=(1, 1),
        padding=[(pad, pad), (pad, pad)],
        rhs_dilation=(dilation, dilation),
        dimension_numbers=("NCHW", "OIHW", "NCHW"),
        precision=jax.lax.Precision.HIGHEST)
    return y + b[None, :, None, None]


def _inorm_ref(x):
    m = jnp.mean(x, axis=(2, 3), keepdims=True)
    v = jnp.mean((x - m) ** 2, axis=(2, 3), keepdims=True)
    return (x - m) * jax.lax.rsqrt(v + EPS)


def dmfb_reference(x, p):
    relu = lambda t: jnp.maximum(t, 0.0)
    o1 = relu(_inorm_ref(_conv_ref(x, p["wc1"], p["bc1"], 1)))
    d1 = _conv_ref(o1, p["wd1"], p["bd1"], 1)
    d2 = _conv_ref(o1, p["wd2"], p["bd2"], 2)
    d3 = _conv_ref(o1, p["wd3"], p["bd3"], 4)
    d4 = _conv_ref(o1, p["wd4"], p["bd4"], 8)
    add1 = d1 + d2
    add2 = add1 + d3
    add3 = add2 + d4
    combine = jnp.concatenate([d1, add1, add2, add3], axis=1)
    out2 = _conv_ref(relu(_inorm_ref(combine)), p["wc2"], p["bc2"], 1)
    return x + _inorm_ref(out2)


def make_params(key, C):
    C4 = C // 4
    ks = jax.random.split(key, 12)

    def w(k, shape):
        return 0.2 * jax.random.normal(k, shape, jnp.float32)

    return {
        "wc1": w(ks[0], (C4, C, 3, 3)),  "bc1": w(ks[1], (C4,)),
        "wd1": w(ks[2], (C4, C4, 3, 3)), "bd1": w(ks[3], (C4,)),
        "wd2": w(ks[4], (C4, C4, 3, 3)), "bd2": w(ks[5], (C4,)),
        "wd3": w(ks[6], (C4, C4, 3, 3)), "bd3": w(ks[7], (C4,)),
        "wd4": w(ks[8], (C4, C4, 3, 3)), "bd4": w(ks[9], (C4,)),
        "wc2": w(ks[10], (C, C, 1, 1)),  "bc2": w(ks[11], (C,)),
    }


if __name__ == "__main__":
    N, C, H, W = 2, 32, 16, 16
    key = jax.random.PRNGKey(0)
    kx_, kp_ = jax.random.split(key)
    x = jax.random.normal(kx_, (N, C, H, W), jnp.float32)
    params = make_params(kp_, C)

    out = jax.block_until_ready(dmfb_pallas(x, params))   # f32-MXU path, strict check
    ref = dmfb_reference(x, params)
    assert out.shape == (N, C, H, W)
    err = float(jnp.max(jnp.abs(out - ref)))
    assert jnp.allclose(out, ref, atol=1e-3, rtol=1e-3), (
        f"mismatch vs reference, max abs err = {err}")
    print("KERNEL_OK")
</pallas_src>

<mosaic_0001>
module attributes {stable_mosaic.version = 11 : i64} {
  func.func @_dmfb_kernel(%arg0: i32, %arg1: memref<1x32x1024xf32, #tpu.memory_space<vmem>>, %arg2: memref<1x1024xf32, #tpu.memory_space<vmem>>, %arg3: memref<1024x1xf32, #tpu.memory_space<vmem>>, %arg4: memref<24x96xf32, #tpu.memory_space<vmem>>, %arg5: memref<8x1xf32, #tpu.memory_space<vmem>>, %arg6: memref<4x24x24xf32, #tpu.memory_space<vmem>>, %arg7: memref<4x8x1xf32, #tpu.memory_space<vmem>>, %arg8: memref<32x32xf32, #tpu.memory_space<vmem>>, %arg9: memref<32x1xf32, #tpu.memory_space<vmem>>, %arg10: memref<1x32x1024xf32, #tpu.memory_space<vmem>>) attributes {dimension_semantics = [#tpu.dimension_semantics<parallel>], iteration_bounds = array<i64: 2>, scalar_prefetch = 0 : i64, scratch_operands = 0 : i64, tpu.core_type = #tpu.core_type<tc>, window_params = [{transform_indices = @transform_0, window_bounds = array<i64: 1, 32, 1024>}, {pipeline_mode = #tpu.pipeline_mode<synchronous>, transform_indices = @transform_1, window_bounds = array<i64: 1, 1024>}, {pipeline_mode = #tpu.pipeline_mode<synchronous>, transform_indices = @transform_2, window_bounds = array<i64: 1024, 1>}, {pipeline_mode = #tpu.pipeline_mode<synchronous>, transform_indices = @transform_3, window_bounds = array<i64: 24, 96>}, {pipeline_mode = #tpu.pipeline_mode<synchronous>, transform_indices = @transform_4, window_bounds = array<i64: 8, 1>}, {pipeline_mode = #tpu.pipeline_mode<synchronous>, transform_indices = @transform_5, window_bounds = array<i64: 4, 24, 24>}, {pipeline_mode = #tpu.pipeline_mode<synchronous>, transform_indices = @transform_6, window_bounds = array<i64: 4, 8, 1>}, {pipeline_mode = #tpu.pipeline_mode<synchronous>, transform_indices = @transform_7, window_bounds = array<i64: 32, 32>}, {pipeline_mode = #tpu.pipeline_mode<synchronous>, transform_indices = @transform_8, window_bounds = array<i64: 32, 1>}, {transform_indices = @transform_9, window_bounds = array<i64: 1, 32, 1024>}]} {
    %c0 = arith.constant 0 : index
    %c0_0 = arith.constant 0 : index
    %c0_1 = arith.constant 0 : index
    %0 = vector.load %arg1[%c0, %c0_0, %c0_1] : memref<1x32x1024xf32, #tpu.memory_space<vmem>>, vector<1x32x1024xf32>
    %1 = vector.shape_cast %0 : vector<1x32x1024xf32> to vector<32x1024xf32>
    %c0_2 = arith.constant 0 : index
    %c0_3 = arith.constant 0 : index
    %2 = vector.load %arg2[%c0_2, %c0_3] : memref<1x1024xf32, #tpu.memory_space<vmem>>, vector<1x1024xf32>
    %c0_4 = arith.constant 0 : index
    %c0_5 = arith.constant 0 : index
    %3 = vector.load %arg3[%c0_4, %c0_5] : memref<1024x1xf32, #tpu.memory_space<vmem>>, vector<1024x1xf32>
    %c0_6 = arith.constant 0 : index
    %c0_7 = arith.constant 0 : index
    %4 = vector.load %arg4[%c0_6, %c0_7] : memref<24x96xf32, #tpu.memory_space<vmem>>, vector<24x96xf32>
    %c0_8 = arith.constant 0 : index
    %c0_9 = arith.constant 0 : index
    %5 = vector.load %arg5[%c0_8, %c0_9] : memref<8x1xf32, #tpu.memory_space<vmem>>, vector<8x1xf32>
    %c1_i32 = arith.constant 1 : i32
    %6 = tpu.dynamic_rotate %1 by %c1_i32 dim 1 : vector<32x1024xf32>, i32 -> vector<32x1024xf32>
    %c1023_i32 = arith.constant 1023 : i32
    %7 = tpu.dynamic_rotate %1 by %c1023_i32 dim 1 : vector<32x1024xf32>, i32 -> vector<32x1024xf32>
    %8 = tpu.concatenate %6, %1, %7 in 0 : vector<32x1024xf32>, vector<32x1024xf32>, vector<32x1024xf32> -> vector<96x1024xf32>
    %cst = arith.constant dense<0.000000e+00> : vector<24x1024xf32>
    %9 = tpu.matmul %4, %8, %cst {dimension_numbers = #tpu.dot_dimension_numbers<[1], [0], [0], [1], [0, 0, 1, 1], [], []>} : vector<24x96xf32>, vector<96x1024xf32>, vector<24x1024xf32> -> vector<24x1024xf32>
    %10 = vector.extract_strided_slice %9 {offsets = [0, 0], sizes = [8, 1024], strides = [1, 1]} : vector<24x1024xf32> to vector<8x1024xf32>
    %c32_i32 = arith.constant 32 : i32
    %11 = tpu.dynamic_rotate %10 by %c32_i32 dim 1 : vector<8x1024xf32>, i32 -> vector<8x1024xf32>
    %12 = vector.extract_strided_slice %9 {offsets = [8, 0], sizes = [8, 1024], strides = [1, 1]} : vector<24x1024xf32> to vector<8x1024xf32>
    %13 = vector.extract_strided_slice %9 {offsets = [16, 0], sizes = [8, 1024], strides = [1, 1]} : vector<24x1024xf32> to vector<8x1024xf32>
    %c992_i32 = arith.constant 992 : i32
    %14 = tpu.dynamic_rotate %13 by %c992_i32 dim 1 : vector<8x1024xf32>, i32 -> vector<8x1024xf32>
    %15 = arith.addf %11, %12 : vector<8x1024xf32>
    %16 = arith.addf %15, %14 : vector<8x1024xf32>
    %17 = vector.broadcast %5 : vector<8x1xf32> to vector<8x1024xf32>
    %18 = arith.addf %16, %17 : vector<8x1024xf32>
    %cst_10 = arith.constant dense<0.000000e+00> : vector<8x1xf32>
    %19 = tpu.matmul %18, %3, %cst_10 {dimension_numbers = #tpu.dot_dimension_numbers<[1], [0], [0], [1], [0, 0, 1, 1], [], []>} : vector<8x1024xf32>, vector<1024x1xf32>, vector<8x1xf32> -> vector<8x1xf32>
    %20 = arith.mulf %18, %18 : vector<8x1024xf32>
    %cst_11 = arith.constant dense<0.000000e+00> : vector<8x1xf32>
    %21 = tpu.matmul %20, %3, %cst_11 {dimension_numbers = #tpu.dot_dimension_numbers<[1], [0], [0], [1], [0, 0, 1, 1], [], []>} : vector<8x1024xf32>, vector<1024x1xf32>, vector<8x1xf32> -> vector<8x1xf32>
    %cst_12 = arith.constant 3.906250e-03 : f32
    %22 = vector.broadcast %cst_12 : f32 to vector<8x1xf32>
    %23 = arith.mulf %19, %22 : vector<8x1xf32>
    %cst_13 = arith.constant 3.906250e-03 : f32
    %24 = vector.broadcast %cst_13 : f32 to vector<8x1xf32>
    %25 = arith.mulf %21, %24 : vector<8x1xf32>
    %26 = arith.mulf %23, %23 : vector<8x1xf32>
    %27 = arith.subf %25, %26 : vector<8x1xf32>
    %cst_14 = arith.constant 9.99999974E-6 : f32
    %28 = vector.broadcast %cst_14 : f32 to vector<8x1xf32>
    %29 = arith.addf %27, %28 : vector<8x1xf32>
    %30 = math.rsqrt %29 : vector<8x1xf32>
    %31 = vector.broadcast %23 : vector<8x1xf32> to vector<8x1024xf32>
    %32 = arith.subf %18, %31 : vector<8x1024xf32>
    %33 = vector.broadcast %30 : vector<8x1xf32> to vector<8x1024xf32>
    %34 = arith.mulf %32, %33 : vector<8x1024xf32>
    %cst_15 = arith.constant 0.000000e+00 : f32
    %35 = vector.broadcast %cst_15 : f32 to vector<8x1024xf32>
    %36 = arith.maximumf %34, %35 : vector<8x1024xf32>
    %37 = vector.broadcast %2 : vector<1x1024xf32> to vector<8x1024xf32>
    %38 = arith.mulf %36, %37 : vector<8x1024xf32>
    %c0_16 = arith.constant 0 : index
    %c0_17 = arith.constant 0 : index
    %c0_18 = arith.constant 0 : index
    %39 = vector.load %arg6[%c0_16, %c0_17, %c0_18] : memref<4x24x24xf32, #tpu.memory_space<vmem>>, vector<4x24x24xf32>
    %c0_19 = arith.constant 0 : index
    %c0_20 = arith.constant 0 : index
    %c0_21 = arith.constant 0 : index
    %40 = vector.load %arg7[%c0_19, %c0_20, %c0_21] : memref<4x8x1xf32, #tpu.memory_space<vmem>>, vector<4x8x1xf32>
    %41 = vector.extract_strided_slice %39 {offsets = [0, 0, 0], sizes = [1, 24, 24], strides = [1, 1, 1]} : vector<4x24x24xf32> to vector<1x24x24xf32>
    %42 = vector.shape_cast %41 : vector<1x24x24xf32> to vector<24x24xf32>
    %43 = vector.extract_strided_slice %40 {offsets = [0, 0, 0], sizes = [1, 8, 1], strides = [1, 1, 1]} : vector<4x8x1xf32> to vector<1x8x1xf32>
    %44 = vector.shape_cast %43 : vector<1x8x1xf32> to vector<8x1xf32>
    %c1_i32_22 = arith.constant 1 : i32
    %45 = tpu.dynamic_rotate %38 by %c1_i32_22 dim 1 : vector<8x1024xf32>, i32 -> vector<8x1024xf32>
    %c1023_i32_23 = arith.constant 1023 : i32
    %46 = tpu.dynamic_rotate %38 by %c1023_i32_23 dim 1 : vector<8x1024xf32>, i32 -> vector<8x1024xf32>
    %47 = tpu.concatenate %45, %38, %46 in 0 : vector<8x1024xf32>, vector<8x1024xf32>, vector<8x1024xf32> -> vector<24x1024xf32>
    %cst_24 = arith.constant dense<0.000000e+00> : vector<24x1024xf32>
    %48 = tpu.matmul %42, %47, %cst_24 {dimension_numbers = #tpu.dot_dimension_numbers<[1], [0], [0], [1], [0, 0, 1, 1], [], []>} : vector<24x24xf32>, vector<24x1024xf32>, vector<24x1024xf32> -> vector<24x1024xf32>
    %49 = vector.extract_strided_slice %48 {offsets = [0, 0], sizes = [8, 1024], strides = [1, 1]} : vector<24x1024xf32> to vector<8x1024xf32>
    %c32_i32_25 = arith.constant 32 : i32
    %50 = tpu.dynamic_rotate %49 by %c32_i32_25 dim 1 : vector<8x1024xf32>, i32 -> vector<8x1024xf32>
    %51 = vector.extract_strided_slice %48 {offsets = [8, 0], sizes = [8, 1024], strides = [1, 1]} : vector<24x1024xf32> to vector<8x1024xf32>
    %52 = vector.extract_strided_slice %48 {offsets = [16, 0], sizes = [8, 1024], strides = [1, 1]} : vector<24x1024xf32> to vector<8x1024xf32>
    %c992_i32_26 = arith.constant 992 : i32
    %53 = tpu.dynamic_rotate %52 by %c992_i32_26 dim 1 : vector<8x1024xf32>, i32 -> vector<8x1024xf32>
    %54 = arith.addf %50, %51 : vector<8x1024xf32>
    %55 = arith.addf %54, %53 : vector<8x1024xf32>
    %56 = vector.broadcast %44 : vector<8x1xf32> to vector<8x1024xf32>
    %57 = arith.addf %55, %56 : vector<8x1024xf32>
    %58 = vector.extract_strided_slice %39 {offsets = [1, 0, 0], sizes = [1, 24, 24], strides = [1, 1, 1]} : vector<4x24x24xf32> to vector<1x24x24xf32>
    %59 = vector.shape_cast %58 : vector<1x24x24xf32> to vector<24x24xf32>
    %60 = vector.extract_strided_slice %40 {offsets = [1, 0, 0], sizes = [1, 8, 1], strides = [1, 1, 1]} : vector<4x8x1xf32> to vector<1x8x1xf32>
    %61 = vector.shape_cast %60 : vector<1x8x1xf32> to vector<8x1xf32>
    %c2_i32 = arith.constant 2 : i32
    %62 = tpu.dynamic_rotate %38 by %c2_i32 dim 1 : vector<8x1024xf32>, i32 -> vector<8x1024xf32>
    %c1022_i32 = arith.constant 1022 : i32
    %63 = tpu.dynamic_rotate %38 by %c1022_i32 dim 1 : vector<8x1024xf32>, i32 -> vector<8x1024xf32>
    %64 = tpu.concatenate %62, %38, %63 in 0 : vector<8x1024xf32>, vector<8x1024xf32>, vector<8x1024xf32> -> vector<24x1024xf32>
    %cst_27 = arith.constant dense<0.000000e+00> : vector<24x1024xf32>
    %65 = tpu.matmul %59, %64, %cst_27 {dimension_numbers = #tpu.dot_dimension_numbers<[1], [0], [0], [1], [0, 0, 1, 1], [], []>} : vector<24x24xf32>, vector<24x1024xf32>, vector<24x1024xf32> -> vector<24x1024xf32>
    %66 = vector.extract_strided_slice %65 {offsets = [0, 0], sizes = [8, 1024], strides = [1, 1]} : vector<24x1024xf32> to vector<8x1024xf32>
    %c64_i32 = arith.constant 64 : i32
    %67 = tpu.dynamic_rotate %66 by %c64_i32 dim 1 : vector<8x1024xf32>, i32 -> vector<8x1024xf32>
    %68 = vector.extract_strided_slice %65 {offsets = [8, 0], sizes = [8, 1024], strides = [1, 1]} : vector<24x1024xf32> to vector<8x1024xf32>
    %69 = vector.extract_strided_slice %65 {offsets = [16, 0], sizes = [8, 1024], strides = [1, 1]} : vector<24x1024xf32> to vector<8x1024xf32>
    %c960_i32 = arith.constant 960 : i32
    %70 = tpu.dynamic_rotate %69 by %c960_i32 dim 1 : vector<8x1024xf32>, i32 -> vector<8x1024xf32>
    %71 = arith.addf %67, %68 : vector<8x1024xf32>
    %72 = arith.addf %71, %70 : vector<8x1024xf32>
    %73 = vector.broadcast %61 : vector<8x1xf32> to vector<8x1024xf32>
    %74 = arith.addf %72, %73 : vector<8x1024xf32>
    %75 = vector.extract_strided_slice %39 {offsets = [2, 0, 0], sizes = [1, 24, 24], strides = [1, 1, 1]} : vector<4x24x24xf32> to vector<1x24x24xf32>
    %76 = vector.shape_cast %75 : vector<1x24x24xf32> to vector<24x24xf32>
    %77 = vector.extract_strided_slice %40 {offsets = [2, 0, 0], sizes = [1, 8, 1], strides = [1, 1, 1]} : vector<4x8x1xf32> to vector<1x8x1xf32>
    %78 = vector.shape_cast %77 : vector<1x8x1xf32> to vector<8x1xf32>
    %c4_i32 = arith.constant 4 : i32
    %79 = tpu.dynamic_rotate %38 by %c4_i32 dim 1 : vector<8x1024xf32>, i32 -> vector<8x1024xf32>
    %c1020_i32 = arith.constant 1020 : i32
    %80 = tpu.dynamic_rotate %38 by %c1020_i32 dim 1 : vector<8x1024xf32>, i32 -> vector<8x1024xf32>
    %81 = tpu.concatenate %79, %38, %80 in 0 : vector<8x1024xf32>, vector<8x1024xf32>, vector<8x1024xf32> -> vector<24x1024xf32>
    %cst_28 = arith.constant dense<0.000000e+00> : vector<24x1024xf32>
    %82 = tpu.matmul %76, %81, %cst_28 {dimension_numbers = #tpu.dot_dimension_numbers<[1], [0], [0], [1], [0, 0, 1, 1], [], []>} : vector<24x24xf32>, vector<24x1024xf32>, vector<24x1024xf32> -> vector<24x1024xf32>
    %83 = vector.extract_strided_slice %82 {offsets = [0, 0], sizes = [8, 1024], strides = [1, 1]} : vector<24x1024xf32> to vector<8x1024xf32>
    %c128_i32 = arith.constant 128 : i32
    %84 = tpu.dynamic_rotate %83 by %c128_i32 dim 1 : vector<8x1024xf32>, i32 -> vector<8x1024xf32>
    %85 = vector.extract_strided_slice %82 {offsets = [8, 0], sizes = [8, 1024], strides = [1, 1]} : vector<24x1024xf32> to vector<8x1024xf32>
    %86 = vector.extract_strided_slice %82 {offsets = [16, 0], sizes = [8, 1024], strides = [1, 1]} : vector<24x1024xf32> to vector<8x1024xf32>
    %c896_i32 = arith.constant 896 : i32
    %87 = tpu.dynamic_rotate %86 by %c896_i32 dim 1 : vector<8x1024xf32>, i32 -> vector<8x1024xf32>
    %88 = arith.addf %84, %85 : vector<8x1024xf32>
    %89 = arith.addf %88, %87 : vector<8x1024xf32>
    %90 = vector.broadcast %78 : vector<8x1xf32> to vector<8x1024xf32>
    %91 = arith.addf %89, %90 : vector<8x1024xf32>
    %92 = vector.extract_strided_slice %39 {offsets = [3, 0, 0], sizes = [1, 24, 24], strides = [1, 1, 1]} : vector<4x24x24xf32> to vector<1x24x24xf32>
    %93 = vector.shape_cast %92 : vector<1x24x24xf32> to vector<24x24xf32>
    %94 = vector.extract_strided_slice %40 {offsets = [3, 0, 0], sizes = [1, 8, 1], strides = [1, 1, 1]} : vector<4x8x1xf32> to vector<1x8x1xf32>
    %95 = vector.shape_cast %94 : vector<1x8x1xf32> to vector<8x1xf32>
    %c8_i32 = arith.constant 8 : i32
    %96 = tpu.dynamic_rotate %38 by %c8_i32 dim 1 : vector<8x1024xf32>, i32 -> vector<8x1024xf32>
    %c1016_i32 = arith.constant 1016 : i32
    %97 = tpu.dynamic_rotate %38 by %c1016_i32 dim 1 : vector<8x1024xf32>, i32 -> vector<8x1024xf32>
    %98 = tpu.concatenate %96, %38, %97 in 0 : vector<8x1024xf32>, vector<8x1024xf32>, vector<8x1024xf32> -> vector<24x1024xf32>
    %cst_29 = arith.constant dense<0.000000e+00> : vector<24x1024xf32>
    %99 = tpu.matmul %93, %98, %cst_29 {dimension_numbers = #tpu.dot_dimension_numbers<[1], [0], [0], [1], [0, 0, 1, 1], [], []>} : vector<24x24xf32>, vector<24x1024xf32>, vector<24x1024xf32> -> vector<24x1024xf32>
    %100 = vector.extract_strided_slice %99 {offsets = [0, 0], sizes = [8, 1024], strides = [1, 1]} : vector<24x1024xf32> to vector<8x1024xf32>
    %c256_i32 = arith.constant 256 : i32
    %101 = tpu.dynamic_rotate %100 by %c256_i32 dim 1 : vector<8x1024xf32>, i32 -> vector<8x1024xf32>
    %102 = vector.extract_strided_slice %99 {offsets = [8, 0], sizes = [8, 1024], strides = [1, 1]} : vector<24x1024xf32> to vector<8x1024xf32>
    %103 = vector.extract_strided_slice %99 {offsets = [16, 0], sizes = [8, 1024], strides = [1, 1]} : vector<24x1024xf32> to vector<8x1024xf32>
    %c768_i32 = arith.constant 768 : i32
    %104 = tpu.dynamic_rotate %103 by %c768_i32 dim 1 : vector<8x1024xf32>, i32 -> vector<8x1024xf32>
    %105 = arith.addf %101, %102 : vector<8x1024xf32>
    %106 = arith.addf %105, %104 : vector<8x1024xf32>
    %107 = vector.broadcast %95 : vector<8x1xf32> to vector<8x1024xf32>
    %108 = arith.addf %106, %107 : vector<8x1024xf32>
    %109 = arith.addf %57, %74 : vector<8x1024xf32>
    %110 = arith.addf %109, %91 : vector<8x1024xf32>
    %111 = arith.addf %110, %108 : vector<8x1024xf32>
    %112 = tpu.concatenate %57, %109, %110, %111 in 0 : vector<8x1024xf32>, vector<8x1024xf32>, vector<8x1024xf32>, vector<8x1024xf32> -> vector<32x1024xf32>
    %cst_30 = arith.constant dense<0.000000e+00> : vector<32x1xf32>
    %113 = tpu.matmul %112, %3, %cst_30 {dimension_numbers = #tpu.dot_dimension_numbers<[1], [0], [0], [1], [0, 0, 1, 1], [], []>} : vector<32x1024xf32>, vector<1024x1xf32>, vector<32x1xf32> -> vector<32x1xf32>
    %114 = arith.mulf %112, %112 : vector<32x1024xf32>
    %cst_31 = arith.constant dense<0.000000e+00> : vector<32x1xf32>
    %115 = tpu.matmul %114, %3, %cst_31 {dimension_numbers = #tpu.dot_dimension_numbers<[1], [0], [0], [1], [0, 0, 1, 1], [], []>} : vector<32x1024xf32>, vector<1024x1xf32>, vector<32x1xf32> -> vector<32x1xf32>
    %cst_32 = arith.constant 3.906250e-03 : f32
    %116 = vector.broadcast %cst_32 : f32 to vector<32x1xf32>
    %117 = arith.mulf %113, %116 : vector<32x1xf32>
    %cst_33 = arith.constant 3.906250e-03 : f32
    %118 = vector.broadcast %cst_33 : f32 to vector<32x1xf32>
    %119 = arith.mulf %115, %118 : vector<32x1xf32>
    %120 = arith.mulf %117, %117 : vector<32x1xf32>
    %121 = arith.subf %119, %120 : vector<32x1xf32>
    %cst_34 = arith.constant 9.99999974E-6 : f32
    %122 = vector.broadcast %cst_34 : f32 to vector<32x1xf32>
    %123 = arith.addf %121, %122 : vector<32x1xf32>
    %124 = math.rsqrt %123 : vector<32x1xf32>
    %125 = vector.broadcast %117 : vector<32x1xf32> to vector<32x1024xf32>
    %126 = arith.subf %112, %125 : vector<32x1024xf32>
    %127 = vector.broadcast %124 : vector<32x1xf32> to vector<32x1024xf32>
    %128 = arith.mulf %126, %127 : vector<32x1024xf32>
    %cst_35 = arith.constant 0.000000e+00 : f32
    %129 = vector.broadcast %cst_35 : f32 to vector<32x1024xf32>
    %130 = arith.maximumf %128, %129 : vector<32x1024xf32>
    %c0_36 = arith.constant 0 : index
    %c0_37 = arith.constant 0 : index
    %131 = vector.load %arg8[%c0_36, %c0_37] : memref<32x32xf32, #tpu.memory_space<vmem>>, vector<32x32xf32>
    %cst_38 = arith.constant dense<0.000000e+00> : vector<32x1024xf32>
    %132 = tpu.matmul %131, %130, %cst_38 {dimension_numbers = #tpu.dot_dimension_numbers<[1], [0], [0], [1], [0, 0, 1, 1], [], []>} : vector<32x32xf32>, vector<32x1024xf32>, vector<32x1024xf32> -> vector<32x1024xf32>
    %c0_39 = arith.constant 0 : index
    %c0_40 = arith.constant 0 : index
    %133 = vector.load %arg9[%c0_39, %c0_40] : memref<32x1xf32, #tpu.memory_space<vmem>>, vector<32x1xf32>
    %134 = vector.broadcast %133 : vector<32x1xf32> to vector<32x1024xf32>
    %135 = arith.addf %132, %134 : vector<32x1024xf32>
    %cst_41 = arith.constant dense<0.000000e+00> : vector<32x1xf32>
    %136 = tpu.matmul %135, %3, %cst_41 {dimension_numbers = #tpu.dot_dimension_numbers<[1], [0], [0], [1], [0, 0, 1, 1], [], []>} : vector<32x1024xf32>, vector<1024x1xf32>, vector<32x1xf32> -> vector<32x1xf32>
    %137 = arith.mulf %135, %135 : vector<32x1024xf32>
    %cst_42 = arith.constant dense<0.000000e+00> : vector<32x1xf32>
    %138 = tpu.matmul %137, %3, %cst_42 {dimension_numbers = #tpu.dot_dimension_numbers<[1], [0], [0], [1], [0, 0, 1, 1], [], []>} : vector<32x1024xf32>, vector<1024x1xf32>, vector<32x1xf32> -> vector<32x1xf32>
    %cst_43 = arith.constant 3.906250e-03 : f32
    %139 = vector.broadcast %cst_43 : f32 to vector<32x1xf32>
    %140 = arith.mulf %136, %139 : vector<32x1xf32>
    %cst_44 = arith.constant 3.906250e-03 : f32
    %141 = vector.broadcast %cst_44 : f32 to vector<32x1xf32>
    %142 = arith.mulf %138, %141 : vector<32x1xf32>
    %143 = arith.mulf %140, %140 : vector<32x1xf32>
    %144 = arith.subf %142, %143 : vector<32x1xf32>
    %cst_45 = arith.constant 9.99999974E-6 : f32
    %145 = vector.broadcast %cst_45 : f32 to vector<32x1xf32>
    %146 = arith.addf %144, %145 : vector<32x1xf32>
    %147 = math.rsqrt %146 : vector<32x1xf32>
    %148 = vector.broadcast %140 : vector<32x1xf32> to vector<32x1024xf32>
    %149 = arith.subf %135, %148 : vector<32x1024xf32>
    %150 = vector.broadcast %147 : vector<32x1xf32> to vector<32x1024xf32>
    %151 = arith.mulf %149, %150 : vector<32x1024xf32>
    %152 = arith.addf %1, %151 : vector<32x1024xf32>
    %c0_46 = arith.constant 0 : index
    %c0_47 = arith.constant 0 : index
    %c0_48 = arith.constant 0 : index
    %153 = vector.load %arg10[%c0_46, %c0_47, %c0_48] : memref<1x32x1024xf32, #tpu.memory_space<vmem>>, vector<1x32x1024xf32>
    %154 = vector.shape_cast %153 : vector<1x32x1024xf32> to vector<32x1024xf32>
    %155 = vector.shape_cast %152 : vector<32x1024xf32> to vector<1x32x1024xf32>
    tpu.vector_store %arg10[%c0_46, %c0_47, %c0_48], %155 {strides = array<i32>} : memref<1x32x1024xf32, #tpu.memory_space<vmem>>, vector<1x32x1024xf32>,
    return
  }
  func.func @transform_0(%arg0: i32) -> (i32, i32, i32) {
    %c0_i32 = arith.constant 0 : i32
    %c0_i32_0 = arith.constant 0 : i32
    %c0_i32_1 = arith.constant 0 : i32
    return %arg0, %c0_i32, %c0_i32_0 : i32, i32, i32
  }
  func.func @transform_1(%arg0: i32) -> (i32, i32) {
    %c0_i32 = arith.constant 0 : i32
    %c0_i32_0 = arith.constant 0 : i32
    %c0_i32_1 = arith.constant 0 : i32
    return %c0_i32, %c0_i32_0 : i32, i32
  }
  func.func @transform_2(%arg0: i32) -> (i32, i32) {
    %c0_i32 = arith.constant 0 : i32
    %c0_i32_0 = arith.constant 0 : i32
    %c0_i32_1 = arith.constant 0 : i32
    return %c0_i32, %c0_i32_0 : i32, i32
  }
  func.func @transform_3(%arg0: i32) -> (i32, i32) {
    %c0_i32 = arith.constant 0 : i32
    %c0_i32_0 = arith.constant 0 : i32
    %c0_i32_1 = arith.constant 0 : i32
    return %c0_i32, %c0_i32_0 : i32, i32
  }
  func.func @transform_4(%arg0: i32) -> (i32, i32) {
    %c0_i32 = arith.constant 0 : i32
    %c0_i32_0 = arith.constant 0 : i32
    %c0_i32_1 = arith.constant 0 : i32
    return %c0_i32, %c0_i32_0 : i32, i32
  }
  func.func @transform_5(%arg0: i32) -> (i32, i32, i32) {
    %c0_i32 = arith.constant 0 : i32
    %c0_i32_0 = arith.constant 0 : i32
    %c0_i32_1 = arith.constant 0 : i32
    %c0_i32_2 = arith.constant 0 : i32
    return %c0_i32, %c0_i32_0, %c0_i32_1 : i32, i32, i32
  }
  func.func @transform_6(%arg0: i32) -> (i32, i32, i32) {
    %c0_i32 = arith.constant 0 : i32
    %c0_i32_0 = arith.constant 0 : i32
    %c0_i32_1 = arith.constant 0 : i32
    %c0_i32_2 = arith.constant 0 : i32
    return %c0_i32, %c0_i32_0, %c0_i32_1 : i32, i32, i32
  }
  func.func @transform_7(%arg0: i32) -> (i32, i32) {
    %c0_i32 = arith.constant 0 : i32
    %c0_i32_0 = arith.constant 0 : i32
    %c0_i32_1 = arith.constant 0 : i32
    return %c0_i32, %c0_i32_0 : i32, i32
  }
  func.func @transform_8(%arg0: i32) -> (i32, i32) {
    %c0_i32 = arith.constant 0 : i32
    %c0_i32_0 = arith.constant 0 : i32
    %c0_i32_1 = arith.constant 0 : i32
    return %c0_i32, %c0_i32_0 : i32, i32
  }
  func.func @transform_9(%arg0: i32) -> (i32, i32, i32) {
    %c0_i32 = arith.constant 0 : i32
    %c0_i32_0 = arith.constant 0 : i32
    %c0_i32_1 = arith.constant 0 : i32
    return %arg0, %c0_i32, %c0_i32_0 : i32, i32, i32
  }
}

</mosaic_0001>

<llo_original>
// kernel: tpu_custom_call.1
$region0: #{tpu_custom_call.1}
  #allocation0 [shape = 'u32[]', space=smem, size = 0x4, offset = 0x4, fixed_abs, tag = 'smem constant byte address 0x4 - core index']
  #allocation1 [shape = 'u32[72,128]{1,0:T(1,128)}', space=vmem, size = 0x9000, scoped, tag = 'internal scratch']
  %s0 = inlined_call_operand.vmem [shape: f32[2,32,1024], index: 0, kind: input, shape index: {}]
  %s1 = inlined_call_operand.vmem [shape: f32[1,1024], index: 1, kind: input, shape index: {}]
  %s2 = inlined_call_operand.vmem [shape: f32[1024,1], index: 2, kind: input, shape index: {}]
  %s3 = inlined_call_operand.vmem [shape: f32[24,96], index: 3, kind: input, shape index: {}]
  %s4 = inlined_call_operand.vmem [shape: f32[8,1], index: 4, kind: input, shape index: {}]
  %s5 = inlined_call_operand.vmem [shape: f32[4,24,24], index: 5, kind: input, shape index: {}]
  %s6 = inlined_call_operand.vmem [shape: f32[4,8,1], index: 6, kind: input, shape index: {}]
  %s7 = inlined_call_operand.vmem [shape: f32[32,32], index: 7, kind: input, shape index: {}]
  %s8 = inlined_call_operand.vmem [shape: f32[32,1], index: 8, kind: input, shape index: {}]
  %s9 = inlined_call_operand.hbm [shape: f32[2,32,1024], index: 9, kind: output, shape index: {}]
  %s10 = sld [smem:[#allocation0]]
  $region69: #{tpu_custom_call.1} parent=0
    _
  %s12 = ssub.s32 1, %s10
  %s13 = scalar_select 0, %s12, %s10
  $region1: #{tpu_custom_call.1} parent=0
    #allocation2 [shape = 'u8[262144]{0}', space=vmem, size = 0x40000, scoped, tag = 'output window, operand 0']
    #allocation3 [shape = 's32[2]{0}', space=sflag, size = 0x8, scoped, tag = 'scoped memory for tpu_custom_call.1']
    %14 = vsyncpa [#allocation3], 0
    %s15 = scalar_lea.sflag [#allocation3], 1
    %16 = vsyncpa %s15, 0
    loop: start=0, step=1, limit=4
    $region2: #{tpu_custom_call.1} parent=1 // loop_pre_header
      _
    $region3: #{tpu_custom_call.1} parent=1 // loop_header
      %s18 = sphi 0, %s22
      %p19 = scmp.ge.s32.totalorder %s18, 4
      %s28 = sphi 0, %s30
      %s31 = sphi 0, %s28
      %s32 = sphi 0, %s31
      %s48 = sphi 0, %s32
      %s52 = sphi 0, %s52
      %s54 = sphi 0, %s52
      %s55 = sphi 0, %s54
      %s69 = sphi 0, %s55
      %s73 = sphi 0, %s73
      %s75 = sphi 0, %s73
      %s76 = sphi 0, %s75
      %s90 = sphi 0, %s76
      %s94 = sphi 0, %s94
      %s96 = sphi 0, %s94
      %s97 = sphi 0, %s96
      %s111 = sphi 0, %s97
      %s115 = sphi 0, %s115
      %s117 = sphi 0, %s115
      %s118 = sphi 0, %s117
      %s132 = sphi 0, %s118
      %s136 = sphi 0, %s136
      %s138 = sphi 0, %s136
      %s139 = sphi 0, %s138
      %s153 = sphi 0, %s139
      %s157 = sphi 0, %s157
      %s159 = sphi 0, %s157
      %s160 = sphi 0, %s159
      %s174 = sphi 0, %s160
      %s178 = sphi 0, %s178
      %s180 = sphi 0, %s178
      %s181 = sphi 0, %s180
      %s195 = sphi 0, %s181
      %s199 = sphi 0, %s199
      %s201 = sphi 0, %s199
      %s202 = sphi 0, %s201
      %s216 = sphi 0, %s202
      %s222 = sphi 0, %s224
      %s225 = sphi 0, %s222
      %s226 = sphi 0, %s225
      %s242 = sphi 0, %s226
    $region4: #{tpu_custom_call.1} parent=1 // loop_header_branch
      %21 = sbr.rel (%p19) target = $region8
    $region5: #{tpu_custom_call.1} parent=1 // loop_body
      %s23 = ssub.s32 %s18, 1
      %s24 = ssub.s32 %s18, 2
      %s25 = sadd.s32 %s18, 1
      %s26 = ssub.s32 %s18, %s25
      %p27 = scmp.eq.s32.totalorder %s26, 0
      %s29 = sadd.s32 %s28, 1
      %s30 = scalar_select %p27, %s28, %s29
      %p33 = pneg %p27
      %p34 = scmp.eq.s32.totalorder %s18, 1
      %p35 = por %p33, %p34
      %p36 = scmp.ne.s32.totalorder %s28, %s31
      %p37 = scmp.eq.s32.totalorder %s18, 0
      %p38 = por %p36, %p37
      %p39 = scmp.ne.s32.totalorder %s28, %s31
      %p40 = scmp.eq.s32.totalorder %s23, 1
      %p41 = por %p39, %p40
      %p42 = scmp.ne.s32.totalorder %s31, %s32
      %p43 = scmp.eq.s32.totalorder %s23, 0
      %p44 = por %p42, %p43
      %p45 = scmp.ne.s32.totalorder %s31, %s32
      %p46 = scmp.eq.s32.totalorder %s24, 1
      %p47 = por %p45, %p46
      %p49 = scmp.ne.s32.totalorder %s32, %s48
      %p50 = scmp.eq.s32.totalorder %s24, 0
      %p51 = por %p49, %p50
      %s53 = sadd.s32 %s52, 1
      %p56 = scmp.eq.s32.totalorder %s18, 1
      %p57 = scmp.ne.s32.totalorder %s52, %s54
      %p58 = scmp.eq.s32.totalorder %s18, 0
      %p59 = por %p57, %p58
      %p60 = scmp.ne.s32.totalorder %s52, %s54
      %p61 = scmp.eq.s32.totalorder %s23, 1
      %p62 = por %p60, %p61
      %p63 = scmp.ne.s32.totalorder %s54, %s55
      %p64 = scmp.eq.s32.totalorder %s23, 0
      %p65 = por %p63, %p64
      %p66 = scmp.ne.s32.totalorder %s54, %s55
      %p67 = scmp.eq.s32.totalorder %s24, 1
      %p68 = por %p66, %p67
      %p70 = scmp.ne.s32.totalorder %s55, %s69
      %p71 = scmp.eq.s32.totalorder %s24, 0
      %p72 = por %p70, %p71
      %s74 = sadd.s32 %s73, 1
      %p77 = scmp.eq.s32.totalorder %s18, 1
      %p78 = scmp.ne.s32.totalorder %s73, %s75
      %p79 = scmp.eq.s32.totalorder %s18, 0
      %p80 = por %p78, %p79
      %p81 = scmp.ne.s32.totalorder %s73, %s75
      %p82 = scmp.eq.s32.totalorder %s23, 1
      %p83 = por %p81, %p82
      %p84 = scmp.ne.s32.totalorder %s75, %s76
      %p85 = scmp.eq.s32.totalorder %s23, 0
      %p86 = por %p84, %p85
      %p87 = scmp.ne.s32.totalorder %s75, %s76
      %p88 = scmp.eq.s32.totalorder %s24, 1
      %p89 = por %p87, %p88
      %p91 = scmp.ne.s32.totalorder %s76, %s90
      %p92 = scmp.eq.s32.totalorder %s24, 0
      %p93 = por %p91, %p92
      %s95 = sadd.s32 %s94, 1
      %p98 = scmp.eq.s32.totalorder %s18, 1
      %p99 = scmp.ne.s32.totalorder %s94, %s96
      %p100 = scmp.eq.s32.totalorder %s18, 0
      %p101 = por %p99, %p100
      %p102 = scmp.ne.s32.totalorder %s94, %s96
      %p103 = scmp.eq.s32.totalorder %s23, 1
      %p104 = por %p102, %p103
      %p105 = scmp.ne.s32.totalorder %s96, %s97
      %p106 = scmp.eq.s32.totalorder %s23, 0
      %p107 = por %p105, %p106
      %p108 = scmp.ne.s32.totalorder %s96, %s97
      %p109 = scmp.eq.s32.totalorder %s24, 1
      %p110 = por %p108, %p109
      %p112 = scmp.ne.s32.totalorder %s97, %s111
      %p113 = scmp.eq.s32.totalorder %s24, 0
      %p114 = por %p112, %p113
      %s116 = sadd.s32 %s115, 1
      %p119 = scmp.eq.s32.totalorder %s18, 1
      %p120 = scmp.ne.s32.totalorder %s115, %s117
      %p121 = scmp.eq.s32.totalorder %s18, 0
      %p122 = por %p120, %p121
      %p123 = scmp.ne.s32.totalorder %s115, %s117
      %p124 = scmp.eq.s32.totalorder %s23, 1
      %p125 = por %p123, %p124
      %p126 = scmp.ne.s32.totalorder %s117, %s118
      %p127 = scmp.eq.s32.totalorder %s23, 0
      %p128 = por %p126, %p127
      %p129 = scmp.ne.s32.totalorder %s117, %s118
      %p130 = scmp.eq.s32.totalorder %s24, 1
      %p131 = por %p129, %p130
      %p133 = scmp.ne.s32.totalorder %s118, %s132
      %p134 = scmp.eq.s32.totalorder %s24, 0
      %p135 = por %p133, %p134
      %s137 = sadd.s32 %s136, 1
      %p140 = scmp.eq.s32.totalorder %s18, 1
      %p141 = scmp.ne.s32.totalorder %s136, %s138
      %p142 = scmp.eq.s32.totalorder %s18, 0
      %p143 = por %p141, %p142
      %p144 = scmp.ne.s32.totalorder %s136, %s138
      %p145 = scmp.eq.s32.totalorder %s23, 1
      %p146 = por %p144, %p145
      %p147 = scmp.ne.s32.totalorder %s138, %s139
      %p148 = scmp.eq.s32.totalorder %s23, 0
      %p149 = por %p147, %p148
      %p150 = scmp.ne.s32.totalorder %s138, %s139
      %p151 = scmp.eq.s32.totalorder %s24, 1
      %p152 = por %p150, %p151
      %p154 = scmp.ne.s32.totalorder %s139, %s153
      %p155 = scmp.eq.s32.totalorder %s24, 0
      %p156 = por %p154, %p155
      %s158 = sadd.s32 %s157, 1
      %p161 = scmp.eq.s32.totalorder %s18, 1
      %p162 = scmp.ne.s32.totalorder %s157, %s159
      %p163 = scmp.eq.s32.totalorder %s18, 0
      %p164 = por %p162, %p163
      %p165 = scmp.ne.s32.totalorder %s157, %s159
      %p166 = scmp.eq.s32.totalorder %s23, 1
      %p167 = por %p165, %p166
      %p168 = scmp.ne.s32.totalorder %s159, %s160
      %p169 = scmp.eq.s32.totalorder %s23, 0
      %p170 = por %p168, %p169
      %p171 = scmp.ne.s32.totalorder %s159, %s160
      %p172 = scmp.eq.s32.totalorder %s24, 1
      %p173 = por %p171, %p172
      %p175 = scmp.ne.s32.totalorder %s160, %s174
      %p176 = scmp.eq.s32.totalorder %s24, 0
      %p177 = por %p175, %p176
      %s179 = sadd.s32 %s178, 1
      %p182 = scmp.eq.s32.totalorder %s18, 1
      %p183 = scmp.ne.s32.totalorder %s178, %s180
      %p184 = scmp.eq.s32.totalorder %s18, 0
      %p185 = por %p183, %p184
      %p186 = scmp.ne.s32.totalorder %s178, %s180
      %p187 = scmp.eq.s32.totalorder %s23, 1
      %p188 = por %p186, %p187
      %p189 = scmp.ne.s32.totalorder %s180, %s181
      %p190 = scmp.eq.s32.totalorder %s23, 0
      %p191 = por %p189, %p190
      %p192 = scmp.ne.s32.totalorder %s180, %s181
      %p193 = scmp.eq.s32.totalorder %s24, 1
      %p194 = por %p192, %p193
      %p196 = scmp.ne.s32.totalorder %s181, %s195
      %p197 = scmp.eq.s32.totalorder %s24, 0
      %p198 = por %p196, %p197
      %s200 = sadd.s32 %s199, 1
      %p203 = scmp.eq.s32.totalorder %s18, 1
      %p204 = scmp.ne.s32.totalorder %s199, %s201
      %p205 = scmp.eq.s32.totalorder %s18, 0
      %p206 = por %p204, %p205
      %p207 = scmp.ne.s32.totalorder %s199, %s201
      %p208 = scmp.eq.s32.totalorder %s23, 1
      %p209 = por %p207, %p208
      %p210 = scmp.ne.s32.totalorder %s201, %s202
      %p211 = scmp.eq.s32.totalorder %s23, 0
      %p212 = por %p210, %p211
      %p213 = scmp.ne.s32.totalorder %s201, %s202
      %p214 = scmp.eq.s32.totalorder %s24, 1
      %p215 = por %p213, %p214
      %p217 = scmp.ne.s32.totalorder %s202, %s216
      %p218 = scmp.eq.s32.totalorder %s24, 0
      %p219 = por %p217, %p218
      %s220 = ssub.s32 %s18, %s25
      %p221 = scmp.eq.s32.totalorder %s220, 0
      %s223 = sadd.s32 %s222, 1
      %s224 = scalar_select %p221, %s222, %s223
      %p227 = pneg %p221
      %p228 = scmp.eq.s32.totalorder %s18, 1
      %p229 = por %p227, %p228
      %p230 = scmp.ne.s32.totalorder %s222, %s225
      %p231 = scmp.eq.s32.totalorder %s18, 0
      %p232 = por %p230, %p231
      %p233 = scmp.ne.s32.totalorder %s222, %s225
      %p234 = scmp.eq.s32.totalorder %s23, 1
      %p235 = por %p233, %p234
      %p236 = scmp.ne.s32.totalorder %s225, %s226
      %p237 = scmp.eq.s32.totalorder %s23, 0
      %p238 = por %p236, %p237
      %p239 = scmp.ne.s32.totalorder %s225, %s226
      %p240 = scmp.eq.s32.totalorder %s24, 1
      %p241 = por %p239, %p240
      %p243 = scmp.ne.s32.totalorder %s226, %s242
      %p244 = scmp.eq.s32.totalorder %s24, 0
      %p245 = por %p243, %p244
      %p246 = scmp.le.s32.totalorder 1, %s18
      %p247 = scmp.lt.s32.totalorder %s18, 3
      %p248 = pnand %p246, %p247
      %p249 = pneg %p248
      // Predicated region
      $region9: #{tpu_custom_call.1} parent=5 // pred_check
        _
      $region10: #{tpu_custom_call.1} parent=5 // pred_check_branch
        %251 = sbr.rel (%p248) target = $region12
      $region11: #{tpu_custom_call.1} parent=5 // pred_region
        %s252 = ssub.s32 %s18, 1
        // Predicated region
        $region13: #{tpu_custom_call.1} parent=11 // pred_check
          %p253 = pneg %p65
        $region14: #{tpu_custom_call.1} parent=11 // pred_check_branch
          %255 = sbr.rel (%p253) target = $region16
        $region15: #{tpu_custom_call.1} parent=11 // pred_region
          _
        $region16: #{tpu_custom_call.1} parent=11 // pred_fallthru
          _
        // Predicated region
        $region17: #{tpu_custom_call.1} parent=11 // pred_check
          %p256 = pneg %p86
        $region18: #{tpu_custom_call.1} parent=11 // pred_check_branch
          %258 = sbr.rel (%p256) target = $region20
        $region19: #{tpu_custom_call.1} parent=11 // pred_region
          _
        $region20: #{tpu_custom_call.1} parent=11 // pred_fallthru
          _
        // Predicated region
        $region21: #{tpu_custom_call.1} parent=11 // pred_check
          %p259 = pneg %p107
        $region22: #{tpu_custom_call.1} parent=11 // pred_check_branch
          %261 = sbr.rel (%p259) target = $region24
        $region23: #{tpu_custom_call.1} parent=11 // pred_region
          _
        $region24: #{tpu_custom_call.1} parent=11 // pred_fallthru
          _
        // Predicated region
        $region25: #{tpu_custom_call.1} parent=11 // pred_check
          %p262 = pneg %p128
        $region26: #{tpu_custom_call.1} parent=11 // pred_check_branch
          %264 = sbr.rel (%p262) target = $region28
        $region27: #{tpu_custom_call.1} parent=11 // pred_region
          _
        $region28: #{tpu_custom_call.1} parent=11 // pred_fallthru
          _
        // Predicated region
        $region29: #{tpu_custom_call.1} parent=11 // pred_check
          %p265 = pneg %p149
        $region30: #{tpu_custom_call.1} parent=11 // pred_check_branch
          %267 = sbr.rel (%p265) target = $region32
        $region31: #{tpu_custom_call.1} parent=11 // pred_region
          _
        $region32: #{tpu_custom_call.1} parent=11 // pred_fallthru
          _
        // Predicated region
        $region33: #{tpu_custom_call.1} parent=11 // pred_check
          %p268 = pneg %p170
        $region34: #{tpu_custom_call.1} parent=11 // pred_check_branch
          %270 = sbr.rel (%p268) target = $region36
        $region35: #{tpu_custom_call.1} parent=11 // pred_region
          _
        $region36: #{tpu_custom_call.1} parent=11 // pred_fallthru
          _
        // Predicated region
        $region37: #{tpu_custom_call.1} parent=11 // pred_check
          %p271 = pneg %p191
        $region38: #{tpu_custom_call.1} parent=11 // pred_check_branch
          %273 = sbr.rel (%p271) target = $region40
        $region39: #{tpu_custom_call.1} parent=11 // pred_region
          _
        $region40: #{tpu_custom_call.1} parent=11 // pred_fallthru
          _
        // Predicated region
        $region41: #{tpu_custom_call.1} parent=11 // pred_check
          %p274 = pneg %p212
        $region42: #{tpu_custom_call.1} parent=11 // pred_check_branch
          %276 = sbr.rel (%p274) target = $region44
        $region43: #{tpu_custom_call.1} parent=11 // pred_region
          _
        $region44: #{tpu_custom_call.1} parent=11 // pred_fallthru
          _
      $region12: #{tpu_custom_call.1} parent=5 // pred_fallthru
        _
      %p277 = scmp.lt.s32.totalorder %s18, 2
      // Predicated region
      $region45: #{tpu_custom_call.1} parent=5 // pred_check
        %p278 = pneg %p277
      $region46: #{tpu_custom_call.1} parent=5 // pred_check_branch
        %280 = sbr.rel (%p278) target = $region48
      $region47: #{tpu_custom_call.1} parent=5 // pred_region
        // Predicated region
        $region49: #{tpu_custom_call.1} parent=47 // pred_check
          %p281 = pneg %p38
        $region50: #{tpu_custom_call.1} parent=47 // pred_check_branch
          %283 = sbr.rel (%p281) target = $region52
        $region51: #{tpu_custom_call.1} parent=47 // pred_region
          %p284 = scmp.lt.s32.totalorder %s18, 1
          %s285 = scalar_select %p284, %s18, 1
          %s286 = smul.addr %s285, 32
          %s287 = smul.addr %s286, 8
          %s288 = scalar_lea.vmem %s0, %s287
        $region52: #{tpu_custom_call.1} parent=47 // pred_fallthru
          _
      $region48: #{tpu_custom_call.1} parent=5 // pred_fallthru
        _
      %p289 = scmp.le.s32.totalorder 1, %s18
      %p290 = scmp.lt.s32.totalorder %s18, 3
      %p291 = pnand %p289, %p290
      %p292 = pneg %p291
      // Predicated region
      $region53: #{tpu_custom_call.1} parent=5 // pred_check
        _
      $region54: #{tpu_custom_call.1} parent=5 // pred_check_branch
        %294 = sbr.rel (%p291) target = $region56
      $region55: #{tpu_custom_call.1} parent=5 // pred_region
        %s295 = ssub.s32 %s18, 1
        %p296 = scmp.lt.s32.totalorder %s23, 1
        %s297 = scalar_select %p296, %s23, 1
        %s298 = smul.addr %s297, 32
        %s299 = smul.addr %s298, 8
        %s300 = scalar_lea.vmem %s0, %s299
        %p301 = pneg %p44
        %p302 = pneg %p41
        %p303 = pneg %p65
        %p304 = pneg %p62
        %p305 = pneg %p86
        %p306 = pneg %p83
        %p307 = pneg %p107
        %p308 = pneg %p104
        %p309 = pneg %p128
        %p310 = pneg %p125
        %p311 = pneg %p149
        %p312 = pneg %p146
        %p313 = pneg %p170
        %p314 = pneg %p167
        %p315 = pneg %p191
        %p316 = pneg %p188
        %p317 = pneg %p212
        %p318 = pneg %p209
        %p319 = pneg %p238
        %p320 = pneg %p235
        %s321 = sand.u32 %s225, 1
        %s322 = scalar_lea.sflag [#allocation3], %s321
        %s323 = sand.u32 %s225, 1
        %s324 = smul.addr %s323, 256
        %s325 = scalar_lea.vmem [#allocation2], %s324
        %p326 = scmp.lt.s32.totalorder %s23, 1
        %s327 = scalar_select %p326, %s23, 1
        %s328 = smul.addr %s327, 32
        %s329 = smul.addr %s328, 8
        %s330 = scalar_lea.vmem %s0, %s329
        %v331 = vld [vmem:[%s330] sm:$0xff]
        %v332 = vld [vmem:[%s330 + $0x8] sm:$0xff]
        %v333 = vld [vmem:[%s330 + $0x10] sm:$0xff]
        %v334 = vld [vmem:[%s330 + $0x18] sm:$0xff]
        %v335 = vld [vmem:[%s330 + $0x20] sm:$0xff]
        %v336 = vld [vmem:[%s330 + $0x28] sm:$0xff]
        %v337 = vld [vmem:[%s330 + $0x30] sm:$0xff]
        %v338 = vld [vmem:[%s330 + $0x38] sm:$0xff]
        %v339 = vld [vmem:[%s330 + $0x40] sm:$0xff]
        %v340 = vld [vmem:[%s330 + $0x48] sm:$0xff]
        %v341 = vld [vmem:[%s330 + $0x50] sm:$0xff]
        %v342 = vld [vmem:[%s330 + $0x58] sm:$0xff]
        %v343 = vld [vmem:[%s330 + $0x60] sm:$0xff]
        %v344 = vld [vmem:[%s330 + $0x68] sm:$0xff]
        %v345 = vld [vmem:[%s330 + $0x70] sm:$0xff]
        %v346 = vld [vmem:[%s330 + $0x78] sm:$0xff]
        %v347 = vld [vmem:[%s330 + $0x80] sm:$0xff]
        %v348 = vld [vmem:[%s330 + $0x88] sm:$0xff]
        %v349 = vld [vmem:[%s330 + $0x90] sm:$0xff]
        %v350 = vld [vmem:[%s330 + $0x98] sm:$0xff]
        %v351 = vld [vmem:[%s330 + $0xa0] sm:$0xff]
        %v352 = vld [vmem:[%s330 + $0xa8] sm:$0xff]
        %v353 = vld [vmem:[%s330 + $0xb0] sm:$0xff]
        %v354 = vld [vmem:[%s330 + $0xb8] sm:$0xff]
        %v355 = vld [vmem:[%s330 + $0xc0] sm:$0xff]
        %v356 = vld [vmem:[%s330 + $0xc8] sm:$0xff]
        %v357 = vld [vmem:[%s330 + $0xd0] sm:$0xff]
        %v358 = vld [vmem:[%s330 + $0xd8] sm:$0xff]
        %v359 = vld [vmem:[%s330 + $0xe0] sm:$0xff]
        %v360 = vld [vmem:[%s330 + $0xe8] sm:$0xff]
        %v361 = vld [vmem:[%s330 + $0xf0] sm:$0xff]
        %v362 = vld [vmem:[%s330 + $0xf8] sm:$0xff]
        %v363 = vld [vmem:[%s1] sm:$0xff]
        %v364 = vld [vmem:[%s2] sm:$0xff]
        %v365 = vld [vmem:[%s2 + $0x8] sm:$0xff]
        %v366 = vld [vmem:[%s2 + $0x10] sm:$0xff]
        %v367 = vld [vmem:[%s2 + $0x18] sm:$0xff]
        %v368 = vld [vmem:[%s2 + $0x20] sm:$0xff]
        %v369 = vld [vmem:[%s2 + $0x28] sm:$0xff]
        %v370 = vld [vmem:[%s2 + $0x30] sm:$0xff]
        %v371 = vld [vmem:[%s2 + $0x38] sm:$0xff]
        %v372 = vld [vmem:[%s2 + $0x40] sm:$0xff]
        %v373 = vld [vmem:[%s2 + $0x48] sm:$0xff]
        %v374 = vld [vmem:[%s2 + $0x50] sm:$0xff]
        %v375 = vld [vmem:[%s2 + $0x58] sm:$0xff]
        %v376 = vld [vmem:[%s2 + $0x60] sm:$0xff]
        %v377 = vld [vmem:[%s2 + $0x68] sm:$0xff]
        %v378 = vld [vmem:[%s2 + $0x70] sm:$0xff]
        %v379 = vld [vmem:[%s2 + $0x78] sm:$0xff]
        %v380 = vld [vmem:[%s2 + $0x80] sm:$0xff]
        %v381 = vld [vmem:[%s2 + $0x88] sm:$0xff]
        %v382 = vld [vmem:[%s2 + $0x90] sm:$0xff]
        %v383 = vld [vmem:[%s2 + $0x98] sm:$0xff]
        %v384 = vld [vmem:[%s2 + $0xa0] sm:$0xff]
        %v385 = vld [vmem:[%s2 + $0xa8] sm:$0xff]
        %v386 = vld [vmem:[%s2 + $0xb0] sm:$0xff]
        %v387 = vld [vmem:[%s2 + $0xb8] sm:$0xff]
        %v388 = vld [vmem:[%s2 + $0xc0] sm:$0xff]
        %v389 = vld [vmem:[%s2 + $0xc8] sm:$0xff]
        %v390 = vld [vmem:[%s2 + $0xd0] sm:$0xff]
        %v391 = vld [vmem:[%s2 + $0xd8] sm:$0xff]
        %v392 = vld [vmem:[%s2 + $0xe0] sm:$0xff]
        %v393 = vld [vmem:[%s2 + $0xe8] sm:$0xff]
        %v394 = vld [vmem:[%s2 + $0xf0] sm:$0xff]
        %v395 = vld [vmem:[%s2 + $0xf8] sm:$0xff]
        %v396 = vld [vmem:[%s2 + $0x100] sm:$0xff]
        %v397 = vld [vmem:[%s2 + $0x108] sm:$0xff]
        %v398 = vld [vmem:[%s2 + $0x110] sm:$0xff]
        %v399 = vld [vmem:[%s2 + $0x118] sm:$0xff]
        %v400 = vld [vmem:[%s2 + $0x120] sm:$0xff]
        %v401 = vld [vmem:[%s2 + $0x128] sm:$0xff]
        %v402 = vld [vmem:[%s2 + $0x130] sm:$0xff]
        %v403 = vld [vmem:[%s2 + $0x138] sm:$0xff]
        %v404 = vld [vmem:[%s2 + $0x140] sm:$0xff]
        %v405 = vld [vmem:[%s2 + $0x148] sm:$0xff]
        %v406 = vld [vmem:[%s2 + $0x150] sm:$0xff]
        %v407 = vld [vmem:[%s2 + $0x158] sm:$0xff]
        %v408 = vld [vmem:[%s2 + $0x160] sm:$0xff]
        %v409 = vld [vmem:[%s2 + $0x168] sm:$0xff]
        %v410 = vld [vmem:[%s2 + $0x170] sm:$0xff]
        %v411 = vld [vmem:[%s2 + $0x178] sm:$0xff]
        %v412 = vld [vmem:[%s2 + $0x180] sm:$0xff]
        %v413 = vld [vmem:[%s2 + $0x188] sm:$0xff]
        %v414 = vld [vmem:[%s2 + $0x190] sm:$0xff]
        %v415 = vld [vmem:[%s2 + $0x198] sm:$0xff]
        %v416 = vld [vmem:[%s2 + $0x1a0] sm:$0xff]
        %v417 = vld [vmem:[%s2 + $0x1a8] sm:$0xff]
        %v418 = vld [vmem:[%s2 + $0x1b0] sm:$0xff]
        %v419 = vld [vmem:[%s2 + $0x1b8] sm:$0xff]
        %v420 = vld [vmem:[%s2 + $0x1c0] sm:$0xff]
        %v421 = vld [vmem:[%s2 + $0x1c8] sm:$0xff]
        %v422 = vld [vmem:[%s2 + $0x1d0] sm:$0xff]
        %v423 = vld [vmem:[%s2 + $0x1d8] sm:$0xff]
        %v424 = vld [vmem:[%s2 + $0x1e0] sm:$0xff]
        %v425 = vld [vmem:[%s2 + $0x1e8] sm:$0xff]
        %v426 = vld [vmem:[%s2 + $0x1f0] sm:$0xff]
        %v427 = vld [vmem:[%s2 + $0x1f8] sm:$0xff]
        %v428 = vld [vmem:[%s2 + $0x200] sm:$0xff]
        %v429 = vld [vmem:[%s2 + $0x208] sm:$0xff]
        %v430 = vld [vmem:[%s2 + $0x210] sm:$0xff]
        %v431 = vld [vmem:[%s2 + $0x218] sm:$0xff]
        %v432 = vld [vmem:[%s2 + $0x220] sm:$0xff]
        %v433 = vld [vmem:[%s2 + $0x228] sm:$0xff]
        %v434 = vld [vmem:[%s2 + $0x230] sm:$0xff]
        %v435 = vld [vmem:[%s2 + $0x238] sm:$0xff]
        %v436 = vld [vmem:[%s2 + $0x240] sm:$0xff]
        %v437 = vld [vmem:[%s2 + $0x248] sm:$0xff]
        %v438 = vld [vmem:[%s2 + $0x250] sm:$0xff]
        %v439 = vld [vmem:[%s2 + $0x258] sm:$0xff]
        %v440 = vld [vmem:[%s2 + $0x260] sm:$0xff]
        %v441 = vld [vmem:[%s2 + $0x268] sm:$0xff]
        %v442 = vld [vmem:[%s2 + $0x270] sm:$0xff]
        %v443 = vld [vmem:[%s2 + $0x278] sm:$0xff]
        %v444 = vld [vmem:[%s2 + $0x280] sm:$0xff]
        %v445 = vld [vmem:[%s2 + $0x288] sm:$0xff]
        %v446 = vld [vmem:[%s2 + $0x290] sm:$0xff]
        %v447 = vld [vmem:[%s2 + $0x298] sm:$0xff]
        %v448 = vld [vmem:[%s2 + $0x2a0] sm:$0xff]
        %v449 = vld [vmem:[%s2 + $0x2a8] sm:$0xff]
        %v450 = vld [vmem:[%s2 + $0x2b0] sm:$0xff]
        %v451 = vld [vmem:[%s2 + $0x2b8] sm:$0xff]
        %v452 = vld [vmem:[%s2 + $0x2c0] sm:$0xff]
        %v453 = vld [vmem:[%s2 + $0x2c8] sm:$0xff]
        %v454 = vld [vmem:[%s2 + $0x2d0] sm:$0xff]
        %v455 = vld [vmem:[%s2 + $0x2d8] sm:$0xff]
        %v456 = vld [vmem:[%s2 + $0x2e0] sm:$0xff]
        %v457 = vld [vmem:[%s2 + $0x2e8] sm:$0xff]
        %v458 = vld [vmem:[%s2 + $0x2f0] sm:$0xff]
        %v459 = vld [vmem:[%s2 + $0x2f8] sm:$0xff]
        %v460 = vld [vmem:[%s2 + $0x300] sm:$0xff]
        %v461 = vld [vmem:[%s2 + $0x308] sm:$0xff]
        %v462 = vld [vmem:[%s2 + $0x310] sm:$0xff]
        %v463 = vld [vmem:[%s2 + $0x318] sm:$0xff]
        %v464 = vld [vmem:[%s2 + $0x320] sm:$0xff]
        %v465 = vld [vmem:[%s2 + $0x328] sm:$0xff]
        %v466 = vld [vmem:[%s2 + $0x330] sm:$0xff]
        %v467 = vld [vmem:[%s2 + $0x338] sm:$0xff]
        %v468 = vld [vmem:[%s2 + $0x340] sm:$0xff]
        %v469 = vld [vmem:[%s2 + $0x348] sm:$0xff]
        %v470 = vld [vmem:[%s2 + $0x350] sm:$0xff]
        %v471 = vld [vmem:[%s2 + $0x358] sm:$0xff]
        %v472 = vld [vmem:[%s2 + $0x360] sm:$0xff]
        %v473 = vld [vmem:[%s2 + $0x368] sm:$0xff]
        %v474 = vld [vmem:[%s2 + $0x370] sm:$0xff]
        %v475 = vld [vmem:[%s2 + $0x378] sm:$0xff]
        %v476 = vld [vmem:[%s2 + $0x380] sm:$0xff]
        %v477 = vld [vmem:[%s2 + $0x388] sm:$0xff]
        %v478 = vld [vmem:[%s2 + $0x390] sm:$0xff]
        %v479 = vld [vmem:[%s2 + $0x398] sm:$0xff]
        %v480 = vld [vmem:[%s2 + $0x3a0] sm:$0xff]
        %v481 = vld [vmem:[%s2 + $0x3a8] sm:$0xff]
        %v482 = vld [vmem:[%s2 + $0x3b0] sm:$0xff]
        %v483 = vld [vmem:[%s2 + $0x3b8] sm:$0xff]
        %v484 = vld [vmem:[%s2 + $0x3c0] sm:$0xff]
        %v485 = vld [vmem:[%s2 + $0x3c8] sm:$0xff]
        %v486 = vld [vmem:[%s2 + $0x3d0] sm:$0xff]
        %v487 = vld [vmem:[%s2 + $0x3d8] sm:$0xff]
        %v488 = vld [vmem:[%s2 + $0x3e0] sm:$0xff]
        %v489 = vld [vmem:[%s2 + $0x3e8] sm:$0xff]
        %v490 = vld [vmem:[%s2 + $0x3f0] sm:$0xff]
        %v491 = vld [vmem:[%s2 + $0x3f8] sm:$0xff]
        %v492 = vld [vmem:[%s3] sm:$0xff]
        %v493 = vld [vmem:[%s3 + $0x8] sm:$0xff]
        %v494 = vld [vmem:[%s3 + $0x10] sm:$0xff]
        %v495 = vld [vmem:[%s4] sm:$0xff]
        %496 = vrot.lane.b32.xlu0 %v331, 1
        %v497 = vpop.permute.xlu0 %496
        %498 = vrot.lane.b32.xlu0 %v339, 1
        %v499 = vpop.permute.xlu0 %498
        %500 = vrot.lane.b32.xlu0 %v347, 1
        %v501 = vpop.permute.xlu0 %500
        %502 = vrot.lane.b32.xlu0 %v355, 1
        %v503 = vpop.permute.xlu0 %502
        %504 = vrot.lane.b32.xlu0 %v332, 1
        %v505 = vpop.permute.xlu0 %504
        %506 = vrot.lane.b32.xlu0 %v340, 1
        %v507 = vpop.permute.xlu0 %506
        %508 = vrot.lane.b32.xlu0 %v348, 1
        %v509 = vpop.permute.xlu0 %508
        %510 = vrot.lane.b32.xlu0 %v356, 1
        %v511 = vpop.permute.xlu0 %510
        %512 = vrot.lane.b32.xlu0 %v333, 1
        %v513 = vpop.permute.xlu0 %512
        %514 = vrot.lane.b32.xlu0 %v341, 1
        %v515 = vpop.permute.xlu0 %514
        %516 = vrot.lane.b32.xlu0 %v349, 1
        %v517 = vpop.permute.xlu0 %516
        %518 = vrot.lane.b32.xlu0 %v357, 1
        %v519 = vpop.permute.xlu0 %518
        %520 = vrot.lane.b32.xlu0 %v334, 1
        %v521 = vpop.permute.xlu0 %520
        %522 = vrot.lane.b32.xlu0 %v342, 1
        %v523 = vpop.permute.xlu0 %522
        %524 = vrot.lane.b32.xlu0 %v350, 1
        %v525 = vpop.permute.xlu0 %524
        %526 = vrot.lane.b32.xlu0 %v358, 1
        %v527 = vpop.permute.xlu0 %526
        %528 = vrot.lane.b32.xlu0 %v335, 1
        %v529 = vpop.permute.xlu0 %528
        %530 = vrot.lane.b32.xlu0 %v343, 1
        %v531 = vpop.permute.xlu0 %530
        %532 = vrot.lane.b32.xlu0 %v351, 1
        %v533 = vpop.permute.xlu0 %532
        %534 = vrot.lane.b32.xlu0 %v359, 1
        %v535 = vpop.permute.xlu0 %534
        %536 = vrot.lane.b32.xlu0 %v336, 1
        %v537 = vpop.permute.xlu0 %536
        %538 = vrot.lane.b32.xlu0 %v344, 1
        %v539 = vpop.permute.xlu0 %538
        %540 = vrot.lane.b32.xlu0 %v352, 1
        %v541 = vpop.permute.xlu0 %540
        %542 = vrot.lane.b32.xlu0 %v360, 1
        %v543 = vpop.permute.xlu0 %542
        %544 = vrot.lane.b32.xlu0 %v337, 1
        %v545 = vpop.permute.xlu0 %544
        %546 = vrot.lane.b32.xlu0 %v345, 1
        %v547 = vpop.permute.xlu0 %546
        %548 = vrot.lane.b32.xlu0 %v353, 1
        %v549 = vpop.permute.xlu0 %548
        %550 = vrot.lane.b32.xlu0 %v361, 1
        %v551 = vpop.permute.xlu0 %550
        %552 = vrot.lane.b32.xlu0 %v338, 1
        %v553 = vpop.permute.xlu0 %552
        %554 = vrot.lane.b32.xlu0 %v346, 1
        %v555 = vpop.permute.xlu0 %554
        %556 = vrot.lane.b32.xlu0 %v354, 1
        %v557 = vpop.permute.xlu0 %556
        %558 = vrot.lane.b32.xlu0 %v362, 1
        %v559 = vpop.permute.xlu0 %558
        %v560 = vlaneseq
        %v561 = vand.u32 %v560, 127
        %vm562 = vcmp.lt.s32.totalorder %v561, 1
        %v563 = vsel %vm562, %v545, %v553
        %v564 = vsel %vm562, %v547, %v555
        %v565 = vsel %vm562, %v549, %v557
        %v566 = vsel %vm562, %v551, %v559
        %v567 = vsel %vm562, %v537, %v545
        %v568 = vsel %vm562, %v539, %v547
        %v569 = vsel %vm562, %v541, %v549
        %v570 = vsel %vm562, %v543, %v551
        %v571 = vsel %vm562, %v529, %v537
        %v572 = vsel %vm562, %v531, %v539
        %v573 = vsel %vm562, %v533, %v541
        %v574 = vsel %vm562, %v535, %v543
        %v575 = vsel %vm562, %v521, %v529
        %v576 = vsel %vm562, %v523, %v531
        %v577 = vsel %vm562, %v525, %v533
        %v578 = vsel %vm562, %v527, %v535
        %v579 = vsel %vm562, %v513, %v521
        %v580 = vsel %vm562, %v515, %v523
        %v581 = vsel %vm562, %v517, %v525
        %v582 = vsel %vm562, %v519, %v527
        %v583 = vsel %vm562, %v505, %v513
        %v584 = vsel %vm562, %v507, %v515
        %v585 = vsel %vm562, %v509, %v517
        %v586 = vsel %vm562, %v511, %v519
        %v587 = vsel %vm562, %v497, %v505
        %v588 = vsel %vm562, %v499, %v507
        %v589 = vsel %vm562, %v501, %v509
        %v590 = vsel %vm562, %v503, %v511
        %v591 = vsel %vm562, %v553, %v497
        %v592 = vsel %vm562, %v555, %v499
        %v593 = vsel %vm562, %v557, %v501
        %v594 = vsel %vm562, %v559, %v503
        %595 = vrot.lane.b32.xlu0 %v331, 127
        %v596 = vpop.permute.xlu0 %595
        %597 = vrot.lane.b32.xlu0 %v339, 127
        %v598 = vpop.permute.xlu0 %597
        %599 = vrot.lane.b32.xlu0 %v347, 127
        %v600 = vpop.permute.xlu0 %599
        %601 = vrot.lane.b32.xlu0 %v355, 127
        %v602 = vpop.permute.xlu0 %601
        %603 = vrot.lane.b32.xlu0 %v332, 127
        %v604 = vpop.permute.xlu0 %603
        %605 = vrot.lane.b32.xlu0 %v340, 127
        %v606 = vpop.permute.xlu0 %605
        %607 = vrot.lane.b32.xlu0 %v348, 127
        %v608 = vpop.permute.xlu0 %607
        %609 = vrot.lane.b32.xlu0 %v356, 127
        %v610 = vpop.permute.xlu0 %609
        %611 = vrot.lane.b32.xlu0 %v333, 127
        %v612 = vpop.permute.xlu0 %611
        %613 = vrot.lane.b32.xlu0 %v341, 127
        %v614 = vpop.permute.xlu0 %613
        %615 = vrot.lane.b32.xlu0 %v349, 127
        %v616 = vpop.permute.xlu0 %615
        %617 = vrot.lane.b32.xlu0 %v357, 127
        %v618 = vpop.permute.xlu0 %617
        %619 = vrot.lane.b32.xlu0 %v334, 127
        %v620 = vpop.permute.xlu0 %619
        %621 = vrot.lane.b32.xlu0 %v342, 127
        %v622 = vpop.permute.xlu0 %621
        %623 = vrot.lane.b32.xlu0 %v350, 127
        %v624 = vpop.permute.xlu0 %623
        %625 = vrot.lane.b32.xlu0 %v358, 127
        %v626 = vpop.permute.xlu0 %625
        %627 = vrot.lane.b32.xlu0 %v335, 127
        %v628 = vpop.permute.xlu0 %627
        %629 = vrot.lane.b32.xlu0 %v343, 127
        %v630 = vpop.permute.xlu0 %629
        %631 = vrot.lane.b32.xlu0 %v351, 127
        %v632 = vpop.permute.xlu0 %631
        %633 = vrot.lane.b32.xlu0 %v359, 127
        %v634 = vpop.permute.xlu0 %633
        %635 = vrot.lane.b32.xlu0 %v336, 127
        %v636 = vpop.permute.xlu0 %635
        %637 = vrot.lane.b32.xlu0 %v344, 127
        %v638 = vpop.permute.xlu0 %637
        %639 = vrot.lane.b32.xlu0 %v352, 127
        %v640 = vpop.permute.xlu0 %639
        %641 = vrot.lane.b32.xlu0 %v360, 127
        %v642 = vpop.permute.xlu0 %641
        %643 = vrot.lane.b32.xlu0 %v337, 127
        %v644 = vpop.permute.xlu0 %643
        %645 = vrot.lane.b32.xlu0 %v345, 127
        %v646 = vpop.permute.xlu0 %645
        %647 = vrot.lane.b32.xlu0 %v353, 127
        %v648 = vpop.permute.xlu0 %647
        %649 = vrot.lane.b32.xlu0 %v361, 127
        %v650 = vpop.permute.xlu0 %649
        %651 = vrot.lane.b32.xlu0 %v338, 127
        %v652 = vpop.permute.xlu0 %651
        %653 = vrot.lane.b32.xlu0 %v346, 127
        %v654 = vpop.permute.xlu0 %653
        %655 = vrot.lane.b32.xlu0 %v354, 127
        %v656 = vpop.permute.xlu0 %655
        %657 = vrot.lane.b32.xlu0 %v362, 127
        %v658 = vpop.permute.xlu0 %657
        %vm659 = vcmp.lt.s32.totalorder %v561, 127
        %v660 = vsel %vm659, %v644, %v652
        %v661 = vsel %vm659, %v646, %v654
        %v662 = vsel %vm659, %v648, %v656
        %v663 = vsel %vm659, %v650, %v658
        %v664 = vsel %vm659, %v636, %v644
        %v665 = vsel %vm659, %v638, %v646
        %v666 = vsel %vm659, %v640, %v648
        %v667 = vsel %vm659, %v642, %v650
        %v668 = vsel %vm659, %v628, %v636
        %v669 = vsel %vm659, %v630, %v638
        %v670 = vsel %vm659, %v632, %v640
        %v671 = vsel %vm659, %v634, %v642
        %v672 = vsel %vm659, %v620, %v628
        %v673 = vsel %vm659, %v622, %v630
        %v674 = vsel %vm659, %v624, %v632
        %v675 = vsel %vm659, %v626, %v634
        %v676 = vsel %vm659, %v612, %v620
        %v677 = vsel %vm659, %v614, %v622
        %v678 = vsel %vm659, %v616, %v624
        %v679 = vsel %vm659, %v618, %v626
        %v680 = vsel %vm659, %v604, %v612
        %v681 = vsel %vm659, %v606, %v614
        %v682 = vsel %vm659, %v608, %v616
        %v683 = vsel %vm659, %v610, %v618
        %v684 = vsel %vm659, %v596, %v604
        %v685 = vsel %vm659, %v598, %v606
        %v686 = vsel %vm659, %v600, %v608
        %v687 = vsel %vm659, %v602, %v610
        %v688 = vsel %vm659, %v652, %v596
        %v689 = vsel %vm659, %v654, %v598
        %v690 = vsel %vm659, %v656, %v600
        %v691 = vsel %vm659, %v658, %v602
        %vm692 = vcmask 785408
        %v694 = vsel %vm692, %v492, 0
        %v697 = vsel %vm692, %v493, 0
        %v700 = vsel %vm692, %v494, 0
        %702 = vmatpush.msra.mxu0 0.0
        %703 = vmatpush.msra.mxu0 0.0
        %704 = vmatpush.msra.mxu0 0.0
        %705 = vmatpush.msra.mxu0 0.0
        %706 = vmatpush.msra.mxu0 %v687
        %707 = vmatpush.msra.mxu0 %v686
        %708 = vmatpush.msra.mxu0 %v685
        %709 = vmatpush.msra.mxu0 %v684
        %710 = vmatpush.msra.mxu0 %v355
        %711 = vmatpush.msra.mxu0 %v347
        %712 = vmatpush.msra.mxu0 %v339
        %713 = vmatpush.msra.mxu0 %v331
        %714 = vmatpush.msra.mxu0 %v594
        %715 = vmatpush.msra.mxu0 %v593
        %716 = vmatpush.msra.mxu0 %v592
        %717 = vmatpush.msra.mxu0 %v591
        %718 = vmatmul.f32.gmra.mxu0 %v694
        %v719 = vpop.f32.mrf.mxu0
        %v720 = vadd.f32 0.0, %v719
        %721 = vmatmul.f32.gmra.mxu0 %v697
        %v722 = vpop.f32.mrf.mxu0
        %v723 = vadd.f32 0.0, %v722
        %724 = vmatmul.f32.gmra.mxu0 %v700
        %v725 = vpop.f32.mrf.mxu0
        %v726 = vadd.f32 0.0, %v725
        %727 = vdwg.mxu0
        %728 = vmatpush.msra.mxu0 0.0
        %729 = vmatpush.msra.mxu0 0.0
        %730 = vmatpush.msra.mxu0 0.0
        %731 = vmatpush.msra.mxu0 0.0
        %732 = vmatpush.msra.mxu0 %v683
        %733 = vmatpush.msra.mxu0 %v682
        %734 = vmatpush.msra.mxu0 %v681
        %735 = vmatpush.msra.mxu0 %v680
        %736 = vmatpush.msra.mxu0 %v356
        %737 = vmatpush.msra.mxu0 %v348
        %738 = vmatpush.msra.mxu0 %v340
        %739 = vmatpush.msra.mxu0 %v332
        %740 = vmatpush.msra.mxu0 %v590
        %741 = vmatpush.msra.mxu0 %v589
        %742 = vmatpush.msra.mxu0 %v588
        %743 = vmatpush.msra.mxu0 %v587
        %744 = vmatmul.f32.gmra.mxu0 %v694
        %v745 = vpop.f32.mrf.mxu0
        %v746 = vadd.f32 0.0, %v745
        %747 = vmatmul.f32.gmra.mxu0 %v697
        %v748 = vpop.f32.mrf.mxu0
        %v749 = vadd.f32 0.0, %v748
        %750 = vmatmul.f32.gmra.mxu0 %v700
        %v751 = vpop.f32.mrf.mxu0
        %v752 = vadd.f32 0.0, %v751
        %753 = vdwg.mxu0
        %754 = vmatpush.msra.mxu0 0.0
        %755 = vmatpush.msra.mxu0 0.0
        %756 = vmatpush.msra.mxu0 0.0
        %757 = vmatpush.msra.mxu0 0.0
        %758 = vmatpush.msra.mxu0 %v679
        %759 = vmatpush.msra.mxu0 %v678
        %760 = vmatpush.msra.mxu0 %v677
        %761 = vmatpush.msra.mxu0 %v676
        %762 = vmatpush.msra.mxu0 %v357
        %763 = vmatpush.msra.mxu0 %v349
        %764 = vmatpush.msra.mxu0 %v341
        %765 = vmatpush.msra.mxu0 %v333
        %766 = vmatpush.msra.mxu0 %v586
        %767 = vmatpush.msra.mxu0 %v585
        %768 = vmatpush.msra.mxu0 %v584
        %769 = vmatpush.msra.mxu0 %v583
        %770 = vmatmul.f32.gmra.mxu0 %v694
        %v771 = vpop.f32.mrf.mxu0
        %v772 = vadd.f32 0.0, %v771
        %773 = vmatmul.f32.gmra.mxu0 %v697
        %v774 = vpop.f32.mrf.mxu0
        %v775 = vadd.f32 0.0, %v774
        %776 = vmatmul.f32.gmra.mxu0 %v700
        %v777 = vpop.f32.mrf.mxu0
        %v778 = vadd.f32 0.0, %v777
        %779 = vdwg.mxu0
        %780 = vmatpush.msra.mxu0 0.0
        %781 = vmatpush.msra.mxu0 0.0
        %782 = vmatpush.msra.mxu0 0.0
        %783 = vmatpush.msra.mxu0 0.0
        %784 = vmatpush.msra.mxu0 %v675
        %785 = vmatpush.msra.mxu0 %v674
        %786 = vmatpush.msra.mxu0 %v673
        %787 = vmatpush.msra.mxu0 %v672
        %788 = vmatpush.msra.mxu0 %v358
        %789 = vmatpush.msra.mxu0 %v350
        %790 = vmatpush.msra.mxu0 %v342
        %791 = vmatpush.msra.mxu0 %v334
        %792 = vmatpush.msra.mxu0 %v582
        %793 = vmatpush.msra.mxu0 %v581
        %794 = vmatpush.msra.mxu0 %v580
        %795 = vmatpush.msra.mxu0 %v579
        %796 = vmatmul.f32.gmra.mxu0 %v694
        %v797 = vpop.f32.mrf.mxu0
        %v798 = vadd.f32 0.0, %v797
        %799 = vmatmul.f32.gmra.mxu0 %v697
        %v800 = vpop.f32.mrf.mxu0
        %v801 = vadd.f32 0.0, %v800
        %802 = vmatmul.f32.gmra.mxu0 %v700
        %v803 = vpop.f32.mrf.mxu0
        %v804 = vadd.f32 0.0, %v803
        %805 = vdwg.mxu0
        %806 = vmatpush.msra.mxu0 0.0
        %807 = vmatpush.msra.mxu0 0.0
        %808 = vmatpush.msra.mxu0 0.0
        %809 = vmatpush.msra.mxu0 0.0
        %810 = vmatpush.msra.mxu0 %v671
        %811 = vmatpush.msra.mxu0 %v670
        %812 = vmatpush.msra.mxu0 %v669
        %813 = vmatpush.msra.mxu0 %v668
        %814 = vmatpush.msra.mxu0 %v359
        %815 = vmatpush.msra.mxu0 %v351
        %816 = vmatpush.msra.mxu0 %v343
        %817 = vmatpush.msra.mxu0 %v335
        %818 = vmatpush.msra.mxu0 %v578
        %819 = vmatpush.msra.mxu0 %v577
        %820 = vmatpush.msra.mxu0 %v576
        %821 = vmatpush.msra.mxu0 %v575
        %822 = vmatmul.f32.gmra.mxu0 %v694
        %v823 = vpop.f32.mrf.mxu0
        %v824 = vadd.f32 0.0, %v823
        %825 = vmatmul.f32.gmra.mxu0 %v697
        %v826 = vpop.f32.mrf.mxu0
        %v827 = vadd.f32 0.0, %v826
        %828 = vmatmul.f32.gmra.mxu0 %v700
        %v829 = vpop.f32.mrf.mxu0
        %v830 = vadd.f32 0.0, %v829
        %831 = vdwg.mxu0
        %832 = vmatpush.msra.mxu0 0.0
        %833 = vmatpush.msra.mxu0 0.0
        %834 = vmatpush.msra.mxu0 0.0
        %835 = vmatpush.msra.mxu0 0.0
        %836 = vmatpush.msra.mxu0 %v667
        %837 = vmatpush.msra.mxu0 %v666
        %838 = vmatpush.msra.mxu0 %v665
        %839 = vmatpush.msra.mxu0 %v664
        %840 = vmatpush.msra.mxu0 %v360
        %841 = vmatpush.msra.mxu0 %v352
        %842 = vmatpush.msra.mxu0 %v344
        %843 = vmatpush.msra.mxu0 %v336
        %844 = vmatpush.msra.mxu0 %v574
        %845 = vmatpush.msra.mxu0 %v573
        %846 = vmatpush.msra.mxu0 %v572
        %847 = vmatpush.msra.mxu0 %v571
        %848 = vmatmul.f32.gmra.mxu0 %v694
        %v849 = vpop.f32.mrf.mxu0
        %v850 = vadd.f32 0.0, %v849
        %851 = vmatmul.f32.gmra.mxu0 %v697
        %v852 = vpop.f32.mrf.mxu0
        %v853 = vadd.f32 0.0, %v852
        %854 = vmatmul.f32.gmra.mxu0 %v700
        %v855 = vpop.f32.mrf.mxu0
        %v856 = vadd.f32 0.0, %v855
        %857 = vdwg.mxu0
        %858 = vmatpush.msra.mxu0 0.0
        %859 = vmatpush.msra.mxu0 0.0
        %860 = vmatpush.msra.mxu0 0.0
        %861 = vmatpush.msra.mxu0 0.0
        %862 = vmatpush.msra.mxu0 %v663
        %863 = vmatpush.msra.mxu0 %v662
        %864 = vmatpush.msra.mxu0 %v661
        %865 = vmatpush.msra.mxu0 %v660
        %866 = vmatpush.msra.mxu0 %v361
        %867 = vmatpush.msra.mxu0 %v353
        %868 = vmatpush.msra.mxu0 %v345
        %869 = vmatpush.msra.mxu0 %v337
        %870 = vmatpush.msra.mxu0 %v570
        %871 = vmatpush.msra.mxu0 %v569
        %872 = vmatpush.msra.mxu0 %v568
        %873 = vmatpush.msra.mxu0 %v567
        %874 = vmatmul.f32.gmra.mxu0 %v694
        %v875 = vpop.f32.mrf.mxu0
        %v876 = vadd.f32 0.0, %v875
        %877 = vmatmul.f32.gmra.mxu0 %v697
        %v878 = vpop.f32.mrf.mxu0
        %v879 = vadd.f32 0.0, %v878
        %880 = vmatmul.f32.gmra.mxu0 %v700
        %v881 = vpop.f32.mrf.mxu0
        %v882 = vadd.f32 0.0, %v881
        %883 = vdwg.mxu0
        %884 = vmatpush.msra.mxu0 0.0
        %885 = vmatpush.msra.mxu0 0.0
        %886 = vmatpush.msra.mxu0 0.0
        %887 = vmatpush.msra.mxu0 0.0
        %888 = vmatpush.msra.mxu0 %v691
        %889 = vmatpush.msra.mxu0 %v690
        %890 = vmatpush.msra.mxu0 %v689
        %891 = vmatpush.msra.mxu0 %v688
        %892 = vmatpush.msra.mxu0 %v362
        %893 = vmatpush.msra.mxu0 %v354
        %894 = vmatpush.msra.mxu0 %v346
        %895 = vmatpush.msra.mxu0 %v338
        %896 = vmatpush.msra.mxu0 %v566
        %897 = vmatpush.msra.mxu0 %v565
        %898 = vmatpush.msra.mxu0 %v564
        %899 = vmatpush.msra.mxu0 %v563
        %900 = vmatmul.f32.gmra.mxu0 %v694
        %v901 = vpop.f32.mrf.mxu0
        %v902 = vadd.f32 0.0, %v901
        %903 = vmatmul.f32.gmra.mxu0 %v697
        %v904 = vpop.f32.mrf.mxu0
        %v905 = vadd.f32 0.0, %v904
        %906 = vmatmul.f32.gmra.mxu0 %v700
        %v907 = vpop.f32.mrf.mxu0
        %v908 = vadd.f32 0.0, %v907
        %909 = vdwg.mxu0
        %910 = vrot.lane.b32.xlu0 %v720, 32
        %v911 = vpop.permute.xlu0 %910
        %912 = vrot.lane.b32.xlu0 %v746, 32
        %v913 = vpop.permute.xlu0 %912
        %914 = vrot.lane.b32.xlu0 %v772, 32
        %v915 = vpop.permute.xlu0 %914
        %916 = vrot.lane.b32.xlu0 %v798, 32
        %v917 = vpop.permute.xlu0 %916
        %918 = vrot.lane.b32.xlu0 %v824, 32
        %v919 = vpop.permute.xlu0 %918
        %920 = vrot.lane.b32.xlu0 %v850, 32
        %v921 = vpop.permute.xlu0 %920
        %922 = vrot.lane.b32.xlu0 %v876, 32
        %v923 = vpop.permute.xlu0 %922
        %924 = vrot.lane.b32.xlu0 %v902, 32
        %v925 = vpop.permute.xlu0 %924
        %vm926 = vcmp.lt.s32.totalorder %v561, 32
        %v927 = vsel %vm926, %v923, %v925
        %v928 = vsel %vm926, %v921, %v923
        %v929 = vsel %vm926, %v919, %v921
        %v930 = vsel %vm926, %v917, %v919
        %v931 = vsel %vm926, %v915, %v917
        %v932 = vsel %vm926, %v913, %v915
        %v933 = vsel %vm926, %v911, %v913
        %v934 = vsel %vm926, %v925, %v911
        %935 = vrot.lane.b32.xlu0 %v726, 96
        %v936 = vpop.permute.xlu0 %935
        %937 = vrot.lane.b32.xlu0 %v752, 96
        %v938 = vpop.permute.xlu0 %937
        %939 = vrot.lane.b32.xlu0 %v778, 96
        %v940 = vpop.permute.xlu0 %939
        %941 = vrot.lane.b32.xlu0 %v804, 96
        %v942 = vpop.permute.xlu0 %941
        %943 = vrot.lane.b32.xlu0 %v830, 96
        %v944 = vpop.permute.xlu0 %943
        %945 = vrot.lane.b32.xlu0 %v856, 96
        %v946 = vpop.permute.xlu0 %945
        %947 = vrot.lane.b32.xlu0 %v882, 96
        %v948 = vpop.permute.xlu0 %947
        %949 = vrot.lane.b32.xlu0 %v908, 96
        %v950 = vpop.permute.xlu0 %949
        %vm951 = vcmp.lt.s32.totalorder %v561, 96
        %v952 = vsel %vm951, %v948, %v950
        %v953 = vsel %vm951, %v946, %v948
        %v954 = vsel %vm951, %v944, %v946
        %v955 = vsel %vm951, %v942, %v944
        %v956 = vsel %vm951, %v940, %v942
        %v957 = vsel %vm951, %v938, %v940
        %v958 = vsel %vm951, %v936, %v938
        %v959 = vsel %vm951, %v950, %v936
        %v960 = vadd.f32 %v934, %v723
        %v961 = vadd.f32 %v933, %v749
        %v962 = vadd.f32 %v932, %v775
        %v963 = vadd.f32 %v931, %v801
        %v964 = vadd.f32 %v930, %v827
        %v965 = vadd.f32 %v929, %v853
        %v966 = vadd.f32 %v928, %v879
        %v967 = vadd.f32 %v927, %v905
        %v968 = vadd.f32 %v960, %v958
        %v969 = vadd.f32 %v961, %v957
        %v970 = vadd.f32 %v962, %v956
        %v971 = vadd.f32 %v963, %v955
        %v972 = vadd.f32 %v964, %v954
        %v973 = vadd.f32 %v965, %v953
        %v974 = vadd.f32 %v966, %v952
        %v975 = vadd.f32 %v967, %v959
        %977 = vset.pattern.permute.xlu0 0
        %978 = vperm.xlu0 %977, %v495
        %v979 = vpop.permute.xlu0 %978
        %v981 = vadd.f32 %v968, %v979
        %v982 = vadd.f32 %v969, %v979
        %v983 = vadd.f32 %v970, %v979
        %v984 = vadd.f32 %v971, %v979
        %v985 = vadd.f32 %v972, %v979
        %v986 = vadd.f32 %v973, %v979
        %v987 = vadd.f32 %v974, %v979
        %v988 = vadd.f32 %v975, %v979
        %989 = vmatpush.msra.mxu0 %v379
        %990 = vmatpush.msra.mxu0 %v378
        %991 = vmatpush.msra.mxu0 %v377
        %992 = vmatpush.msra.mxu0 %v376
        %993 = vmatpush.msra.mxu0 %v375
        %994 = vmatpush.msra.mxu0 %v374
        %995 = vmatpush.msra.mxu0 %v373
        %996 = vmatpush.msra.mxu0 %v372
        %997 = vmatpush.msra.mxu0 %v371
        %998 = vmatpush.msra.mxu0 %v370
        %999 = vmatpush.msra.mxu0 %v369
        %1000 = vmatpush.msra.mxu0 %v368
        %1001 = vmatpush.msra.mxu0 %v367
        %1002 = vmatpush.msra.mxu0 %v366
        %1003 = vmatpush.msra.mxu0 %v365
        %1004 = vmatpush.msra.mxu0 %v364
        %1005 = vmatmul.f32.gmra.mxu0 %v981
        %v1006 = vpop.f32.mrf.mxu0
        %v1007 = vadd.f32 0.0, %v1006
        %1008 = vdwg.mxu0
        %1009 = vmatpush.msra.mxu0 %v395
        %1010 = vmatpush.msra.mxu0 %v394
        %1011 = vmatpush.msra.mxu0 %v393
        %1012 = vmatpush.msra.mxu0 %v392
        %1013 = vmatpush.msra.mxu0 %v391
        %1014 = vmatpush.msra.mxu0 %v390
        %1015 = vmatpush.msra.mxu0 %v389
        %1016 = vmatpush.msra.mxu0 %v388
        %1017 = vmatpush.msra.mxu0 %v387
        %1018 = vmatpush.msra.mxu0 %v386
        %1019 = vmatpush.msra.mxu0 %v385
        %1020 = vmatpush.msra.mxu0 %v384
        %1021 = vmatpush.msra.mxu0 %v383
        %1022 = vmatpush.msra.mxu0 %v382
        %1023 = vmatpush.msra.mxu0 %v381
        %1024 = vmatpush.msra.mxu0 %v380
        %1025 = vmatmul.f32.gmra.mxu0 %v982
        %v1026 = vpop.f32.mrf.mxu0
        %v1027 = vadd.f32 %v1007, %v1026
        %1028 = vdwg.mxu0
        %1029 = vmatpush.msra.mxu0 %v411
        %1030 = vmatpush.msra.mxu0 %v410
        %1031 = vmatpush.msra.mxu0 %v409
        %1032 = vmatpush.msra.mxu0 %v408
        %1033 = vmatpush.msra.mxu0 %v407
        %1034 = vmatpush.msra.mxu0 %v406
        %1035 = vmatpush.msra.mxu0 %v405
        %1036 = vmatpush.msra.mxu0 %v404
        %1037 = vmatpush.msra.mxu0 %v403
        %1038 = vmatpush.msra.mxu0 %v402
        %1039 = vmatpush.msra.mxu0 %v401
        %1040 = vmatpush.msra.mxu0 %v400
        %1041 = vmatpush.msra.mxu0 %v399
        %1042 = vmatpush.msra.mxu0 %v398
        %1043 = vmatpush.msra.mxu0 %v397
        %1044 = vmatpush.msra.mxu0 %v396
        %1045 = vmatmul.f32.gmra.mxu0 %v983
        %v1046 = vpop.f32.mrf.mxu0
        %v1047 = vadd.f32 %v1027, %v1046
        %1048 = vdwg.mxu0
        %1049 = vmatpush.msra.mxu0 %v427
        %1050 = vmatpush.msra.mxu0 %v426
        %1051 = vmatpush.msra.mxu0 %v425
        %1052 = vmatpush.msra.mxu0 %v424
        %1053 = vmatpush.msra.mxu0 %v423
        %1054 = vmatpush.msra.mxu0 %v422
        %1055 = vmatpush.msra.mxu0 %v421
        %1056 = vmatpush.msra.mxu0 %v420
        %1057 = vmatpush.msra.mxu0 %v419
        %1058 = vmatpush.msra.mxu0 %v418
        %1059 = vmatpush.msra.mxu0 %v417
        %1060 = vmatpush.msra.mxu0 %v416
        %1061 = vmatpush.msra.mxu0 %v415
        %1062 = vmatpush.msra.mxu0 %v414
        %1063 = vmatpush.msra.mxu0 %v413
        %1064 = vmatpush.msra.mxu0 %v412
        %1065 = vmatmul.f32.gmra.mxu0 %v984
        %v1066 = vpop.f32.mrf.mxu0
        %v1067 = vadd.f32 %v1047, %v1066
        %1068 = vdwg.mxu0
        %1069 = vmatpush.msra.mxu0 %v443
        %1070 = vmatpush.msra.mxu0 %v442
        %1071 = vmatpush.msra.mxu0 %v441
        %1072 = vmatpush.msra.mxu0 %v440
        %1073 = vmatpush.msra.mxu0 %v439
        %1074 = vmatpush.msra.mxu0 %v438
        %1075 = vmatpush.msra.mxu0 %v437
        %1076 = vmatpush.msra.mxu0 %v436
        %1077 = vmatpush.msra.mxu0 %v435
        %1078 = vmatpush.msra.mxu0 %v434
        %1079 = vmatpush.msra.mxu0 %v433
        %1080 = vmatpush.msra.mxu0 %v432
        %1081 = vmatpush.msra.mxu0 %v431
        %1082 = vmatpush.msra.mxu0 %v430
        %1083 = vmatpush.msra.mxu0 %v429
        %1084 = vmatpush.msra.mxu0 %v428
        %1085 = vmatmul.f32.gmra.mxu0 %v985
        %v1086 = vpop.f32.mrf.mxu0
        %v1087 = vadd.f32 %v1067, %v1086
        %1088 = vdwg.mxu0
        %1089 = vmatpush.msra.mxu0 %v459
        %1090 = vmatpush.msra.mxu0 %v458
        %1091 = vmatpush.msra.mxu0 %v457
        %1092 = vmatpush.msra.mxu0 %v456
        %1093 = vmatpush.msra.mxu0 %v455
        %1094 = vmatpush.msra.mxu0 %v454
        %1095 = vmatpush.msra.mxu0 %v453
        %1096 = vmatpush.msra.mxu0 %v452
        %1097 = vmatpush.msra.mxu0 %v451
        %1098 = vmatpush.msra.mxu0 %v450
        %1099 = vmatpush.msra.mxu0 %v449
        %1100 = vmatpush.msra.mxu0 %v448
        %1101 = vmatpush.msra.mxu0 %v447
        %1102 = vmatpush.msra.mxu0 %v446
        %1103 = vmatpush.msra.mxu0 %v445
        %1104 = vmatpush.msra.mxu0 %v444
        %1105 = vmatmul.f32.gmra.mxu0 %v986
        %v1106 = vpop.f32.mrf.mxu0
        %v1107 = vadd.f32 %v1087, %v1106
        %1108 = vdwg.mxu0
        %1109 = vmatpush.msra.mxu0 %v475
        %1110 = vmatpush.msra.mxu0 %v474
        %1111 = vmatpush.msra.mxu0 %v473
        %1112 = vmatpush.msra.mxu0 %v472
        %1113 = vmatpush.msra.mxu0 %v471
        %1114 = vmatpush.msra.mxu0 %v470
        %1115 = vmatpush.msra.mxu0 %v469
        %1116 = vmatpush.msra.mxu0 %v468
        %1117 = vmatpush.msra.mxu0 %v467
        %1118 = vmatpush.msra.mxu0 %v466
        %1119 = vmatpush.msra.mxu0 %v465
        %1120 = vmatpush.msra.mxu0 %v464
        %1121 = vmatpush.msra.mxu0 %v463
        %1122 = vmatpush.msra.mxu0 %v462
        %1123 = vmatpush.msra.mxu0 %v461
        %1124 = vmatpush.msra.mxu0 %v460
        %1125 = vmatmul.f32.gmra.mxu0 %v987
        %v1126 = vpop.f32.mrf.mxu0
        %v1127 = vadd.f32 %v1107, %v1126
        %1128 = vdwg.mxu0
        %1129 = vmatpush.msra.mxu0 %v491
        %1130 = vmatpush.msra.mxu0 %v490
        %1131 = vmatpush.msra.mxu0 %v489
        %1132 = vmatpush.msra.mxu0 %v488
        %1133 = vmatpush.msra.mxu0 %v487
        %1134 = vmatpush.msra.mxu0 %v486
        %1135 = vmatpush.msra.mxu0 %v485
        %1136 = vmatpush.msra.mxu0 %v484
        %1137 = vmatpush.msra.mxu0 %v483
        %1138 = vmatpush.msra.mxu0 %v482
        %1139 = vmatpush.msra.mxu0 %v481
        %1140 = vmatpush.msra.mxu0 %v480
        %1141 = vmatpush.msra.mxu0 %v479
        %1142 = vmatpush.msra.mxu0 %v478
        %1143 = vmatpush.msra.mxu0 %v477
        %1144 = vmatpush.msra.mxu0 %v476
        %1145 = vmatmul.f32.gmra.mxu0 %v988
        %v1146 = vpop.f32.mrf.mxu0
        %v1147 = vadd.f32 %v1127, %v1146
        %1148 = vdwg.mxu0
        %v1149 = vmul.f32 %v981, %v981
        %v1150 = vmul.f32 %v982, %v982
        %v1151 = vmul.f32 %v983, %v983
        %v1152 = vmul.f32 %v984, %v984
        %v1153 = vmul.f32 %v985, %v985
        %v1154 = vmul.f32 %v986, %v986
        %v1155 = vmul.f32 %v987, %v987
        %v1156 = vmul.f32 %v988, %v988
        %1157 = vmatpush.msra.mxu0 %v379
        %1158 = vmatpush.msra.mxu0 %v378
        %1159 = vmatpush.msra.mxu0 %v377
        %1160 = vmatpush.msra.mxu0 %v376
        %1161 = vmatpush.msra.mxu0 %v375
        %1162 = vmatpush.msra.mxu0 %v374
        %1163 = vmatpush.msra.mxu0 %v373
        %1164 = vmatpush.msra.mxu0 %v372
        %1165 = vmatpush.msra.mxu0 %v371
        %1166 = vmatpush.msra.mxu0 %v370
        %1167 = vmatpush.msra.mxu0 %v369
        %1168 = vmatpush.msra.mxu0 %v368
        %1169 = vmatpush.msra.mxu0 %v367
        %1170 = vmatpush.msra.mxu0 %v366
        %1171 = vmatpush.msra.mxu0 %v365
        %1172 = vmatpush.msra.mxu0 %v364
        %1173 = vmatmul.f32.gmra.mxu0 %v1149
        %v1174 = vpop.f32.mrf.mxu0
        %v1175 = vadd.f32 0.0, %v1174
        %1176 = vdwg.mxu0
        %1177 = vmatpush.msra.mxu0 %v395
        %1178 = vmatpush.msra.mxu0 %v394
        %1179 = vmatpush.msra.mxu0 %v393
        %1180 = vmatpush.msra.mxu0 %v392
        %1181 = vmatpush.msra.mxu0 %v391
        %1182 = vmatpush.msra.mxu0 %v390
        %1183 = vmatpush.msra.mxu0 %v389
        %1184 = vmatpush.msra.mxu0 %v388
        %1185 = vmatpush.msra.mxu0 %v387
        %1186 = vmatpush.msra.mxu0 %v386
        %1187 = vmatpush.msra.mxu0 %v385
        %1188 = vmatpush.msra.mxu0 %v384
        %1189 = vmatpush.msra.mxu0 %v383
        %1190 = vmatpush.msra.mxu0 %v382
        %1191 = vmatpush.msra.mxu0 %v381
        %1192 = vmatpush.msra.mxu0 %v380
        %1193 = vmatmul.f32.gmra.mxu0 %v1150
        %v1194 = vpop.f32.mrf.mxu0
        %v1195 = vadd.f32 %v1175, %v1194
        %1196 = vdwg.mxu0
        %1197 = vmatpush.msra.mxu0 %v411
        %1198 = vmatpush.msra.mxu0 %v410
        %1199 = vmatpush.msra.mxu0 %v409
        %1200 = vmatpush.msra.mxu0 %v408
        %1201 = vmatpush.msra.mxu0 %v407
        %1202 = vmatpush.msra.mxu0 %v406
        %1203 = vmatpush.msra.mxu0 %v405
        %1204 = vmatpush.msra.mxu0 %v404
        %1205 = vmatpush.msra.mxu0 %v403
        %1206 = vmatpush.msra.mxu0 %v402
        %1207 = vmatpush.msra.mxu0 %v401
        %1208 = vmatpush.msra.mxu0 %v400
        %1209 = vmatpush.msra.mxu0 %v399
        %1210 = vmatpush.msra.mxu0 %v398
        %1211 = vmatpush.msra.mxu0 %v397
        %1212 = vmatpush.msra.mxu0 %v396
        %1213 = vmatmul.f32.gmra.mxu0 %v1151
        %v1214 = vpop.f32.mrf.mxu0
        %v1215 = vadd.f32 %v1195, %v1214
        %1216 = vdwg.mxu0
        %1217 = vmatpush.msra.mxu0 %v427
        %1218 = vmatpush.msra.mxu0 %v426
        %1219 = vmatpush.msra.mxu0 %v425
        %1220 = vmatpush.msra.mxu0 %v424
        %1221 = vmatpush.msra.mxu0 %v423
        %1222 = vmatpush.msra.mxu0 %v422
        %1223 = vmatpush.msra.mxu0 %v421
        %1224 = vmatpush.msra.mxu0 %v420
        %1225 = vmatpush.msra.mxu0 %v419
        %1226 = vmatpush.msra.mxu0 %v418
        %1227 = vmatpush.msra.mxu0 %v417
        %1228 = vmatpush.msra.mxu0 %v416
        %1229 = vmatpush.msra.mxu0 %v415
        %1230 = vmatpush.msra.mxu0 %v414
        %1231 = vmatpush.msra.mxu0 %v413
        %1232 = vmatpush.msra.mxu0 %v412
        %1233 = vmatmul.f32.gmra.mxu0 %v1152
        %v1234 = vpop.f32.mrf.mxu0
        %v1235 = vadd.f32 %v1215, %v1234
        %1236 = vdwg.mxu0
        %1237 = vmatpush.msra.mxu0 %v443
        %1238 = vmatpush.msra.mxu0 %v442
        %1239 = vmatpush.msra.mxu0 %v441
        %1240 = vmatpush.msra.mxu0 %v440
        %1241 = vmatpush.msra.mxu0 %v439
        %1242 = vmatpush.msra.mxu0 %v438
        %1243 = vmatpush.msra.mxu0 %v437
        %1244 = vmatpush.msra.mxu0 %v436
        %1245 = vmatpush.msra.mxu0 %v435
        %1246 = vmatpush.msra.mxu0 %v434
        %1247 = vmatpush.msra.mxu0 %v433
        %1248 = vmatpush.msra.mxu0 %v432
        %1249 = vmatpush.msra.mxu0 %v431
        %1250 = vmatpush.msra.mxu0 %v430
        %1251 = vmatpush.msra.mxu0 %v429
        %1252 = vmatpush.msra.mxu0 %v428
        %1253 = vmatmul.f32.gmra.mxu0 %v1153
        %v1254 = vpop.f32.mrf.mxu0
        %v1255 = vadd.f32 %v1235, %v1254
        %1256 = vdwg.mxu0
        %1257 = vmatpush.msra.mxu0 %v459
        %1258 = vmatpush.msra.mxu0 %v458
        %1259 = vmatpush.msra.mxu0 %v457
        %1260 = vmatpush.msra.mxu0 %v456
        %1261 = vmatpush.msra.mxu0 %v455
        %1262 = vmatpush.msra.mxu0 %v454
        %1263 = vmatpush.msra.mxu0 %v453
        %1264 = vmatpush.msra.mxu0 %v452
        %1265 = vmatpush.msra.mxu0 %v451
        %1266 = vmatpush.msra.mxu0 %v450
        %1267 = vmatpush.msra.mxu0 %v449
        %1268 = vmatpush.msra.mxu0 %v448
        %1269 = vmatpush.msra.mxu0 %v447
        %1270 = vmatpush.msra.mxu0 %v446
        %1271 = vmatpush.msra.mxu0 %v445
        %1272 = vmatpush.msra.mxu0 %v444
        %1273 = vmatmul.f32.gmra.mxu0 %v1154
        %v1274 = vpop.f32.mrf.mxu0
        %v1275 = vadd.f32 %v1255, %v1274
        %1276 = vdwg.mxu0
        %1277 = vmatpush.msra.mxu0 %v475
        %1278 = vmatpush.msra.mxu0 %v474
        %1279 = vmatpush.msra.mxu0 %v473
        %1280 = vmatpush.msra.mxu0 %v472
        %1281 = vmatpush.msra.mxu0 %v471
        %1282 = vmatpush.msra.mxu0 %v470
        %1283 = vmatpush.msra.mxu0 %v469
        %1284 = vmatpush.msra.mxu0 %v468
        %1285 = vmatpush.msra.mxu0 %v467
        %1286 = vmatpush.msra.mxu0 %v466
        %1287 = vmatpush.msra.mxu0 %v465
        %1288 = vmatpush.msra.mxu0 %v464
        %1289 = vmatpush.msra.mxu0 %v463
        %1290 = vmatpush.msra.mxu0 %v462
        %1291 = vmatpush.msra.mxu0 %v461
        %1292 = vmatpush.msra.mxu0 %v460
        %1293 = vmatmul.f32.gmra.mxu0 %v1155
        %v1294 = vpop.f32.mrf.mxu0
        %v1295 = vadd.f32 %v1275, %v1294
        %1296 = vdwg.mxu0
        %1297 = vmatpush.msra.mxu0 %v491
        %1298 = vmatpush.msra.mxu0 %v490
        %1299 = vmatpush.msra.mxu0 %v489
        %1300 = vmatpush.msra.mxu0 %v488
        %1301 = vmatpush.msra.mxu0 %v487
        %1302 = vmatpush.msra.mxu0 %v486
        %1303 = vmatpush.msra.mxu0 %v485
        %1304 = vmatpush.msra.mxu0 %v484
        %1305 = vmatpush.msra.mxu0 %v483
        %1306 = vmatpush.msra.mxu0 %v482
        %1307 = vmatpush.msra.mxu0 %v481
        %1308 = vmatpush.msra.mxu0 %v480
        %1309 = vmatpush.msra.mxu0 %v479
        %1310 = vmatpush.msra.mxu0 %v478
        %1311 = vmatpush.msra.mxu0 %v477
        %1312 = vmatpush.msra.mxu0 %v476
        %1313 = vmatmul.f32.gmra.mxu0 %v1156
        %v1314 = vpop.f32.mrf.mxu0
        %v1315 = vadd.f32 %v1295, %v1314
        %1316 = vdwg.mxu0
        %v1317 = vmul.f32 %v1147, 0.00390625
        %v1318 = vmul.f32 %v1315, 0.00390625
        %v1319 = vmul.f32 %v1317, %v1317
        %v1320 = vsub.f32 %v1318, %v1319
        %v1321 = vadd.f32 %v1320, 1e-05
        %v1322 = vrsqrt.pop %v1321
        %v1323 = vmul.f32 %v1322, %v1321
        %v1324 = vmul.f32 %v1323, %v1322
        %v1325 = vmul.f32 0.5, %v1324
        %v1326 = vsub.f32 1.5, %v1325
        %v1327 = vmul.f32 %v1322, %v1326
        %vm1328 = vweird.f32 %v1321
        %vm1329 = vweird.f32 %v1322
        %vm1330 = vmor %vm1328, %vm1329
        %v1331 = vsel %vm1330, %v1322, %v1327
        %1333 = vset.pattern.permute.xlu0 0
        %1334 = vperm.xlu0 %1333, %v1317
        %v1335 = vpop.permute.xlu0 %1334
        %v1337 = vsub.f32 %v981, %v1335
        %v1338 = vsub.f32 %v982, %v1335
        %v1339 = vsub.f32 %v983, %v1335
        %v1340 = vsub.f32 %v984, %v1335
        %v1341 = vsub.f32 %v985, %v1335
        %v1342 = vsub.f32 %v986, %v1335
        %v1343 = vsub.f32 %v987, %v1335
        %v1344 = vsub.f32 %v988, %v1335
        %1346 = vset.pattern.permute.xlu0 0
        %1347 = vperm.xlu0 %1346, %v1331
        %v1348 = vpop.permute.xlu0 %1347
        %v1350 = vmul.f32 %v1337, %v1348
        %v1351 = vmul.f32 %v1338, %v1348
        %v1352 = vmul.f32 %v1339, %v1348
        %v1353 = vmul.f32 %v1340, %v1348
        %v1354 = vmul.f32 %v1341, %v1348
        %v1355 = vmul.f32 %v1342, %v1348
        %v1356 = vmul.f32 %v1343, %v1348
        %v1357 = vmul.f32 %v1344, %v1348
        %v1358 = vmax.f32 %v1350, 0.0
        %v1359 = vmax.f32 %v1351, 0.0
        %v1360 = vmax.f32 %v1352, 0.0
        %v1361 = vmax.f32 %v1353, 0.0
        %v1362 = vmax.f32 %v1354, 0.0
        %v1363 = vmax.f32 %v1355, 0.0
        %v1364 = vmax.f32 %v1356, 0.0
        %v1365 = vmax.f32 %v1357, 0.0
        %v1367 = vperm.slane %v363, 0
        %v1368 = vperm.slane %v363, 1
        %v1369 = vperm.slane %v363, 2
        %v1370 = vperm.slane %v363, 3
        %v1371 = vperm.slane %v363, 4
        %v1372 = vperm.slane %v363, 5
        %v1373 = vperm.slane %v363, 6
        %v1374 = vperm.slane %v363, 7
        %v1383 = vmul.f32 %v1358, %v1367
        %v1384 = vmul.f32 %v1359, %v1368
        %v1385 = vmul.f32 %v1360, %v1369
        %v1386 = vmul.f32 %v1361, %v1370
        %v1387 = vmul.f32 %v1362, %v1371
        %v1388 = vmul.f32 %v1363, %v1372
        %v1389 = vmul.f32 %v1364, %v1373
        %v1390 = vmul.f32 %v1365, %v1374
        %v1391 = vld [vmem:[%s5] sm:$0xff]
        %v1392 = vld [vmem:[%s5 + $0x8] sm:$0xff]
        %v1393 = vld [vmem:[%s5 + $0x10] sm:$0xff]
        %v1394 = vld [vmem:[%s5 + $0x18] sm:$0xff]
        %v1395 = vld [vmem:[%s5 + $0x20] sm:$0xff]
        %v1396 = vld [vmem:[%s5 + $0x28] sm:$0xff]
        %v1397 = vld [vmem:[%s5 + $0x30] sm:$0xff]
        %v1398 = vld [vmem:[%s5 + $0x38] sm:$0xff]
        %v1399 = vld [vmem:[%s5 + $0x40] sm:$0xff]
        %v1400 = vld [vmem:[%s5 + $0x48] sm:$0xff]
        %v1401 = vld [vmem:[%s5 + $0x50] sm:$0xff]
        %v1402 = vld [vmem:[%s5 + $0x58] sm:$0xff]
        %v1403 = vld [vmem:[%s6] sm:$0xff]
        %v1404 = vld [vmem:[%s6 + $0x8] sm:$0xff]
        %v1405 = vld [vmem:[%s6 + $0x10] sm:$0xff]
        %v1406 = vld [vmem:[%s6 + $0x18] sm:$0xff]
        %1407 = vrot.lane.b32.xlu0 %v1383, 1
        %v1408 = vpop.permute.xlu0 %1407
        %1409 = vrot.lane.b32.xlu0 %v1384, 1
        %v1410 = vpop.permute.xlu0 %1409
        %1411 = vrot.lane.b32.xlu0 %v1385, 1
        %v1412 = vpop.permute.xlu0 %1411
        %1413 = vrot.lane.b32.xlu0 %v1386, 1
        %v1414 = vpop.permute.xlu0 %1413
        %1415 = vrot.lane.b32.xlu0 %v1387, 1
        %v1416 = vpop.permute.xlu0 %1415
        %1417 = vrot.lane.b32.xlu0 %v1388, 1
        %v1418 = vpop.permute.xlu0 %1417
        %1419 = vrot.lane.b32.xlu0 %v1389, 1
        %v1420 = vpop.permute.xlu0 %1419
        %1421 = vrot.lane.b32.xlu0 %v1390, 1
        %v1422 = vpop.permute.xlu0 %1421
        %v1423 = vsel %vm562, %v1420, %v1422
        %v1424 = vsel %vm562, %v1418, %v1420
        %v1425 = vsel %vm562, %v1416, %v1418
        %v1426 = vsel %vm562, %v1414, %v1416
        %v1427 = vsel %vm562, %v1412, %v1414
        %v1428 = vsel %vm562, %v1410, %v1412
        %v1429 = vsel %vm562, %v1408, %v1410
        %v1430 = vsel %vm562, %v1422, %v1408
        %1431 = vrot.lane.b32.xlu0 %v1383, 127
        %v1432 = vpop.permute.xlu0 %1431
        %1433 = vrot.lane.b32.xlu0 %v1384, 127
        %v1434 = vpop.permute.xlu0 %1433
        %1435 = vrot.lane.b32.xlu0 %v1385, 127
        %v1436 = vpop.permute.xlu0 %1435
        %1437 = vrot.lane.b32.xlu0 %v1386, 127
        %v1438 = vpop.permute.xlu0 %1437
        %1439 = vrot.lane.b32.xlu0 %v1387, 127
        %v1440 = vpop.permute.xlu0 %1439
        %1441 = vrot.lane.b32.xlu0 %v1388, 127
        %v1442 = vpop.permute.xlu0 %1441
        %1443 = vrot.lane.b32.xlu0 %v1389, 127
        %v1444 = vpop.permute.xlu0 %1443
        %1445 = vrot.lane.b32.xlu0 %v1390, 127
        %v1446 = vpop.permute.xlu0 %1445
        %v1447 = vsel %vm659, %v1444, %v1446
        %v1448 = vsel %vm659, %v1442, %v1444
        %v1449 = vsel %vm659, %v1440, %v1442
        %v1450 = vsel %vm659, %v1438, %v1440
        %v1451 = vsel %vm659, %v1436, %v1438
        %v1452 = vsel %vm659, %v1434, %v1436
        %v1453 = vsel %vm659, %v1432, %v1434
        %v1454 = vsel %vm659, %v1446, %v1432
        %vm1455 = vcmask 195584
        %v1457 = vsel %vm1455, %v1391, 0
        %v1460 = vsel %vm1455, %v1392, 0
        %v1463 = vsel %vm1455, %v1393, 0
        %1465 = vmatpush.msra.mxu0 0.0
        %1466 = vmatpush.msra.mxu0 0.0
        %1467 = vmatpush.msra.mxu0 0.0
        %1468 = vmatpush.msra.mxu0 0.0
        %1469 = vmatpush.msra.mxu0 0.0
        %1470 = vmatpush.msra.mxu0 0.0
        %1471 = vmatpush.msra.mxu0 0.0
        %1472 = vmatpush.msra.mxu0 0.0
        %1473 = vmatpush.msra.mxu0 0.0
        %1474 = vmatpush.msra.mxu0 0.0
        %1475 = vmatpush.msra.mxu0 0.0
        %1476 = vmatpush.msra.mxu0 0.0
        %1477 = vmatpush.msra.mxu0 0.0
        %1478 = vmatpush.msra.mxu0 %v1453
        %1479 = vmatpush.msra.mxu0 %v1383
        %1480 = vmatpush.msra.mxu0 %v1430
        %1481 = vmatmul.f32.gmra.mxu0 %v1457
        %v1482 = vpop.f32.mrf.mxu0
        %v1483 = vadd.f32 0.0, %v1482
        %1484 = vmatmul.f32.gmra.mxu0 %v1460
        %v1485 = vpop.f32.mrf.mxu0
        %v1486 = vadd.f32 0.0, %v1485
        %1487 = vmatmul.f32.gmra.mxu0 %v1463
        %v1488 = vpop.f32.mrf.mxu0
        %v1489 = vadd.f32 0.0, %v1488
        %1490 = vdwg.mxu0
        %1491 = vmatpush.msra.mxu0 0.0
        %1492 = vmatpush.msra.mxu0 0.0
        %1493 = vmatpush.msra.mxu0 0.0
        %1494 = vmatpush.msra.mxu0 0.0
        %1495 = vmatpush.msra.mxu0 0.0
        %1496 = vmatpush.msra.mxu0 0.0
        %1497 = vmatpush.msra.mxu0 0.0
        %1498 = vmatpush.msra.mxu0 0.0
        %1499 = vmatpush.msra.mxu0 0.0
        %1500 = vmatpush.msra.mxu0 0.0
        %1501 = vmatpush.msra.mxu0 0.0
        %1502 = vmatpush.msra.mxu0 0.0
        %1503 = vmatpush.msra.mxu0 0.0
        %1504 = vmatpush.msra.mxu0 %v1452
        %1505 = vmatpush.msra.mxu0 %v1384
        %1506 = vmatpush.msra.mxu0 %v1429
        %1507 = vmatmul.f32.gmra.mxu0 %v1457
        %v1508 = vpop.f32.mrf.mxu0
        %v1509 = vadd.f32 0.0, %v1508
        %1510 = vmatmul.f32.gmra.mxu0 %v1460
        %v1511 = vpop.f32.mrf.mxu0
        %v1512 = vadd.f32 0.0, %v1511
        %1513 = vmatmul.f32.gmra.mxu0 %v1463
        %v1514 = vpop.f32.mrf.mxu0
        %v1515 = vadd.f32 0.0, %v1514
        %1516 = vdwg.mxu0
        %1517 = vmatpush.msra.mxu0 0.0
        %1518 = vmatpush.msra.mxu0 0.0
        %1519 = vmatpush.msra.mxu0 0.0
        %1520 = vmatpush.msra.mxu0 0.0
        %1521 = vmatpush.msra.mxu0 0.0
        %1522 = vmatpush.msra.mxu0 0.0
        %1523 = vmatpush.msra.mxu0 0.0
        %1524 = vmatpush.msra.mxu0 0.0
        %1525 = vmatpush.msra.mxu0 0.0
        %1526 = vmatpush.msra.mxu0 0.0
        %1527 = vmatpush.msra.mxu0 0.0
        %1528 = vmatpush.msra.mxu0 0.0
        %1529 = vmatpush.msra.mxu0 0.0
        %1530 = vmatpush.msra.mxu0 %v1451
        %1531 = vmatpush.msra.mxu0 %v1385
        %1532 = vmatpush.msra.mxu0 %v1428
        %1533 = vmatmul.f32.gmra.mxu0 %v1457
        %v1534 = vpop.f32.mrf.mxu0
        %v1535 = vadd.f32 0.0, %v1534
        %1536 = vmatmul.f32.gmra.mxu0 %v1460
        %v1537 = vpop.f32.mrf.mxu0
        %v1538 = vadd.f32 0.0, %v1537
        %1539 = vmatmul.f32.gmra.mxu0 %v1463
        %v1540 = vpop.f32.mrf.mxu0
        %v1541 = vadd.f32 0.0, %v1540
        %1542 = vdwg.mxu0
        %1543 = vmatpush.msra.mxu0 0.0
        %1544 = vmatpush.msra.mxu0 0.0
        %1545 = vmatpush.msra.mxu0 0.0
        %1546 = vmatpush.msra.mxu0 0.0
        %1547 = vmatpush.msra.mxu0 0.0
        %1548 = vmatpush.msra.mxu0 0.0
        %1549 = vmatpush.msra.mxu0 0.0
        %1550 = vmatpush.msra.mxu0 0.0
        %1551 = vmatpush.msra.mxu0 0.0
        %1552 = vmatpush.msra.mxu0 0.0
        %1553 = vmatpush.msra.mxu0 0.0
        %1554 = vmatpush.msra.mxu0 0.0
        %1555 = vmatpush.msra.mxu0 0.0
        %1556 = vmatpush.msra.mxu0 %v1450
        %1557 = vmatpush.msra.mxu0 %v1386
        %1558 = vmatpush.msra.mxu0 %v1427
        %1559 = vmatmul.f32.gmra.mxu0 %v1457
        %v1560 = vpop.f32.mrf.mxu0
        %v1561 = vadd.f32 0.0, %v1560
        %1562 = vmatmul.f32.gmra.mxu0 %v1460
        %v1563 = vpop.f32.mrf.mxu0
        %v1564 = vadd.f32 0.0, %v1563
        %1565 = vmatmul.f32.gmra.mxu0 %v1463
        %v1566 = vpop.f32.mrf.mxu0
        %v1567 = vadd.f32 0.0, %v1566
        %1568 = vdwg.mxu0
        %1569 = vmatpush.msra.mxu0 0.0
        %1570 = vmatpush.msra.mxu0 0.0
        %1571 = vmatpush.msra.mxu0 0.0
        %1572 = vmatpush.msra.mxu0 0.0
        %1573 = vmatpush.msra.mxu0 0.0
        %1574 = vmatpush.msra.mxu0 0.0
        %1575 = vmatpush.msra.mxu0 0.0
        %1576 = vmatpush.msra.mxu0 0.0
        %1577 = vmatpush.msra.mxu0 0.0
        %1578 = vmatpush.msra.mxu0 0.0
        %1579 = vmatpush.msra.mxu0 0.0
        %1580 = vmatpush.msra.mxu0 0.0
        %1581 = vmatpush.msra.mxu0 0.0
        %1582 = vmatpush.msra.mxu0 %v1449
        %1583 = vmatpush.msra.mxu0 %v1387
        %1584 = vmatpush.msra.mxu0 %v1426
        %1585 = vmatmul.f32.gmra.mxu0 %v1457
        %v1586 = vpop.f32.mrf.mxu0
        %v1587 = vadd.f32 0.0, %v1586
        %1588 = vmatmul.f32.gmra.mxu0 %v1460
        %v1589 = vpop.f32.mrf.mxu0
        %v1590 = vadd.f32 0.0, %v1589
        %1591 = vmatmul.f32.gmra.mxu0 %v1463
        %v1592 = vpop.f32.mrf.mxu0
        %v1593 = vadd.f32 0.0, %v1592
        %1594 = vdwg.mxu0
        %1595 = vmatpush.msra.mxu0 0.0
        %1596 = vmatpush.msra.mxu0 0.0
        %1597 = vmatpush.msra.mxu0 0.0
        %1598 = vmatpush.msra.mxu0 0.0
        %1599 = vmatpush.msra.mxu0 0.0
        %1600 = vmatpush.msra.mxu0 0.0
        %1601 = vmatpush.msra.mxu0 0.0
        %1602 = vmatpush.msra.mxu0 0.0
        %1603 = vmatpush.msra.mxu0 0.0
        %1604 = vmatpush.msra.mxu0 0.0
        %1605 = vmatpush.msra.mxu0 0.0
        %1606 = vmatpush.msra.mxu0 0.0
        %1607 = vmatpush.msra.mxu0 0.0
        %1608 = vmatpush.msra.mxu0 %v1448
        %1609 = vmatpush.msra.mxu0 %v1388
        %1610 = vmatpush.msra.mxu0 %v1425
        %1611 = vmatmul.f32.gmra.mxu0 %v1457
        %v1612 = vpop.f32.mrf.mxu0
        %v1613 = vadd.f32 0.0, %v1612
        %1614 = vmatmul.f32.gmra.mxu0 %v1460
        %v1615 = vpop.f32.mrf.mxu0
        %v1616 = vadd.f32 0.0, %v1615
        %1617 = vmatmul.f32.gmra.mxu0 %v1463
        %v1618 = vpop.f32.mrf.mxu0
        %v1619 = vadd.f32 0.0, %v1618
        %1620 = vdwg.mxu0
        %1621 = vmatpush.msra.mxu0 0.0
        %1622 = vmatpush.msra.mxu0 0.0
        %1623 = vmatpush.msra.mxu0 0.0
        %1624 = vmatpush.msra.mxu0 0.0
        %1625 = vmatpush.msra.mxu0 0.0
        %1626 = vmatpush.msra.mxu0 0.0
        %1627 = vmatpush.msra.mxu0 0.0
        %1628 = vmatpush.msra.mxu0 0.0
        %1629 = vmatpush.msra.mxu0 0.0
        %1630 = vmatpush.msra.mxu0 0.0
        %1631 = vmatpush.msra.mxu0 0.0
        %1632 = vmatpush.msra.mxu0 0.0
        %1633 = vmatpush.msra.mxu0 0.0
        %1634 = vmatpush.msra.mxu0 %v1447
        %1635 = vmatpush.msra.mxu0 %v1389
        %1636 = vmatpush.msra.mxu0 %v1424
        %1637 = vmatmul.f32.gmra.mxu0 %v1457
        %v1638 = vpop.f32.mrf.mxu0
        %v1639 = vadd.f32 0.0, %v1638
        %1640 = vmatmul.f32.gmra.mxu0 %v1460
        %v1641 = vpop.f32.mrf.mxu0
        %v1642 = vadd.f32 0.0, %v1641
        %1643 = vmatmul.f32.gmra.mxu0 %v1463
        %v1644 = vpop.f32.mrf.mxu0
        %v1645 = vadd.f32 0.0, %v1644
        %1646 = vdwg.mxu0
        %1647 = vmatpush.msra.mxu0 0.0
        %1648 = vmatpush.msra.mxu0 0.0
        %1649 = vmatpush.msra.mxu0 0.0
        %1650 = vmatpush.msra.mxu0 0.0
        %1651 = vmatpush.msra.mxu0 0.0
        %1652 = vmatpush.msra.mxu0 0.0
        %1653 = vmatpush.msra.mxu0 0.0
        %1654 = vmatpush.msra.mxu0 0.0
        %1655 = vmatpush.msra.mxu0 0.0
        %1656 = vmatpush.msra.mxu0 0.0
        %1657 = vmatpush.msra.mxu0 0.0
        %1658 = vmatpush.msra.mxu0 0.0
        %1659 = vmatpush.msra.mxu0 0.0
        %1660 = vmatpush.msra.mxu0 %v1454
        %1661 = vmatpush.msra.mxu0 %v1390
        %1662 = vmatpush.msra.mxu0 %v1423
        %1663 = vmatmul.f32.gmra.mxu0 %v1457
        %v1664 = vpop.f32.mrf.mxu0
        %v1665 = vadd.f32 0.0, %v1664
        %1666 = vmatmul.f32.gmra.mxu0 %v1460
        %v1667 = vpop.f32.mrf.mxu0
        %v1668 = vadd.f32 0.0, %v1667
        %1669 = vmatmul.f32.gmra.mxu0 %v1463
        %v1670 = vpop.f32.mrf.mxu0
        %v1671 = vadd.f32 0.0, %v1670
        %1672 = vdwg.mxu0
        %1673 = vrot.lane.b32.xlu0 %v1483, 32
        %v1674 = vpop.permute.xlu0 %1673
        %1675 = vrot.lane.b32.xlu0 %v1509, 32
        %v1676 = vpop.permute.xlu0 %1675
        %1677 = vrot.lane.b32.xlu0 %v1535, 32
        %v1678 = vpop.permute.xlu0 %1677
        %1679 = vrot.lane.b32.xlu0 %v1561, 32
        %v1680 = vpop.permute.xlu0 %1679
        %1681 = vrot.lane.b32.xlu0 %v1587, 32
        %v1682 = vpop.permute.xlu0 %1681
        %1683 = vrot.lane.b32.xlu0 %v1613, 32
        %v1684 = vpop.permute.xlu0 %1683
        %1685 = vrot.lane.b32.xlu0 %v1639, 32
        %v1686 = vpop.permute.xlu0 %1685
        %1687 = vrot.lane.b32.xlu0 %v1665, 32
        %v1688 = vpop.permute.xlu0 %1687
        %v1689 = vsel %vm926, %v1686, %v1688
        %v1690 = vsel %vm926, %v1684, %v1686
        %v1691 = vsel %vm926, %v1682, %v1684
        %v1692 = vsel %vm926, %v1680, %v1682
        %v1693 = vsel %vm926, %v1678, %v1680
        %v1694 = vsel %vm926, %v1676, %v1678
        %v1695 = vsel %vm926, %v1674, %v1676
        %v1696 = vsel %vm926, %v1688, %v1674
        %1697 = vrot.lane.b32.xlu0 %v1489, 96
        %v1698 = vpop.permute.xlu0 %1697
        %1699 = vrot.lane.b32.xlu0 %v1515, 96
        %v1700 = vpop.permute.xlu0 %1699
        %1701 = vrot.lane.b32.xlu0 %v1541, 96
        %v1702 = vpop.permute.xlu0 %1701
        %1703 = vrot.lane.b32.xlu0 %v1567, 96
        %v1704 = vpop.permute.xlu0 %1703
        %1705 = vrot.lane.b32.xlu0 %v1593, 96
        %v1706 = vpop.permute.xlu0 %1705
        %1707 = vrot.lane.b32.xlu0 %v1619, 96
        %v1708 = vpop.permute.xlu0 %1707
        %1709 = vrot.lane.b32.xlu0 %v1645, 96
        %v1710 = vpop.permute.xlu0 %1709
        %1711 = vrot.lane.b32.xlu0 %v1671, 96
        %v1712 = vpop.permute.xlu0 %1711
        %v1713 = vsel %vm951, %v1710, %v1712
        %v1714 = vsel %vm951, %v1708, %v1710
        %v1715 = vsel %vm951, %v1706, %v1708
        %v1716 = vsel %vm951, %v1704, %v1706
        %v1717 = vsel %vm951, %v1702, %v1704
        %v1718 = vsel %vm951, %v1700, %v1702
        %v1719 = vsel %vm951, %v1698, %v1700
        %v1720 = vsel %vm951, %v1712, %v1698
        %v1721 = vadd.f32 %v1696, %v1486
        %v1722 = vadd.f32 %v1695, %v1512
        %v1723 = vadd.f32 %v1694, %v1538
        %v1724 = vadd.f32 %v1693, %v1564
        %v1725 = vadd.f32 %v1692, %v1590
        %v1726 = vadd.f32 %v1691, %v1616
        %v1727 = vadd.f32 %v1690, %v1642
        %v1728 = vadd.f32 %v1689, %v1668
        %v1729 = vadd.f32 %v1721, %v1719
        %v1730 = vadd.f32 %v1722, %v1718
        %v1731 = vadd.f32 %v1723, %v1717
        %v1732 = vadd.f32 %v1724, %v1716
        %v1733 = vadd.f32 %v1725, %v1715
        %v1734 = vadd.f32 %v1726, %v1714
        %v1735 = vadd.f32 %v1727, %v1713
        %v1736 = vadd.f32 %v1728, %v1720
        %1738 = vset.pattern.permute.xlu0 0
        %1739 = vperm.xlu0 %1738, %v1403
        %v1740 = vpop.permute.xlu0 %1739
        %v1742 = vadd.f32 %v1729, %v1740
        %v1743 = vadd.f32 %v1730, %v1740
        %v1744 = vadd.f32 %v1731, %v1740
        %v1745 = vadd.f32 %v1732, %v1740
        %v1746 = vadd.f32 %v1733, %v1740
        %v1747 = vadd.f32 %v1734, %v1740
        %v1748 = vadd.f32 %v1735, %v1740
        %v1749 = vadd.f32 %v1736, %v1740
        %1750 = vrot.lane.b32.xlu0 %v1383, 2
        %v1751 = vpop.permute.xlu0 %1750
        %1752 = vrot.lane.b32.xlu0 %v1384, 2
        %v1753 = vpop.permute.xlu0 %1752
        %1754 = vrot.lane.b32.xlu0 %v1385, 2
        %v1755 = vpop.permute.xlu0 %1754
        %1756 = vrot.lane.b32.xlu0 %v1386, 2
        %v1757 = vpop.permute.xlu0 %1756
        %1758 = vrot.lane.b32.xlu0 %v1387, 2
        %v1759 = vpop.permute.xlu0 %1758
        %1760 = vrot.lane.b32.xlu0 %v1388, 2
        %v1761 = vpop.permute.xlu0 %1760
        %1762 = vrot.lane.b32.xlu0 %v1389, 2
        %v1763 = vpop.permute.xlu0 %1762
        %1764 = vrot.lane.b32.xlu0 %v1390, 2
        %v1765 = vpop.permute.xlu0 %1764
        %vm1766 = vcmp.lt.s32.totalorder %v561, 2
        %v1767 = vsel %vm1766, %v1763, %v1765
        %v1768 = vsel %vm1766, %v1761, %v1763
        %v1769 = vsel %vm1766, %v1759, %v1761
        %v1770 = vsel %vm1766, %v1757, %v1759
        %v1771 = vsel %vm1766, %v1755, %v1757
        %v1772 = vsel %vm1766, %v1753, %v1755
        %v1773 = vsel %vm1766, %v1751, %v1753
        %v1774 = vsel %vm1766, %v1765, %v1751
        %1775 = vrot.lane.b32.xlu0 %v1383, 126
        %v1776 = vpop.permute.xlu0 %1775
        %1777 = vrot.lane.b32.xlu0 %v1384, 126
        %v1778 = vpop.permute.xlu0 %1777
        %1779 = vrot.lane.b32.xlu0 %v1385, 126
        %v1780 = vpop.permute.xlu0 %1779
        %1781 = vrot.lane.b32.xlu0 %v1386, 126
        %v1782 = vpop.permute.xlu0 %1781
        %1783 = vrot.lane.b32.xlu0 %v1387, 126
        %v1784 = vpop.permute.xlu0 %1783
        %1785 = vrot.lane.b32.xlu0 %v1388, 126
        %v1786 = vpop.permute.xlu0 %1785
        %1787 = vrot.lane.b32.xlu0 %v1389, 126
        %v1788 = vpop.permute.xlu0 %1787
        %1789 = vrot.lane.b32.xlu0 %v1390, 126
        %v1790 = vpop.permute.xlu0 %1789
        %vm1791 = vcmp.lt.s32.totalorder %v561, 126
        %v1792 = vsel %vm1791, %v1788, %v1790
        %v1793 = vsel %vm1791, %v1786, %v1788
        %v1794 = vsel %vm1791, %v1784, %v1786
        %v1795 = vsel %vm1791, %v1782, %v1784
        %v1796 = vsel %vm1791, %v1780, %v1782
        %v1797 = vsel %vm1791, %v1778, %v1780
        %v1798 = vsel %vm1791, %v1776, %v1778
        %v1799 = vsel %vm1791, %v1790, %v1776
        %v1801 = vsel %vm1455, %v1394, 0
        %v1804 = vsel %vm1455, %v1395, 0
        %v1807 = vsel %vm1455, %v1396, 0
        %1809 = vmatpush.msra.mxu0 0.0
        %1810 = vmatpush.msra.mxu0 0.0
        %1811 = vmatpush.msra.mxu0 0.0
        %1812 = vmatpush.msra.mxu0 0.0
        %1813 = vmatpush.msra.mxu0 0.0
        %1814 = vmatpush.msra.mxu0 0.0
        %1815 = vmatpush.msra.mxu0 0.0
        %1816 = vmatpush.msra.mxu0 0.0
        %1817 = vmatpush.msra.mxu0 0.0
        %1818 = vmatpush.msra.mxu0 0.0
        %1819 = vmatpush.msra.mxu0 0.0
        %1820 = vmatpush.msra.mxu0 0.0
        %1821 = vmatpush.msra.mxu0 0.0
        %1822 = vmatpush.msra.mxu0 %v1798
        %1823 = vmatpush.msra.mxu0 %v1383
        %1824 = vmatpush.msra.mxu0 %v1774
        %1825 = vmatmul.f32.gmra.mxu0 %v1801
        %v1826 = vpop.f32.mrf.mxu0
        %v1827 = vadd.f32 0.0, %v1826
        %1828 = vmatmul.f32.gmra.mxu0 %v1804
        %v1829 = vpop.f32.mrf.mxu0
        %v1830 = vadd.f32 0.0, %v1829
        %1831 = vmatmul.f32.gmra.mxu0 %v1807
        %v1832 = vpop.f32.mrf.mxu0
        %v1833 = vadd.f32 0.0, %v1832
        %1834 = vdwg.mxu0
        %1835 = vmatpush.msra.mxu0 0.0
        %1836 = vmatpush.msra.mxu0 0.0
        %1837 = vmatpush.msra.mxu0 0.0
        %1838 = vmatpush.msra.mxu0 0.0
        %1839 = vmatpush.msra.mxu0 0.0
        %1840 = vmatpush.msra.mxu0 0.0
        %1841 = vmatpush.msra.mxu0 0.0
        %1842 = vmatpush.msra.mxu0 0.0
        %1843 = vmatpush.msra.mxu0 0.0
        %1844 = vmatpush.msra.mxu0 0.0
        %1845 = vmatpush.msra.mxu0 0.0
        %1846 = vmatpush.msra.mxu0 0.0
        %1847 = vmatpush.msra.mxu0 0.0
        %1848 = vmatpush.msra.mxu0 %v1797
        %1849 = vmatpush.msra.mxu0 %v1384
        %1850 = vmatpush.msra.mxu0 %v1773
        %1851 = vmatmul.f32.gmra.mxu0 %v1801
        %v1852 = vpop.f32.mrf.mxu0
        %v1853 = vadd.f32 0.0, %v1852
        %1854 = vmatmul.f32.gmra.mxu0 %v1804
        %v1855 = vpop.f32.mrf.mxu0
        %v1856 = vadd.f32 0.0, %v1855
        %1857 = vmatmul.f32.gmra.mxu0 %v1807
        %v1858 = vpop.f32.mrf.mxu0
        %v1859 = vadd.f32 0.0, %v1858
        %1860 = vdwg.mxu0
        %1861 = vmatpush.msra.mxu0 0.0
        %1862 = vmatpush.msra.mxu0 0.0
        %1863 = vmatpush.msra.mxu0 0.0
        %1864 = vmatpush.msra.mxu0 0.0
        %1865 = vmatpush.msra.mxu0 0.0
        %1866 = vmatpush.msra.mxu0 0.0
        %1867 = vmatpush.msra.mxu0 0.0
        %1868 = vmatpush.msra.mxu0 0.0
        %1869 = vmatpush.msra.mxu0 0.0
        %1870 = vmatpush.msra.mxu0 0.0
        %1871 = vmatpush.msra.mxu0 0.0
        %1872 = vmatpush.msra.mxu0 0.0
        %1873 = vmatpush.msra.mxu0 0.0
        %1874 = vmatpush.msra.mxu0 %v1796
        %1875 = vmatpush.msra.mxu0 %v1385
        %1876 = vmatpush.msra.mxu0 %v1772
        %1877 = vmatmul.f32.gmra.mxu0 %v1801
        %v1878 = vpop.f32.mrf.mxu0
        %v1879 = vadd.f32 0.0, %v1878
        %1880 = vmatmul.f32.gmra.mxu0 %v1804
        %v1881 = vpop.f32.mrf.mxu0
        %v1882 = vadd.f32 0.0, %v1881
        %1883 = vmatmul.f32.gmra.mxu0 %v1807
        %v1884 = vpop.f32.mrf.mxu0
        %v1885 = vadd.f32 0.0, %v1884
        %1886 = vdwg.mxu0
        %1887 = vmatpush.msra.mxu0 0.0
        %1888 = vmatpush.msra.mxu0 0.0
        %1889 = vmatpush.msra.mxu0 0.0
        %1890 = vmatpush.msra.mxu0 0.0
        %1891 = vmatpush.msra.mxu0 0.0
        %1892 = vmatpush.msra.mxu0 0.0
        %1893 = vmatpush.msra.mxu0 0.0
        %1894 = vmatpush.msra.mxu0 0.0
        %1895 = vmatpush.msra.mxu0 0.0
        %1896 = vmatpush.msra.mxu0 0.0
        %1897 = vmatpush.msra.mxu0 0.0
        %1898 = vmatpush.msra.mxu0 0.0
        %1899 = vmatpush.msra.mxu0 0.0
        %1900 = vmatpush.msra.mxu0 %v1795
        %1901 = vmatpush.msra.mxu0 %v1386
        %1902 = vmatpush.msra.mxu0 %v1771
        %1903 = vmatmul.f32.gmra.mxu0 %v1801
        %v1904 = vpop.f32.mrf.mxu0
        %v1905 = vadd.f32 0.0, %v1904
        %1906 = vmatmul.f32.gmra.mxu0 %v1804
        %v1907 = vpop.f32.mrf.mxu0
        %v1908 = vadd.f32 0.0, %v1907
        %1909 = vmatmul.f32.gmra.mxu0 %v1807
        %v1910 = vpop.f32.mrf.mxu0
        %v1911 = vadd.f32 0.0, %v1910
        %1912 = vdwg.mxu0
        %1913 = vmatpush.msra.mxu0 0.0
        %1914 = vmatpush.msra.mxu0 0.0
        %1915 = vmatpush.msra.mxu0 0.0
        %1916 = vmatpush.msra.mxu0 0.0
        %1917 = vmatpush.msra.mxu0 0.0
        %1918 = vmatpush.msra.mxu0 0.0
        %1919 = vmatpush.msra.mxu0 0.0
        %1920 = vmatpush.msra.mxu0 0.0
        %1921 = vmatpush.msra.mxu0 0.0
        %1922 = vmatpush.msra.mxu0 0.0
        %1923 = vmatpush.msra.mxu0 0.0
        %1924 = vmatpush.msra.mxu0 0.0
        %1925 = vmatpush.msra.mxu0 0.0
        %1926 = vmatpush.msra.mxu0 %v1794
        %1927 = vmatpush.msra.mxu0 %v1387
        %1928 = vmatpush.msra.mxu0 %v1770
        %1929 = vmatmul.f32.gmra.mxu0 %v1801
        %v1930 = vpop.f32.mrf.mxu0
        %v1931 = vadd.f32 0.0, %v1930
        %1932 = vmatmul.f32.gmra.mxu0 %v1804
        %v1933 = vpop.f32.mrf.mxu0
        %v1934 = vadd.f32 0.0, %v1933
        %1935 = vmatmul.f32.gmra.mxu0 %v1807
        %v1936 = vpop.f32.mrf.mxu0
        %v1937 = vadd.f32 0.0, %v1936
        %1938 = vdwg.mxu0
        %1939 = vmatpush.msra.mxu0 0.0
        %1940 = vmatpush.msra.mxu0 0.0
        %1941 = vmatpush.msra.mxu0 0.0
        %1942 = vmatpush.msra.mxu0 0.0
        %1943 = vmatpush.msra.mxu0 0.0
        %1944 = vmatpush.msra.mxu0 0.0
        %1945 = vmatpush.msra.mxu0 0.0
        %1946 = vmatpush.msra.mxu0 0.0
        %1947 = vmatpush.msra.mxu0 0.0
        %1948 = vmatpush.msra.mxu0 0.0
        %1949 = vmatpush.msra.mxu0 0.0
        %1950 = vmatpush.msra.mxu0 0.0
        %1951 = vmatpush.msra.mxu0 0.0
        %1952 = vmatpush.msra.mxu0 %v1793
        %1953 = vmatpush.msra.mxu0 %v1388
        %1954 = vmatpush.msra.mxu0 %v1769
        %1955 = vmatmul.f32.gmra.mxu0 %v1801
        %v1956 = vpop.f32.mrf.mxu0
        %v1957 = vadd.f32 0.0, %v1956
        %1958 = vmatmul.f32.gmra.mxu0 %v1804
        %v1959 = vpop.f32.mrf.mxu0
        %v1960 = vadd.f32 0.0, %v1959
        %1961 = vmatmul.f32.gmra.mxu0 %v1807
        %v1962 = vpop.f32.mrf.mxu0
        %v1963 = vadd.f32 0.0, %v1962
        %1964 = vdwg.mxu0
        %1965 = vmatpush.msra.mxu0 0.0
        %1966 = vmatpush.msra.mxu0 0.0
        %1967 = vmatpush.msra.mxu0 0.0
        %1968 = vmatpush.msra.mxu0 0.0
        %1969 = vmatpush.msra.mxu0 0.0
        %1970 = vmatpush.msra.mxu0 0.0
        %1971 = vmatpush.msra.mxu0 0.0
        %1972 = vmatpush.msra.mxu0 0.0
        %1973 = vmatpush.msra.mxu0 0.0
        %1974 = vmatpush.msra.mxu0 0.0
        %1975 = vmatpush.msra.mxu0 0.0
        %1976 = vmatpush.msra.mxu0 0.0
        %1977 = vmatpush.msra.mxu0 0.0
        %1978 = vmatpush.msra.mxu0 %v1792
        %1979 = vmatpush.msra.mxu0 %v1389
        %1980 = vmatpush.msra.mxu0 %v1768
        %1981 = vmatmul.f32.gmra.mxu0 %v1801
        %v1982 = vpop.f32.mrf.mxu0
        %v1983 = vadd.f32 0.0, %v1982
        %1984 = vmatmul.f32.gmra.mxu0 %v1804
        %v1985 = vpop.f32.mrf.mxu0
        %v1986 = vadd.f32 0.0, %v1985
        %1987 = vmatmul.f32.gmra.mxu0 %v1807
        %v1988 = vpop.f32.mrf.mxu0
        %v1989 = vadd.f32 0.0, %v1988
        %1990 = vdwg.mxu0
        %1991 = vmatpush.msra.mxu0 0.0
        %1992 = vmatpush.msra.mxu0 0.0
        %1993 = vmatpush.msra.mxu0 0.0
        %1994 = vmatpush.msra.mxu0 0.0
        %1995 = vmatpush.msra.mxu0 0.0
        %1996 = vmatpush.msra.mxu0 0.0
        %1997 = vmatpush.msra.mxu0 0.0
        %1998 = vmatpush.msra.mxu0 0.0
        %1999 = vmatpush.msra.mxu0 0.0
        %2000 = vmatpush.msra.mxu0 0.0
        %2001 = vmatpush.msra.mxu0 0.0
        %2002 = vmatpush.msra.mxu0 0.0
        %2003 = vmatpush.msra.mxu0 0.0
        %2004 = vmatpush.msra.mxu0 %v1799
        %2005 = vmatpush.msra.mxu0 %v1390
        %2006 = vmatpush.msra.mxu0 %v1767
        %2007 = vmatmul.f32.gmra.mxu0 %v1801
        %v2008 = vpop.f32.mrf.mxu0
        %v2009 = vadd.f32 0.0, %v2008
        %2010 = vmatmul.f32.gmra.mxu0 %v1804
        %v2011 = vpop.f32.mrf.mxu0
        %v2012 = vadd.f32 0.0, %v2011
        %2013 = vmatmul.f32.gmra.mxu0 %v1807
        %v2014 = vpop.f32.mrf.mxu0
        %v2015 = vadd.f32 0.0, %v2014
        %2016 = vdwg.mxu0
        %2017 = vrot.lane.b32.xlu0 %v1827, 64
        %v2018 = vpop.permute.xlu0 %2017
        %2019 = vrot.lane.b32.xlu0 %v1853, 64
        %v2020 = vpop.permute.xlu0 %2019
        %2021 = vrot.lane.b32.xlu0 %v1879, 64
        %v2022 = vpop.permute.xlu0 %2021
        %2023 = vrot.lane.b32.xlu0 %v1905, 64
        %v2024 = vpop.permute.xlu0 %2023
        %2025 = vrot.lane.b32.xlu0 %v1931, 64
        %v2026 = vpop.permute.xlu0 %2025
        %2027 = vrot.lane.b32.xlu0 %v1957, 64
        %v2028 = vpop.permute.xlu0 %2027
        %2029 = vrot.lane.b32.xlu0 %v1983, 64
        %v2030 = vpop.permute.xlu0 %2029
        %2031 = vrot.lane.b32.xlu0 %v2009, 64
        %v2032 = vpop.permute.xlu0 %2031
        %vm2033 = vcmp.lt.s32.totalorder %v561, 64
        %v2034 = vsel %vm2033, %v2030, %v2032
        %v2035 = vsel %vm2033, %v2028, %v2030
        %v2036 = vsel %vm2033, %v2026, %v2028
        %v2037 = vsel %vm2033, %v2024, %v2026
        %v2038 = vsel %vm2033, %v2022, %v2024
        %v2039 = vsel %vm2033, %v2020, %v2022
        %v2040 = vsel %vm2033, %v2018, %v2020
        %v2041 = vsel %vm2033, %v2032, %v2018
        %2042 = vrot.lane.b32.xlu0 %v1833, 64
        %v2043 = vpop.permute.xlu0 %2042
        %2044 = vrot.lane.b32.xlu0 %v1859, 64
        %v2045 = vpop.permute.xlu0 %2044
        %2046 = vrot.lane.b32.xlu0 %v1885, 64
        %v2047 = vpop.permute.xlu0 %2046
        %2048 = vrot.lane.b32.xlu0 %v1911, 64
        %v2049 = vpop.permute.xlu0 %2048
        %2050 = vrot.lane.b32.xlu0 %v1937, 64
        %v2051 = vpop.permute.xlu0 %2050
        %2052 = vrot.lane.b32.xlu0 %v1963, 64
        %v2053 = vpop.permute.xlu0 %2052
        %2054 = vrot.lane.b32.xlu0 %v1989, 64
        %v2055 = vpop.permute.xlu0 %2054
        %2056 = vrot.lane.b32.xlu0 %v2015, 64
        %v2057 = vpop.permute.xlu0 %2056
        %v2058 = vsel %vm2033, %v2055, %v2057
        %v2059 = vsel %vm2033, %v2053, %v2055
        %v2060 = vsel %vm2033, %v2051, %v2053
        %v2061 = vsel %vm2033, %v2049, %v2051
        %v2062 = vsel %vm2033, %v2047, %v2049
        %v2063 = vsel %vm2033, %v2045, %v2047
        %v2064 = vsel %vm2033, %v2043, %v2045
        %v2065 = vsel %vm2033, %v2057, %v2043
        %v2066 = vadd.f32 %v2041, %v1830
        %v2067 = vadd.f32 %v2040, %v1856
        %v2068 = vadd.f32 %v2039, %v1882
        %v2069 = vadd.f32 %v2038, %v1908
        %v2070 = vadd.f32 %v2037, %v1934
        %v2071 = vadd.f32 %v2036, %v1960
        %v2072 = vadd.f32 %v2035, %v1986
        %v2073 = vadd.f32 %v2034, %v2012
        %v2074 = vadd.f32 %v2066, %v2064
        %v2075 = vadd.f32 %v2067, %v2063
        %v2076 = vadd.f32 %v2068, %v2062
        %v2077 = vadd.f32 %v2069, %v2061
        %v2078 = vadd.f32 %v2070, %v2060
        %v2079 = vadd.f32 %v2071, %v2059
        %v2080 = vadd.f32 %v2072, %v2058
        %v2081 = vadd.f32 %v2073, %v2065
        %2083 = vset.pattern.permute.xlu0 0
        %2084 = vperm.xlu0 %2083, %v1404
        %v2085 = vpop.permute.xlu0 %2084
        %v2087 = vadd.f32 %v2074, %v2085
        %v2088 = vadd.f32 %v2075, %v2085
        %v2089 = vadd.f32 %v2076, %v2085
        %v2090 = vadd.f32 %v2077, %v2085
        %v2091 = vadd.f32 %v2078, %v2085
        %v2092 = vadd.f32 %v2079, %v2085
        %v2093 = vadd.f32 %v2080, %v2085
        %v2094 = vadd.f32 %v2081, %v2085
        %2095 = vrot.lane.b32.xlu0 %v1383, 4
        %v2096 = vpop.permute.xlu0 %2095
        %2097 = vrot.lane.b32.xlu0 %v1384, 4
        %v2098 = vpop.permute.xlu0 %2097
        %2099 = vrot.lane.b32.xlu0 %v1385, 4
        %v2100 = vpop.permute.xlu0 %2099
        %2101 = vrot.lane.b32.xlu0 %v1386, 4
        %v2102 = vpop.permute.xlu0 %2101
        %2103 = vrot.lane.b32.xlu0 %v1387, 4
        %v2104 = vpop.permute.xlu0 %2103
        %2105 = vrot.lane.b32.xlu0 %v1388, 4
        %v2106 = vpop.permute.xlu0 %2105
        %2107 = vrot.lane.b32.xlu0 %v1389, 4
        %v2108 = vpop.permute.xlu0 %2107
        %2109 = vrot.lane.b32.xlu0 %v1390, 4
        %v2110 = vpop.permute.xlu0 %2109
        %vm2111 = vcmp.lt.s32.totalorder %v561, 4
        %v2112 = vsel %vm2111, %v2108, %v2110
        %v2113 = vsel %vm2111, %v2106, %v2108
        %v2114 = vsel %vm2111, %v2104, %v2106
        %v2115 = vsel %vm2111, %v2102, %v2104
        %v2116 = vsel %vm2111, %v2100, %v2102
        %v2117 = vsel %vm2111, %v2098, %v2100
        %v2118 = vsel %vm2111, %v2096, %v2098
        %v2119 = vsel %vm2111, %v2110, %v2096
        %2120 = vrot.lane.b32.xlu0 %v1383, 124
        %v2121 = vpop.permute.xlu0 %2120
        %2122 = vrot.lane.b32.xlu0 %v1384, 124
        %v2123 = vpop.permute.xlu0 %2122
        %2124 = vrot.lane.b32.xlu0 %v1385, 124
        %v2125 = vpop.permute.xlu0 %2124
        %2126 = vrot.lane.b32.xlu0 %v1386, 124
        %v2127 = vpop.permute.xlu0 %2126
        %2128 = vrot.lane.b32.xlu0 %v1387, 124
        %v2129 = vpop.permute.xlu0 %2128
        %2130 = vrot.lane.b32.xlu0 %v1388, 124
        %v2131 = vpop.permute.xlu0 %2130
        %2132 = vrot.lane.b32.xlu0 %v1389, 124
        %v2133 = vpop.permute.xlu0 %2132
        %2134 = vrot.lane.b32.xlu0 %v1390, 124
        %v2135 = vpop.permute.xlu0 %2134
        %vm2136 = vcmp.lt.s32.totalorder %v561, 124
        %v2137 = vsel %vm2136, %v2133, %v2135
        %v2138 = vsel %vm2136, %v2131, %v2133
        %v2139 = vsel %vm2136, %v2129, %v2131
        %v2140 = vsel %vm2136, %v2127, %v2129
        %v2141 = vsel %vm2136, %v2125, %v2127
        %v2142 = vsel %vm2136, %v2123, %v2125
        %v2143 = vsel %vm2136, %v2121, %v2123
        %v2144 = vsel %vm2136, %v2135, %v2121
        %v2146 = vsel %vm1455, %v1397, 0
        %v2149 = vsel %vm1455, %v1398, 0
        %v2152 = vsel %vm1455, %v1399, 0
        %2154 = vmatpush.msra.mxu0 0.0
        %2155 = vmatpush.msra.mxu0 0.0
        %2156 = vmatpush.msra.mxu0 0.0
        %2157 = vmatpush.msra.mxu0 0.0
        %2158 = vmatpush.msra.mxu0 0.0
        %2159 = vmatpush.msra.mxu0 0.0
        %2160 = vmatpush.msra.mxu0 0.0
        %2161 = vmatpush.msra.mxu0 0.0
        %2162 = vmatpush.msra.mxu0 0.0
        %2163 = vmatpush.msra.mxu0 0.0
        %2164 = vmatpush.msra.mxu0 0.0
        %2165 = vmatpush.msra.mxu0 0.0
        %2166 = vmatpush.msra.mxu0 0.0
        %2167 = vmatpush.msra.mxu0 %v2143
        %2168 = vmatpush.msra.mxu0 %v1383
        %2169 = vmatpush.msra.mxu0 %v2119
        %2170 = vmatmul.f32.gmra.mxu0 %v2146
        %v2171 = vpop.f32.mrf.mxu0
        %v2172 = vadd.f32 0.0, %v2171
        %2173 = vmatmul.f32.gmra.mxu0 %v2149
        %v2174 = vpop.f32.mrf.mxu0
        %v2175 = vadd.f32 0.0, %v2174
        %2176 = vmatmul.f32.gmra.mxu0 %v2152
        %v2177 = vpop.f32.mrf.mxu0
        %v2178 = vadd.f32 0.0, %v2177
        %2179 = vdwg.mxu0
        %2180 = vmatpush.msra.mxu0 0.0
        %2181 = vmatpush.msra.mxu0 0.0
        %2182 = vmatpush.msra.mxu0 0.0
        %2183 = vmatpush.msra.mxu0 0.0
        %2184 = vmatpush.msra.mxu0 0.0
        %2185 = vmatpush.msra.mxu0 0.0
        %2186 = vmatpush.msra.mxu0 0.0
        %2187 = vmatpush.msra.mxu0 0.0
        %2188 = vmatpush.msra.mxu0 0.0
        %2189 = vmatpush.msra.mxu0 0.0
        %2190 = vmatpush.msra.mxu0 0.0
        %2191 = vmatpush.msra.mxu0 0.0
        %2192 = vmatpush.msra.mxu0 0.0
        %2193 = vmatpush.msra.mxu0 %v2142
        %2194 = vmatpush.msra.mxu0 %v1384
        %2195 = vmatpush.msra.mxu0 %v2118
        %2196 = vmatmul.f32.gmra.mxu0 %v2146
        %v2197 = vpop.f32.mrf.mxu0
        %v2198 = vadd.f32 0.0, %v2197
        %2199 = vmatmul.f32.gmra.mxu0 %v2149
        %v2200 = vpop.f32.mrf.mxu0
        %v2201 = vadd.f32 0.0, %v2200
        %2202 = vmatmul.f32.gmra.mxu0 %v2152
        %v2203 = vpop.f32.mrf.mxu0
        %v2204 = vadd.f32 0.0, %v2203
        %2205 = vdwg.mxu0
        %2206 = vmatpush.msra.mxu0 0.0
        %2207 = vmatpush.msra.mxu0 0.0
        %2208 = vmatpush.msra.mxu0 0.0
        %2209 = vmatpush.msra.mxu0 0.0
        %2210 = vmatpush.msra.mxu0 0.0
        %2211 = vmatpush.msra.mxu0 0.0
        %2212 = vmatpush.msra.mxu0 0.0
        %2213 = vmatpush.msra.mxu0 0.0
        %2214 = vmatpush.msra.mxu0 0.0
        %2215 = vmatpush.msra.mxu0 0.0
        %2216 = vmatpush.msra.mxu0 0.0
        %2217 = vmatpush.msra.mxu0 0.0
        %2218 = vmatpush.msra.mxu0 0.0
        %2219 = vmatpush.msra.mxu0 %v2141
        %2220 = vmatpush.msra.mxu0 %v1385
        %2221 = vmatpush.msra.mxu0 %v2117
        %2222 = vmatmul.f32.gmra.mxu0 %v2146
        %v2223 = vpop.f32.mrf.mxu0
        %v2224 = vadd.f32 0.0, %v2223
        %2225 = vmatmul.f32.gmra.mxu0 %v2149
        %v2226 = vpop.f32.mrf.mxu0
        %v2227 = vadd.f32 0.0, %v2226
        %2228 = vmatmul.f32.gmra.mxu0 %v2152
        %v2229 = vpop.f32.mrf.mxu0
        %v2230 = vadd.f32 0.0, %v2229
        %2231 = vdwg.mxu0
        %2232 = vmatpush.msra.mxu0 0.0
        %2233 = vmatpush.msra.mxu0 0.0
        %2234 = vmatpush.msra.mxu0 0.0
        %2235 = vmatpush.msra.mxu0 0.0
        %2236 = vmatpush.msra.mxu0 0.0
        %2237 = vmatpush.msra.mxu0 0.0
        %2238 = vmatpush.msra.mxu0 0.0
        %2239 = vmatpush.msra.mxu0 0.0
        %2240 = vmatpush.msra.mxu0 0.0
        %2241 = vmatpush.msra.mxu0 0.0
        %2242 = vmatpush.msra.mxu0 0.0
        %2243 = vmatpush.msra.mxu0 0.0
        %2244 = vmatpush.msra.mxu0 0.0
        %2245 = vmatpush.msra.mxu0 %v2140
        %2246 = vmatpush.msra.mxu0 %v1386
        %2247 = vmatpush.msra.mxu0 %v2116
        %2248 = vmatmul.f32.gmra.mxu0 %v2146
        %v2249 = vpop.f32.mrf.mxu0
        %v2250 = vadd.f32 0.0, %v2249
        %2251 = vmatmul.f32.gmra.mxu0 %v2149
        %v2252 = vpop.f32.mrf.mxu0
        %v2253 = vadd.f32 0.0, %v2252
        %2254 = vmatmul.f32.gmra.mxu0 %v2152
        %v2255 = vpop.f32.mrf.mxu0
        %v2256 = vadd.f32 0.0, %v2255
        %2257 = vdwg.mxu0
        %2258 = vmatpush.msra.mxu0 0.0
        %2259 = vmatpush.msra.mxu0 0.0
        %2260 = vmatpush.msra.mxu0 0.0
        %2261 = vmatpush.msra.mxu0 0.0
        %2262 = vmatpush.msra.mxu0 0.0
        %2263 = vmatpush.msra.mxu0 0.0
        %2264 = vmatpush.msra.mxu0 0.0
        %2265 = vmatpush.msra.mxu0 0.0
        %2266 = vmatpush.msra.mxu0 0.0
        %2267 = vmatpush.msra.mxu0 0.0
        %2268 = vmatpush.msra.mxu0 0.0
        %2269 = vmatpush.msra.mxu0 0.0
        %2270 = vmatpush.msra.mxu0 0.0
        %2271 = vmatpush.msra.mxu0 %v2139
        %2272 = vmatpush.msra.mxu0 %v1387
        %2273 = vmatpush.msra.mxu0 %v2115
        %2274 = vmatmul.f32.gmra.mxu0 %v2146
        %v2275 = vpop.f32.mrf.mxu0
        %v2276 = vadd.f32 0.0, %v2275
        %2277 = vmatmul.f32.gmra.mxu0 %v2149
        %v2278 = vpop.f32.mrf.mxu0
        %v2279 = vadd.f32 0.0, %v2278
        %2280 = vmatmul.f32.gmra.mxu0 %v2152
        %v2281 = vpop.f32.mrf.mxu0
        %v2282 = vadd.f32 0.0, %v2281
        %2283 = vdwg.mxu0
        %2284 = vmatpush.msra.mxu0 0.0
        %2285 = vmatpush.msra.mxu0 0.0
        %2286 = vmatpush.msra.mxu0 0.0
        %2287 = vmatpush.msra.mxu0 0.0
        %2288 = vmatpush.msra.mxu0 0.0
        %2289 = vmatpush.msra.mxu0 0.0
        %2290 = vmatpush.msra.mxu0 0.0
        %2291 = vmatpush.msra.mxu0 0.0
        %2292 = vmatpush.msra.mxu0 0.0
        %2293 = vmatpush.msra.mxu0 0.0
        %2294 = vmatpush.msra.mxu0 0.0
        %2295 = vmatpush.msra.mxu0 0.0
        %2296 = vmatpush.msra.mxu0 0.0
        %2297 = vmatpush.msra.mxu0 %v2138
        %2298 = vmatpush.msra.mxu0 %v1388
        %2299 = vmatpush.msra.mxu0 %v2114
        %2300 = vmatmul.f32.gmra.mxu0 %v2146
        %v2301 = vpop.f32.mrf.mxu0
        %v2302 = vadd.f32 0.0, %v2301
        %2303 = vmatmul.f32.gmra.mxu0 %v2149
        %v2304 = vpop.f32.mrf.mxu0
        %v2305 = vadd.f32 0.0, %v2304
        %2306 = vmatmul.f32.gmra.mxu0 %v2152
        %v2307 = vpop.f32.mrf.mxu0
        %v2308 = vadd.f32 0.0, %v2307
        %2309 = vdwg.mxu0
        %2310 = vmatpush.msra.mxu0 0.0
        %2311 = vmatpush.msra.mxu0 0.0
        %2312 = vmatpush.msra.mxu0 0.0
        %2313 = vmatpush.msra.mxu0 0.0
        %2314 = vmatpush.msra.mxu0 0.0
        %2315 = vmatpush.msra.mxu0 0.0
        %2316 = vmatpush.msra.mxu0 0.0
        %2317 = vmatpush.msra.mxu0 0.0
        %2318 = vmatpush.msra.mxu0 0.0
        %2319 = vmatpush.msra.mxu0 0.0
        %2320 = vmatpush.msra.mxu0 0.0
        %2321 = vmatpush.msra.mxu0 0.0
        %2322 = vmatpush.msra.mxu0 0.0
        %2323 = vmatpush.msra.mxu0 %v2137
        %2324 = vmatpush.msra.mxu0 %v1389
        %2325 = vmatpush.msra.mxu0 %v2113
        %2326 = vmatmul.f32.gmra.mxu0 %v2146
        %v2327 = vpop.f32.mrf.mxu0
        %v2328 = vadd.f32 0.0, %v2327
        %2329 = vmatmul.f32.gmra.mxu0 %v2149
        %v2330 = vpop.f32.mrf.mxu0
        %v2331 = vadd.f32 0.0, %v2330
        %2332 = vmatmul.f32.gmra.mxu0 %v2152
        %v2333 = vpop.f32.mrf.mxu0
        %v2334 = vadd.f32 0.0, %v2333
        %2335 = vdwg.mxu0
        %2336 = vmatpush.msra.mxu0 0.0
        %2337 = vmatpush.msra.mxu0 0.0
        %2338 = vmatpush.msra.mxu0 0.0
        %2339 = vmatpush.msra.mxu0 0.0
        %2340 = vmatpush.msra.mxu0 0.0
        %2341 = vmatpush.msra.mxu0 0.0
        %2342 = vmatpush.msra.mxu0 0.0
        %2343 = vmatpush.msra.mxu0 0.0
        %2344 = vmatpush.msra.mxu0 0.0
        %2345 = vmatpush.msra.mxu0 0.0
        %2346 = vmatpush.msra.mxu0 0.0
        %2347 = vmatpush.msra.mxu0 0.0
        %2348 = vmatpush.msra.mxu0 0.0
        %2349 = vmatpush.msra.mxu0 %v2144
        %2350 = vmatpush.msra.mxu0 %v1390
        %2351 = vmatpush.msra.mxu0 %v2112
        %2352 = vmatmul.f32.gmra.mxu0 %v2146
        %v2353 = vpop.f32.mrf.mxu0
        %v2354 = vadd.f32 0.0, %v2353
        %2355 = vmatmul.f32.gmra.mxu0 %v2149
        %v2356 = vpop.f32.mrf.mxu0
        %v2357 = vadd.f32 0.0, %v2356
        %2358 = vmatmul.f32.gmra.mxu0 %v2152
        %v2359 = vpop.f32.mrf.mxu0
        %v2360 = vadd.f32 0.0, %v2359
        %2361 = vdwg.mxu0
        %v2362 = vadd.f32 %v2354, %v2175
        %v2363 = vadd.f32 %v2172, %v2201
        %v2364 = vadd.f32 %v2198, %v2227
        %v2365 = vadd.f32 %v2224, %v2253
        %v2366 = vadd.f32 %v2250, %v2279
        %v2367 = vadd.f32 %v2276, %v2305
        %v2368 = vadd.f32 %v2302, %v2331
        %v2369 = vadd.f32 %v2328, %v2357
        %v2370 = vadd.f32 %v2362, %v2204
        %v2371 = vadd.f32 %v2363, %v2230
        %v2372 = vadd.f32 %v2364, %v2256
        %v2373 = vadd.f32 %v2365, %v2282
        %v2374 = vadd.f32 %v2366, %v2308
        %v2375 = vadd.f32 %v2367, %v2334
        %v2376 = vadd.f32 %v2368, %v2360
        %v2377 = vadd.f32 %v2369, %v2178
        %2379 = vset.pattern.permute.xlu0 0
        %2380 = vperm.xlu0 %2379, %v1405
        %v2381 = vpop.permute.xlu0 %2380
        %v2383 = vadd.f32 %v2370, %v2381
        %v2384 = vadd.f32 %v2371, %v2381
        %v2385 = vadd.f32 %v2372, %v2381
        %v2386 = vadd.f32 %v2373, %v2381
        %v2387 = vadd.f32 %v2374, %v2381
        %v2388 = vadd.f32 %v2375, %v2381
        %v2389 = vadd.f32 %v2376, %v2381
        %v2390 = vadd.f32 %v2377, %v2381
        %2391 = vrot.lane.b32.xlu0 %v1383, 8
        %v2392 = vpop.permute.xlu0 %2391
        %2393 = vrot.lane.b32.xlu0 %v1384, 8
        %v2394 = vpop.permute.xlu0 %2393
        %2395 = vrot.lane.b32.xlu0 %v1385, 8
        %v2396 = vpop.permute.xlu0 %2395
        %2397 = vrot.lane.b32.xlu0 %v1386, 8
        %v2398 = vpop.permute.xlu0 %2397
        %2399 = vrot.lane.b32.xlu0 %v1387, 8
        %v2400 = vpop.permute.xlu0 %2399
        %2401 = vrot.lane.b32.xlu0 %v1388, 8
        %v2402 = vpop.permute.xlu0 %2401
        %2403 = vrot.lane.b32.xlu0 %v1389, 8
        %v2404 = vpop.permute.xlu0 %2403
        %2405 = vrot.lane.b32.xlu0 %v1390, 8
        %v2406 = vpop.permute.xlu0 %2405
        %vm2407 = vcmp.lt.s32.totalorder %v561, 8
        %v2408 = vsel %vm2407, %v2404, %v2406
        %v2409 = vsel %vm2407, %v2402, %v2404
        %v2410 = vsel %vm2407, %v2400, %v2402
        %v2411 = vsel %vm2407, %v2398, %v2400
        %v2412 = vsel %vm2407, %v2396, %v2398
        %v2413 = vsel %vm2407, %v2394, %v2396
        %v2414 = vsel %vm2407, %v2392, %v2394
        %v2415 = vsel %vm2407, %v2406, %v2392
        %2416 = vrot.lane.b32.xlu0 %v1383, 120
        %v2417 = vpop.permute.xlu0 %2416
        %2418 = vrot.lane.b32.xlu0 %v1384, 120
        %v2419 = vpop.permute.xlu0 %2418
        %2420 = vrot.lane.b32.xlu0 %v1385, 120
        %v2421 = vpop.permute.xlu0 %2420
        %2422 = vrot.lane.b32.xlu0 %v1386, 120
        %v2423 = vpop.permute.xlu0 %2422
        %2424 = vrot.lane.b32.xlu0 %v1387, 120
        %v2425 = vpop.permute.xlu0 %2424
        %2426 = vrot.lane.b32.xlu0 %v1388, 120
        %v2427 = vpop.permute.xlu0 %2426
        %2428 = vrot.lane.b32.xlu0 %v1389, 120
        %v2429 = vpop.permute.xlu0 %2428
        %2430 = vrot.lane.b32.xlu0 %v1390, 120
        %v2431 = vpop.permute.xlu0 %2430
        %vm2432 = vcmp.lt.s32.totalorder %v561, 120
        %v2433 = vsel %vm2432, %v2429, %v2431
        %v2434 = vsel %vm2432, %v2427, %v2429
        %v2435 = vsel %vm2432, %v2425, %v2427
        %v2436 = vsel %vm2432, %v2423, %v2425
        %v2437 = vsel %vm2432, %v2421, %v2423
        %v2438 = vsel %vm2432, %v2419, %v2421
        %v2439 = vsel %vm2432, %v2417, %v2419
        %v2440 = vsel %vm2432, %v2431, %v2417
        %v2442 = vsel %vm1455, %v1400, 0
        %v2445 = vsel %vm1455, %v1401, 0
        %v2448 = vsel %vm1455, %v1402, 0
        %2450 = vmatpush.msra.mxu0 0.0
        %2451 = vmatpush.msra.mxu0 0.0
        %2452 = vmatpush.msra.mxu0 0.0
        %2453 = vmatpush.msra.mxu0 0.0
        %2454 = vmatpush.msra.mxu0 0.0
        %2455 = vmatpush.msra.mxu0 0.0
        %2456 = vmatpush.msra.mxu0 0.0
        %2457 = vmatpush.msra.mxu0 0.0
        %2458 = vmatpush.msra.mxu0 0.0
        %2459 = vmatpush.msra.mxu0 0.0
        %2460 = vmatpush.msra.mxu0 0.0
        %2461 = vmatpush.msra.mxu0 0.0
        %2462 = vmatpush.msra.mxu0 0.0
        %2463 = vmatpush.msra.mxu0 %v2439
        %2464 = vmatpush.msra.mxu0 %v1383
        %2465 = vmatpush.msra.mxu0 %v2415
        %2466 = vmatmul.f32.gmra.mxu0 %v2442
        %v2467 = vpop.f32.mrf.mxu0
        %v2468 = vadd.f32 0.0, %v2467
        %2469 = vmatmul.f32.gmra.mxu0 %v2445
        %v2470 = vpop.f32.mrf.mxu0
        %v2471 = vadd.f32 0.0, %v2470
        %2472 = vmatmul.f32.gmra.mxu0 %v2448
        %v2473 = vpop.f32.mrf.mxu0
        %v2474 = vadd.f32 0.0, %v2473
        %2475 = vdwg.mxu0
        %2476 = vmatpush.msra.mxu0 0.0
        %2477 = vmatpush.msra.mxu0 0.0
        %2478 = vmatpush.msra.mxu0 0.0
        %2479 = vmatpush.msra.mxu0 0.0
        %2480 = vmatpush.msra.mxu0 0.0
        %2481 = vmatpush.msra.mxu0 0.0
        %2482 = vmatpush.msra.mxu0 0.0
        %2483 = vmatpush.msra.mxu0 0.0
        %2484 = vmatpush.msra.mxu0 0.0
        %2485 = vmatpush.msra.mxu0 0.0
        %2486 = vmatpush.msra.mxu0 0.0
        %2487 = vmatpush.msra.mxu0 0.0
        %2488 = vmatpush.msra.mxu0 0.0
        %2489 = vmatpush.msra.mxu0 %v2438
        %2490 = vmatpush.msra.mxu0 %v1384
        %2491 = vmatpush.msra.mxu0 %v2414
        %2492 = vmatmul.f32.gmra.mxu0 %v2442
        %v2493 = vpop.f32.mrf.mxu0
        %v2494 = vadd.f32 0.0, %v2493
        %2495 = vmatmul.f32.gmra.mxu0 %v2445
        %v2496 = vpop.f32.mrf.mxu0
        %v2497 = vadd.f32 0.0, %v2496
        %2498 = vmatmul.f32.gmra.mxu0 %v2448
        %v2499 = vpop.f32.mrf.mxu0
        %v2500 = vadd.f32 0.0, %v2499
        %2501 = vdwg.mxu0
        %2502 = vmatpush.msra.mxu0 0.0
        %2503 = vmatpush.msra.mxu0 0.0
        %2504 = vmatpush.msra.mxu0 0.0
        %2505 = vmatpush.msra.mxu0 0.0
        %2506 = vmatpush.msra.mxu0 0.0
        %2507 = vmatpush.msra.mxu0 0.0
        %2508 = vmatpush.msra.mxu0 0.0
        %2509 = vmatpush.msra.mxu0 0.0
        %2510 = vmatpush.msra.mxu0 0.0
        %2511 = vmatpush.msra.mxu0 0.0
        %2512 = vmatpush.msra.mxu0 0.0
        %2513 = vmatpush.msra.mxu0 0.0
        %2514 = vmatpush.msra.mxu0 0.0
        %2515 = vmatpush.msra.mxu0 %v2437
        %2516 = vmatpush.msra.mxu0 %v1385
        %2517 = vmatpush.msra.mxu0 %v2413
        %2518 = vmatmul.f32.gmra.mxu0 %v2442
        %v2519 = vpop.f32.mrf.mxu0
        %v2520 = vadd.f32 0.0, %v2519
        %2521 = vmatmul.f32.gmra.mxu0 %v2445
        %v2522 = vpop.f32.mrf.mxu0
        %v2523 = vadd.f32 0.0, %v2522
        %2524 = vmatmul.f32.gmra.mxu0 %v2448
        %v2525 = vpop.f32.mrf.mxu0
        %v2526 = vadd.f32 0.0, %v2525
        %2527 = vdwg.mxu0
        %2528 = vmatpush.msra.mxu0 0.0
        %2529 = vmatpush.msra.mxu0 0.0
        %2530 = vmatpush.msra.mxu0 0.0
        %2531 = vmatpush.msra.mxu0 0.0
        %2532 = vmatpush.msra.mxu0 0.0
        %2533 = vmatpush.msra.mxu0 0.0
        %2534 = vmatpush.msra.mxu0 0.0
        %2535 = vmatpush.msra.mxu0 0.0
        %2536 = vmatpush.msra.mxu0 0.0
        %2537 = vmatpush.msra.mxu0 0.0
        %2538 = vmatpush.msra.mxu0 0.0
        %2539 = vmatpush.msra.mxu0 0.0
        %2540 = vmatpush.msra.mxu0 0.0
        %2541 = vmatpush.msra.mxu0 %v2436
        %2542 = vmatpush.msra.mxu0 %v1386
        %2543 = vmatpush.msra.mxu0 %v2412
        %2544 = vmatmul.f32.gmra.mxu0 %v2442
        %v2545 = vpop.f32.mrf.mxu0
        %v2546 = vadd.f32 0.0, %v2545
        %2547 = vmatmul.f32.gmra.mxu0 %v2445
        %v2548 = vpop.f32.mrf.mxu0
        %v2549 = vadd.f32 0.0, %v2548
        %2550 = vmatmul.f32.gmra.mxu0 %v2448
        %v2551 = vpop.f32.mrf.mxu0
        %v2552 = vadd.f32 0.0, %v2551
        %2553 = vdwg.mxu0
        %2554 = vmatpush.msra.mxu0 0.0
        %2555 = vmatpush.msra.mxu0 0.0
        %2556 = vmatpush.msra.mxu0 0.0
        %2557 = vmatpush.msra.mxu0 0.0
        %2558 = vmatpush.msra.mxu0 0.0
        %2559 = vmatpush.msra.mxu0 0.0
        %2560 = vmatpush.msra.mxu0 0.0
        %2561 = vmatpush.msra.mxu0 0.0
        %2562 = vmatpush.msra.mxu0 0.0
        %2563 = vmatpush.msra.mxu0 0.0
        %2564 = vmatpush.msra.mxu0 0.0
        %2565 = vmatpush.msra.mxu0 0.0
        %2566 = vmatpush.msra.mxu0 0.0
        %2567 = vmatpush.msra.mxu0 %v2435
        %2568 = vmatpush.msra.mxu0 %v1387
        %2569 = vmatpush.msra.mxu0 %v2411
        %2570 = vmatmul.f32.gmra.mxu0 %v2442
        %v2571 = vpop.f32.mrf.mxu0
        %v2572 = vadd.f32 0.0, %v2571
        %2573 = vmatmul.f32.gmra.mxu0 %v2445
        %v2574 = vpop.f32.mrf.mxu0
        %v2575 = vadd.f32 0.0, %v2574
        %2576 = vmatmul.f32.gmra.mxu0 %v2448
        %v2577 = vpop.f32.mrf.mxu0
        %v2578 = vadd.f32 0.0, %v2577
        %2579 = vdwg.mxu0
        %2580 = vmatpush.msra.mxu0 0.0
        %2581 = vmatpush.msra.mxu0 0.0
        %2582 = vmatpush.msra.mxu0 0.0
        %2583 = vmatpush.msra.mxu0 0.0
        %2584 = vmatpush.msra.mxu0 0.0
        %2585 = vmatpush.msra.mxu0 0.0
        %2586 = vmatpush.msra.mxu0 0.0
        %2587 = vmatpush.msra.mxu0 0.0
        %2588 = vmatpush.msra.mxu0 0.0
        %2589 = vmatpush.msra.mxu0 0.0
        %2590 = vmatpush.msra.mxu0 0.0
        %2591 = vmatpush.msra.mxu0 0.0
        %2592 = vmatpush.msra.mxu0 0.0
        %2593 = vmatpush.msra.mxu0 %v2434
        %2594 = vmatpush.msra.mxu0 %v1388
        %2595 = vmatpush.msra.mxu0 %v2410
        %2596 = vmatmul.f32.gmra.mxu0 %v2442
        %v2597 = vpop.f32.mrf.mxu0
        %v2598 = vadd.f32 0.0, %v2597
        %2599 = vmatmul.f32.gmra.mxu0 %v2445
        %v2600 = vpop.f32.mrf.mxu0
        %v2601 = vadd.f32 0.0, %v2600
        %2602 = vmatmul.f32.gmra.mxu0 %v2448
        %v2603 = vpop.f32.mrf.mxu0
        %v2604 = vadd.f32 0.0, %v2603
        %2605 = vdwg.mxu0
        %2606 = vmatpush.msra.mxu0 0.0
        %2607 = vmatpush.msra.mxu0 0.0
        %2608 = vmatpush.msra.mxu0 0.0
        %2609 = vmatpush.msra.mxu0 0.0
        %2610 = vmatpush.msra.mxu0 0.0
        %2611 = vmatpush.msra.mxu0 0.0
        %2612 = vmatpush.msra.mxu0 0.0
        %2613 = vmatpush.msra.mxu0 0.0
        %2614 = vmatpush.msra.mxu0 0.0
        %2615 = vmatpush.msra.mxu0 0.0
        %2616 = vmatpush.msra.mxu0 0.0
        %2617 = vmatpush.msra.mxu0 0.0
        %2618 = vmatpush.msra.mxu0 0.0
        %2619 = vmatpush.msra.mxu0 %v2433
        %2620 = vmatpush.msra.mxu0 %v1389
        %2621 = vmatpush.msra.mxu0 %v2409
        %2622 = vmatmul.f32.gmra.mxu0 %v2442
        %v2623 = vpop.f32.mrf.mxu0
        %v2624 = vadd.f32 0.0, %v2623
        %2625 = vmatmul.f32.gmra.mxu0 %v2445
        %v2626 = vpop.f32.mrf.mxu0
        %v2627 = vadd.f32 0.0, %v2626
        %2628 = vmatmul.f32.gmra.mxu0 %v2448
        %v2629 = vpop.f32.mrf.mxu0
        %v2630 = vadd.f32 0.0, %v2629
        %2631 = vdwg.mxu0
        %2632 = vmatpush.msra.mxu0 0.0
        %2633 = vmatpush.msra.mxu0 0.0
        %2634 = vmatpush.msra.mxu0 0.0
        %2635 = vmatpush.msra.mxu0 0.0
        %2636 = vmatpush.msra.mxu0 0.0
        %2637 = vmatpush.msra.mxu0 0.0
        %2638 = vmatpush.msra.mxu0 0.0
        %2639 = vmatpush.msra.mxu0 0.0
        %2640 = vmatpush.msra.mxu0 0.0
        %2641 = vmatpush.msra.mxu0 0.0
        %2642 = vmatpush.msra.mxu0 0.0
        %2643 = vmatpush.msra.mxu0 0.0
        %2644 = vmatpush.msra.mxu0 0.0
        %2645 = vmatpush.msra.mxu0 %v2440
        %2646 = vmatpush.msra.mxu0 %v1390
        %2647 = vmatpush.msra.mxu0 %v2408
        %2648 = vmatmul.f32.gmra.mxu0 %v2442
        %v2649 = vpop.f32.mrf.mxu0
        %v2650 = vadd.f32 0.0, %v2649
        %2651 = vmatmul.f32.gmra.mxu0 %v2445
        %v2652 = vpop.f32.mrf.mxu0
        %v2653 = vadd.f32 0.0, %v2652
        %2654 = vmatmul.f32.gmra.mxu0 %v2448
        %v2655 = vpop.f32.mrf.mxu0
        %v2656 = vadd.f32 0.0, %v2655
        %2657 = vdwg.mxu0
        %v2658 = vadd.f32 %v2624, %v2471
        %v2659 = vadd.f32 %v2650, %v2497
        %v2660 = vadd.f32 %v2468, %v2523
        %v2661 = vadd.f32 %v2494, %v2549
        %v2662 = vadd.f32 %v2520, %v2575
        %v2663 = vadd.f32 %v2546, %v2601
        %v2664 = vadd.f32 %v2572, %v2627
        %v2665 = vadd.f32 %v2598, %v2653
        %v2666 = vadd.f32 %v2658, %v2526
        %v2667 = vadd.f32 %v2659, %v2552
        %v2668 = vadd.f32 %v2660, %v2578
        %v2669 = vadd.f32 %v2661, %v2604
        %v2670 = vadd.f32 %v2662, %v2630
        %v2671 = vadd.f32 %v2663, %v2656
        %v2672 = vadd.f32 %v2664, %v2474
        %v2673 = vadd.f32 %v2665, %v2500
        %2675 = vset.pattern.permute.xlu0 0
        %2676 = vperm.xlu0 %2675, %v1406
        %v2677 = vpop.permute.xlu0 %2676
        %v2679 = vadd.f32 %v2666, %v2677
        %v2680 = vadd.f32 %v2667, %v2677
        %v2681 = vadd.f32 %v2668, %v2677
        %v2682 = vadd.f32 %v2669, %v2677
        %v2683 = vadd.f32 %v2670, %v2677
        %v2684 = vadd.f32 %v2671, %v2677
        %v2685 = vadd.f32 %v2672, %v2677
        %v2686 = vadd.f32 %v2673, %v2677
        %v2687 = vadd.f32 %v1742, %v2087
        %v2688 = vadd.f32 %v1743, %v2088
        %v2689 = vadd.f32 %v1744, %v2089
        %v2690 = vadd.f32 %v1745, %v2090
        %v2691 = vadd.f32 %v1746, %v2091
        %v2692 = vadd.f32 %v1747, %v2092
        %v2693 = vadd.f32 %v1748, %v2093
        %v2694 = vadd.f32 %v1749, %v2094
        %v2695 = vadd.f32 %v2687, %v2383
        %v2696 = vadd.f32 %v2688, %v2384
        %v2697 = vadd.f32 %v2689, %v2385
        %v2698 = vadd.f32 %v2690, %v2386
        %v2699 = vadd.f32 %v2691, %v2387
        %v2700 = vadd.f32 %v2692, %v2388
        %v2701 = vadd.f32 %v2693, %v2389
        %v2702 = vadd.f32 %v2694, %v2390
        %v2703 = vadd.f32 %v2695, %v2679
        %v2704 = vadd.f32 %v2696, %v2680
        %v2705 = vadd.f32 %v2697, %v2681
        %v2706 = vadd.f32 %v2698, %v2682
        %v2707 = vadd.f32 %v2699, %v2683
        %v2708 = vadd.f32 %v2700, %v2684
        %v2709 = vadd.f32 %v2701, %v2685
        %v2710 = vadd.f32 %v2702, %v2686
        %2711 = vmatpush.msra.mxu0 %v379
        %2712 = vmatpush.msra.mxu0 %v378
        %2713 = vmatpush.msra.mxu0 %v377
        %2714 = vmatpush.msra.mxu0 %v376
        %2715 = vmatpush.msra.mxu0 %v375
        %2716 = vmatpush.msra.mxu0 %v374
        %2717 = vmatpush.msra.mxu0 %v373
        %2718 = vmatpush.msra.mxu0 %v372
        %2719 = vmatpush.msra.mxu0 %v371
        %2720 = vmatpush.msra.mxu0 %v370
        %2721 = vmatpush.msra.mxu0 %v369
        %2722 = vmatpush.msra.mxu0 %v368
        %2723 = vmatpush.msra.mxu0 %v367
        %2724 = vmatpush.msra.mxu0 %v366
        %2725 = vmatpush.msra.mxu0 %v365
        %2726 = vmatpush.msra.mxu0 %v364
        %2727 = vmatmul.f32.gmra.mxu0 %v1742
        %v2728 = vpop.f32.mrf.mxu0
        %v2729 = vadd.f32 0.0, %v2728
        %2730 = vmatmul.f32.gmra.mxu0 %v2687
        %v2731 = vpop.f32.mrf.mxu0
        %v2732 = vadd.f32 0.0, %v2731
        %2733 = vmatmul.f32.gmra.mxu0 %v2695
        %v2734 = vpop.f32.mrf.mxu0
        %v2735 = vadd.f32 0.0, %v2734
        %2736 = vmatmul.f32.gmra.mxu0 %v2703
        %v2737 = vpop.f32.mrf.mxu0
        %v2738 = vadd.f32 0.0, %v2737
        %2739 = vdwg.mxu0
        %2740 = vmatpush.msra.mxu0 %v395
        %2741 = vmatpush.msra.mxu0 %v394
        %2742 = vmatpush.msra.mxu0 %v393
        %2743 = vmatpush.msra.mxu0 %v392
        %2744 = vmatpush.msra.mxu0 %v391
        %2745 = vmatpush.msra.mxu0 %v390
        %2746 = vmatpush.msra.mxu0 %v389
        %2747 = vmatpush.msra.mxu0 %v388
        %2748 = vmatpush.msra.mxu0 %v387
        %2749 = vmatpush.msra.mxu0 %v386
        %2750 = vmatpush.msra.mxu0 %v385
        %2751 = vmatpush.msra.mxu0 %v384
        %2752 = vmatpush.msra.mxu0 %v383
        %2753 = vmatpush.msra.mxu0 %v382
        %2754 = vmatpush.msra.mxu0 %v381
        %2755 = vmatpush.msra.mxu0 %v380
        %2756 = vmatmul.f32.gmra.mxu0 %v1743
        %v2757 = vpop.f32.mrf.mxu0
        %v2758 = vadd.f32 %v2729, %v2757
        %2759 = vmatmul.f32.gmra.mxu0 %v2688
        %v2760 = vpop.f32.mrf.mxu0
        %v2761 = vadd.f32 %v2732, %v2760
        %2762 = vmatmul.f32.gmra.mxu0 %v2696
        %v2763 = vpop.f32.mrf.mxu0
        %v2764 = vadd.f32 %v2735, %v2763
        %2765 = vmatmul.f32.gmra.mxu0 %v2704
        %v2766 = vpop.f32.mrf.mxu0
        %v2767 = vadd.f32 %v2738, %v2766
        %2768 = vdwg.mxu0
        %2769 = vmatpush.msra.mxu0 %v411
        %2770 = vmatpush.msra.mxu0 %v410
        %2771 = vmatpush.msra.mxu0 %v409
        %2772 = vmatpush.msra.mxu0 %v408
        %2773 = vmatpush.msra.mxu0 %v407
        %2774 = vmatpush.msra.mxu0 %v406
        %2775 = vmatpush.msra.mxu0 %v405
        %2776 = vmatpush.msra.mxu0 %v404
        %2777 = vmatpush.msra.mxu0 %v403
        %2778 = vmatpush.msra.mxu0 %v402
        %2779 = vmatpush.msra.mxu0 %v401
        %2780 = vmatpush.msra.mxu0 %v400
        %2781 = vmatpush.msra.mxu0 %v399
        %2782 = vmatpush.msra.mxu0 %v398
        %2783 = vmatpush.msra.mxu0 %v397
        %2784 = vmatpush.msra.mxu0 %v396
        %2785 = vmatmul.f32.gmra.mxu0 %v1744
        %v2786 = vpop.f32.mrf.mxu0
        %v2787 = vadd.f32 %v2758, %v2786
        %2788 = vmatmul.f32.gmra.mxu0 %v2689
        %v2789 = vpop.f32.mrf.mxu0
        %v2790 = vadd.f32 %v2761, %v2789
        %2791 = vmatmul.f32.gmra.mxu0 %v2697
        %v2792 = vpop.f32.mrf.mxu0
        %v2793 = vadd.f32 %v2764, %v2792
        %2794 = vmatmul.f32.gmra.mxu0 %v2705
        %v2795 = vpop.f32.mrf.mxu0
        %v2796 = vadd.f32 %v2767, %v2795
        %2797 = vdwg.mxu0
        %2798 = vmatpush.msra.mxu0 %v427
        %2799 = vmatpush.msra.mxu0 %v426
        %2800 = vmatpush.msra.mxu0 %v425
        %2801 = vmatpush.msra.mxu0 %v424
        %2802 = vmatpush.msra.mxu0 %v423
        %2803 = vmatpush.msra.mxu0 %v422
        %2804 = vmatpush.msra.mxu0 %v421
        %2805 = vmatpush.msra.mxu0 %v420
        %2806 = vmatpush.msra.mxu0 %v419
        %2807 = vmatpush.msra.mxu0 %v418
        %2808 = vmatpush.msra.mxu0 %v417
        %2809 = vmatpush.msra.mxu0 %v416
        %2810 = vmatpush.msra.mxu0 %v415
        %2811 = vmatpush.msra.mxu0 %v414
        %2812 = vmatpush.msra.mxu0 %v413
        %2813 = vmatpush.msra.mxu0 %v412
        %2814 = vmatmul.f32.gmra.mxu0 %v1745
        %v2815 = vpop.f32.mrf.mxu0
        %v2816 = vadd.f32 %v2787, %v2815
        %2817 = vmatmul.f32.gmra.mxu0 %v2690
        %v2818 = vpop.f32.mrf.mxu0
        %v2819 = vadd.f32 %v2790, %v2818
        %2820 = vmatmul.f32.gmra.mxu0 %v2698
        %v2821 = vpop.f32.mrf.mxu0
        %v2822 = vadd.f32 %v2793, %v2821
        %2823 = vmatmul.f32.gmra.mxu0 %v2706
        %v2824 = vpop.f32.mrf.mxu0
        %v2825 = vadd.f32 %v2796, %v2824
        %2826 = vdwg.mxu0
        %2827 = vmatpush.msra.mxu0 %v443
        %2828 = vmatpush.msra.mxu0 %v442
        %2829 = vmatpush.msra.mxu0 %v441
        %2830 = vmatpush.msra.mxu0 %v440
        %2831 = vmatpush.msra.mxu0 %v439
        %2832 = vmatpush.msra.mxu0 %v438
        %2833 = vmatpush.msra.mxu0 %v437
        %2834 = vmatpush.msra.mxu0 %v436
        %2835 = vmatpush.msra.mxu0 %v435
        %2836 = vmatpush.msra.mxu0 %v434
        %2837 = vmatpush.msra.mxu0 %v433
        %2838 = vmatpush.msra.mxu0 %v432
        %2839 = vmatpush.msra.mxu0 %v431
        %2840 = vmatpush.msra.mxu0 %v430
        %2841 = vmatpush.msra.mxu0 %v429
        %2842 = vmatpush.msra.mxu0 %v428
        %2843 = vmatmul.f32.gmra.mxu0 %v1746
        %v2844 = vpop.f32.mrf.mxu0
        %v2845 = vadd.f32 %v2816, %v2844
        %2846 = vmatmul.f32.gmra.mxu0 %v2691
        %v2847 = vpop.f32.mrf.mxu0
        %v2848 = vadd.f32 %v2819, %v2847
        %2849 = vmatmul.f32.gmra.mxu0 %v2699
        %v2850 = vpop.f32.mrf.mxu0
        %v2851 = vadd.f32 %v2822, %v2850
        %2852 = vmatmul.f32.gmra.mxu0 %v2707
        %v2853 = vpop.f32.mrf.mxu0
        %v2854 = vadd.f32 %v2825, %v2853
        %2855 = vdwg.mxu0
        %2856 = vmatpush.msra.mxu0 %v459
        %2857 = vmatpush.msra.mxu0 %v458
        %2858 = vmatpush.msra.mxu0 %v457
        %2859 = vmatpush.msra.mxu0 %v456
        %2860 = vmatpush.msra.mxu0 %v455
        %2861 = vmatpush.msra.mxu0 %v454
        %2862 = vmatpush.msra.mxu0 %v453
        %2863 = vmatpush.msra.mxu0 %v452
        %2864 = vmatpush.msra.mxu0 %v451
        %2865 = vmatpush.msra.mxu0 %v450
        %2866 = vmatpush.msra.mxu0 %v449
        %2867 = vmatpush.msra.mxu0 %v448
        %2868 = vmatpush.msra.mxu0 %v447
        %2869 = vmatpush.msra.mxu0 %v446
        %2870 = vmatpush.msra.mxu0 %v445
        %2871 = vmatpush.msra.mxu0 %v444
        %2872 = vmatmul.f32.gmra.mxu0 %v1747
        %v2873 = vpop.f32.mrf.mxu0
        %v2874 = vadd.f32 %v2845, %v2873
        %2875 = vmatmul.f32.gmra.mxu0 %v2692
        %v2876 = vpop.f32.mrf.mxu0
        %v2877 = vadd.f32 %v2848, %v2876
        %2878 = vmatmul.f32.gmra.mxu0 %v2700
        %v2879 = vpop.f32.mrf.mxu0
        %v2880 = vadd.f32 %v2851, %v2879
        %2881 = vmatmul.f32.gmra.mxu0 %v2708
        %v2882 = vpop.f32.mrf.mxu0
        %v2883 = vadd.f32 %v2854, %v2882
        %2884 = vdwg.mxu0
        %2885 = vmatpush.msra.mxu0 %v475
        %2886 = vmatpush.msra.mxu0 %v474
        %2887 = vmatpush.msra.mxu0 %v473
        %2888 = vmatpush.msra.mxu0 %v472
        %2889 = vmatpush.msra.mxu0 %v471
        %2890 = vmatpush.msra.mxu0 %v470
        %2891 = vmatpush.msra.mxu0 %v469
        %2892 = vmatpush.msra.mxu0 %v468
        %2893 = vmatpush.msra.mxu0 %v467
        %2894 = vmatpush.msra.mxu0 %v466
        %2895 = vmatpush.msra.mxu0 %v465
        %2896 = vmatpush.msra.mxu0 %v464
        %2897 = vmatpush.msra.mxu0 %v463
        %2898 = vmatpush.msra.mxu0 %v462
        %2899 = vmatpush.msra.mxu0 %v461
        %2900 = vmatpush.msra.mxu0 %v460
        %2901 = vmatmul.f32.gmra.mxu0 %v1748
        %v2902 = vpop.f32.mrf.mxu0
        %v2903 = vadd.f32 %v2874, %v2902
        %2904 = vmatmul.f32.gmra.mxu0 %v2693
        %v2905 = vpop.f32.mrf.mxu0
        %v2906 = vadd.f32 %v2877, %v2905
        %2907 = vmatmul.f32.gmra.mxu0 %v2701
        %v2908 = vpop.f32.mrf.mxu0
        %v2909 = vadd.f32 %v2880, %v2908
        %2910 = vmatmul.f32.gmra.mxu0 %v2709
        %v2911 = vpop.f32.mrf.mxu0
        %v2912 = vadd.f32 %v2883, %v2911
        %2913 = vdwg.mxu0
        %2914 = vmatpush.msra.mxu0 %v491
        %2915 = vmatpush.msra.mxu0 %v490
        %2916 = vmatpush.msra.mxu0 %v489
        %2917 = vmatpush.msra.mxu0 %v488
        %2918 = vmatpush.msra.mxu0 %v487
        %2919 = vmatpush.msra.mxu0 %v486
        %2920 = vmatpush.msra.mxu0 %v485
        %2921 = vmatpush.msra.mxu0 %v484
        %2922 = vmatpush.msra.mxu0 %v483
        %2923 = vmatpush.msra.mxu0 %v482
        %2924 = vmatpush.msra.mxu0 %v481
        %2925 = vmatpush.msra.mxu0 %v480
        %2926 = vmatpush.msra.mxu0 %v479
        %2927 = vmatpush.msra.mxu0 %v478
        %2928 = vmatpush.msra.mxu0 %v477
        %2929 = vmatpush.msra.mxu0 %v476
        %2930 = vmatmul.f32.gmra.mxu0 %v1749
        %v2931 = vpop.f32.mrf.mxu0
        %v2932 = vadd.f32 %v2903, %v2931
        %2933 = vmatmul.f32.gmra.mxu0 %v2694
        %v2934 = vpop.f32.mrf.mxu0
        %v2935 = vadd.f32 %v2906, %v2934
        %2936 = vmatmul.f32.gmra.mxu0 %v2702
        %v2937 = vpop.f32.mrf.mxu0
        %v2938 = vadd.f32 %v2909, %v2937
        %2939 = vmatmul.f32.gmra.mxu0 %v2710
        %v2940 = vpop.f32.mrf.mxu0
        %v2941 = vadd.f32 %v2912, %v2940
        %2942 = vdwg.mxu0
        %v2943 = vmul.f32 %v1742, %v1742
        %v2944 = vmul.f32 %v1743, %v1743
        %v2945 = vmul.f32 %v1744, %v1744
        %v2946 = vmul.f32 %v1745, %v1745
        %v2947 = vmul.f32 %v1746, %v1746
        %v2948 = vmul.f32 %v1747, %v1747
        %v2949 = vmul.f32 %v1748, %v1748
        %v2950 = vmul.f32 %v1749, %v1749
        %v2951 = vmul.f32 %v2687, %v2687
        %v2952 = vmul.f32 %v2688, %v2688
        %v2953 = vmul.f32 %v2689, %v2689
        %v2954 = vmul.f32 %v2690, %v2690
        %v2955 = vmul.f32 %v2691, %v2691
        %v2956 = vmul.f32 %v2692, %v2692
        %v2957 = vmul.f32 %v2693, %v2693
        %v2958 = vmul.f32 %v2694, %v2694
        %v2959 = vmul.f32 %v2695, %v2695
        %v2960 = vmul.f32 %v2696, %v2696
        %v2961 = vmul.f32 %v2697, %v2697
        %v2962 = vmul.f32 %v2698, %v2698
        %v2963 = vmul.f32 %v2699, %v2699
        %v2964 = vmul.f32 %v2700, %v2700
        %v2965 = vmul.f32 %v2701, %v2701
        %v2966 = vmul.f32 %v2702, %v2702
        %v2967 = vmul.f32 %v2703, %v2703
        %v2968 = vmul.f32 %v2704, %v2704
        %v2969 = vmul.f32 %v2705, %v2705
        %v2970 = vmul.f32 %v2706, %v2706
        %v2971 = vmul.f32 %v2707, %v2707
        %v2972 = vmul.f32 %v2708, %v2708
        %v2973 = vmul.f32 %v2709, %v2709
        %v2974 = vmul.f32 %v2710, %v2710
        %2975 = vmatpush.msra.mxu0 %v379
        %2976 = vmatpush.msra.mxu0 %v378
        %2977 = vmatpush.msra.mxu0 %v377
        %2978 = vmatpush.msra.mxu0 %v376
        %2979 = vmatpush.msra.mxu0 %v375
        %2980 = vmatpush.msra.mxu0 %v374
        %2981 = vmatpush.msra.mxu0 %v373
        %2982 = vmatpush.msra.mxu0 %v372
        %2983 = vmatpush.msra.mxu0 %v371
        %2984 = vmatpush.msra.mxu0 %v370
        %2985 = vmatpush.msra.mxu0 %v369
        %2986 = vmatpush.msra.mxu0 %v368
        %2987 = vmatpush.msra.mxu0 %v367
        %2988 = vmatpush.msra.mxu0 %v366
        %2989 = vmatpush.msra.mxu0 %v365
        %2990 = vmatpush.msra.mxu0 %v364
        %2991 = vmatmul.f32.gmra.mxu0 %v2943
        %v2992 = vpop.f32.mrf.mxu0
        %v2993 = vadd.f32 0.0, %v2992
        %2994 = vmatmul.f32.gmra.mxu0 %v2951
        %v2995 = vpop.f32.mrf.mxu0
        %v2996 = vadd.f32 0.0, %v2995
        %2997 = vmatmul.f32.gmra.mxu0 %v2959
        %v2998 = vpop.f32.mrf.mxu0
        %v2999 = vadd.f32 0.0, %v2998
        %3000 = vmatmul.f32.gmra.mxu0 %v2967
        %v3001 = vpop.f32.mrf.mxu0
        %v3002 = vadd.f32 0.0, %v3001
        %3003 = vdwg.mxu0
        %3004 = vmatpush.msra.mxu0 %v395
        %3005 = vmatpush.msra.mxu0 %v394
        %3006 = vmatpush.msra.mxu0 %v393
        %3007 = vmatpush.msra.mxu0 %v392
        %3008 = vmatpush.msra.mxu0 %v391
        %3009 = vmatpush.msra.mxu0 %v390
        %3010 = vmatpush.msra.mxu0 %v389
        %3011 = vmatpush.msra.mxu0 %v388
        %3012 = vmatpush.msra.mxu0 %v387
        %3013 = vmatpush.msra.mxu0 %v386
        %3014 = vmatpush.msra.mxu0 %v385
        %3015 = vmatpush.msra.mxu0 %v384
        %3016 = vmatpush.msra.mxu0 %v383
        %3017 = vmatpush.msra.mxu0 %v382
        %3018 = vmatpush.msra.mxu0 %v381
        %3019 = vmatpush.msra.mxu0 %v380
        %3020 = vmatmul.f32.gmra.mxu0 %v2944
        %v3021 = vpop.f32.mrf.mxu0
        %v3022 = vadd.f32 %v2993, %v3021
        %3023 = vmatmul.f32.gmra.mxu0 %v2952
        %v3024 = vpop.f32.mrf.mxu0
        %v3025 = vadd.f32 %v2996, %v3024
        %3026 = vmatmul.f32.gmra.mxu0 %v2960
        %v3027 = vpop.f32.mrf.mxu0
        %v3028 = vadd.f32 %v2999, %v3027
        %3029 = vmatmul.f32.gmra.mxu0 %v2968
        %v3030 = vpop.f32.mrf.mxu0
        %v3031 = vadd.f32 %v3002, %v3030
        %3032 = vdwg.mxu0
        %3033 = vmatpush.msra.mxu0 %v411
        %3034 = vmatpush.msra.mxu0 %v410
        %3035 = vmatpush.msra.mxu0 %v409
        %3036 = vmatpush.msra.mxu0 %v408
        %3037 = vmatpush.msra.mxu0 %v407
        %3038 = vmatpush.msra.mxu0 %v406
        %3039 = vmatpush.msra.mxu0 %v405
        %3040 = vmatpush.msra.mxu0 %v404
        %3041 = vmatpush.msra.mxu0 %v403
        %3042 = vmatpush.msra.mxu0 %v402
        %3043 = vmatpush.msra.mxu0 %v401
        %3044 = vmatpush.msra.mxu0 %v400
        %3045 = vmatpush.msra.mxu0 %v399
        %3046 = vmatpush.msra.mxu0 %v398
        %3047 = vmatpush.msra.mxu0 %v397
        %3048 = vmatpush.msra.mxu0 %v396
        %3049 = vmatmul.f32.gmra.mxu0 %v2945
        %v3050 = vpop.f32.mrf.mxu0
        %v3051 = vadd.f32 %v3022, %v3050
        %3052 = vmatmul.f32.gmra.mxu0 %v2953
        %v3053 = vpop.f32.mrf.mxu0
        %v3054 = vadd.f32 %v3025, %v3053
        %3055 = vmatmul.f32.gmra.mxu0 %v2961
        %v3056 = vpop.f32.mrf.mxu0
        %v3057 = vadd.f32 %v3028, %v3056
        %3058 = vmatmul.f32.gmra.mxu0 %v2969
        %v3059 = vpop.f32.mrf.mxu0
        %v3060 = vadd.f32 %v3031, %v3059
        %3061 = vdwg.mxu0
        %3062 = vmatpush.msra.mxu0 %v427
        %3063 = vmatpush.msra.mxu0 %v426
        %3064 = vmatpush.msra.mxu0 %v425
        %3065 = vmatpush.msra.mxu0 %v424
        %3066 = vmatpush.msra.mxu0 %v423
        %3067 = vmatpush.msra.mxu0 %v422
        %3068 = vmatpush.msra.mxu0 %v421
        %3069 = vmatpush.msra.mxu0 %v420
        %3070 = vmatpush.msra.mxu0 %v419
        %3071 = vmatpush.msra.mxu0 %v418
        %3072 = vmatpush.msra.mxu0 %v417
        %3073 = vmatpush.msra.mxu0 %v416
        %3074 = vmatpush.msra.mxu0 %v415
        %3075 = vmatpush.msra.mxu0 %v414
        %3076 = vmatpush.msra.mxu0 %v413
        %3077 = vmatpush.msra.mxu0 %v412
        %3078 = vmatmul.f32.gmra.mxu0 %v2946
        %v3079 = vpop.f32.mrf.mxu0
        %v3080 = vadd.f32 %v3051, %v3079
        %3081 = vmatmul.f32.gmra.mxu0 %v2954
        %v3082 = vpop.f32.mrf.mxu0
        %v3083 = vadd.f32 %v3054, %v3082
        %3084 = vmatmul.f32.gmra.mxu0 %v2962
        %v3085 = vpop.f32.mrf.mxu0
        %v3086 = vadd.f32 %v3057, %v3085
        %3087 = vmatmul.f32.gmra.mxu0 %v2970
        %v3088 = vpop.f32.mrf.mxu0
        %v3089 = vadd.f32 %v3060, %v3088
        %3090 = vdwg.mxu0
        %3091 = vmatpush.msra.mxu0 %v443
        %3092 = vmatpush.msra.mxu0 %v442
        %3093 = vmatpush.msra.mxu0 %v441
        %3094 = vmatpush.msra.mxu0 %v440
        %3095 = vmatpush.msra.mxu0 %v439
        %3096 = vmatpush.msra.mxu0 %v438
        %3097 = vmatpush.msra.mxu0 %v437
        %3098 = vmatpush.msra.mxu0 %v436
        %3099 = vmatpush.msra.mxu0 %v435
        %3100 = vmatpush.msra.mxu0 %v434
        %3101 = vmatpush.msra.mxu0 %v433
        %3102 = vmatpush.msra.mxu0 %v432
        %3103 = vmatpush.msra.mxu0 %v431
        %3104 = vmatpush.msra.mxu0 %v430
        %3105 = vmatpush.msra.mxu0 %v429
        %3106 = vmatpush.msra.mxu0 %v428
        %3107 = vmatmul.f32.gmra.mxu0 %v2947
        %v3108 = vpop.f32.mrf.mxu0
        %v3109 = vadd.f32 %v3080, %v3108
        %3110 = vmatmul.f32.gmra.mxu0 %v2955
        %v3111 = vpop.f32.mrf.mxu0
        %v3112 = vadd.f32 %v3083, %v3111
        %3113 = vmatmul.f32.gmra.mxu0 %v2963
        %v3114 = vpop.f32.mrf.mxu0
        %v3115 = vadd.f32 %v3086, %v3114
        %3116 = vmatmul.f32.gmra.mxu0 %v2971
        %v3117 = vpop.f32.mrf.mxu0
        %v3118 = vadd.f32 %v3089, %v3117
        %3119 = vdwg.mxu0
        %3120 = vmatpush.msra.mxu0 %v459
        %3121 = vmatpush.msra.mxu0 %v458
        %3122 = vmatpush.msra.mxu0 %v457
        %3123 = vmatpush.msra.mxu0 %v456
        %3124 = vmatpush.msra.mxu0 %v455
        %3125 = vmatpush.msra.mxu0 %v454
        %3126 = vmatpush.msra.mxu0 %v453
        %3127 = vmatpush.msra.mxu0 %v452
        %3128 = vmatpush.msra.mxu0 %v451
        %3129 = vmatpush.msra.mxu0 %v450
        %3130 = vmatpush.msra.mxu0 %v449
        %3131 = vmatpush.msra.mxu0 %v448
        %3132 = vmatpush.msra.mxu0 %v447
        %3133 = vmatpush.msra.mxu0 %v446
        %3134 = vmatpush.msra.mxu0 %v445
        %3135 = vmatpush.msra.mxu0 %v444
        %3136 = vmatmul.f32.gmra.mxu0 %v2948
        %v3137 = vpop.f32.mrf.mxu0
        %v3138 = vadd.f32 %v3109, %v3137
        %3139 = vmatmul.f32.gmra.mxu0 %v2956
        %v3140 = vpop.f32.mrf.mxu0
        %v3141 = vadd.f32 %v3112, %v3140
        %3142 = vmatmul.f32.gmra.mxu0 %v2964
        %v3143 = vpop.f32.mrf.mxu0
        %v3144 = vadd.f32 %v3115, %v3143
        %3145 = vmatmul.f32.gmra.mxu0 %v2972
        %v3146 = vpop.f32.mrf.mxu0
        %v3147 = vadd.f32 %v3118, %v3146
        %3148 = vdwg.mxu0
        %3149 = vmatpush.msra.mxu0 %v475
        %3150 = vmatpush.msra.mxu0 %v474
        %3151 = vmatpush.msra.mxu0 %v473
        %3152 = vmatpush.msra.mxu0 %v472
        %3153 = vmatpush.msra.mxu0 %v471
        %3154 = vmatpush.msra.mxu0 %v470
        %3155 = vmatpush.msra.mxu0 %v469
        %3156 = vmatpush.msra.mxu0 %v468
        %3157 = vmatpush.msra.mxu0 %v467
        %3158 = vmatpush.msra.mxu0 %v466
        %3159 = vmatpush.msra.mxu0 %v465
        %3160 = vmatpush.msra.mxu0 %v464
        %3161 = vmatpush.msra.mxu0 %v463
        %3162 = vmatpush.msra.mxu0 %v462
        %3163 = vmatpush.msra.mxu0 %v461
        %3164 = vmatpush.msra.mxu0 %v460
        %3165 = vmatmul.f32.gmra.mxu0 %v2949
        %v3166 = vpop.f32.mrf.mxu0
        %v3167 = vadd.f32 %v3138, %v3166
        %3168 = vmatmul.f32.gmra.mxu0 %v2957
        %v3169 = vpop.f32.mrf.mxu0
        %v3170 = vadd.f32 %v3141, %v3169
        %3171 = vmatmul.f32.gmra.mxu0 %v2965
        %v3172 = vpop.f32.mrf.mxu0
        %v3173 = vadd.f32 %v3144, %v3172
        %3174 = vmatmul.f32.gmra.mxu0 %v2973
        %v3175 = vpop.f32.mrf.mxu0
        %v3176 = vadd.f32 %v3147, %v3175
        %3177 = vdwg.mxu0
        %3178 = vmatpush.msra.mxu0 %v491
        %3179 = vmatpush.msra.mxu0 %v490
        %3180 = vmatpush.msra.mxu0 %v489
        %3181 = vmatpush.msra.mxu0 %v488
        %3182 = vmatpush.msra.mxu0 %v487
        %3183 = vmatpush.msra.mxu0 %v486
        %3184 = vmatpush.msra.mxu0 %v485
        %3185 = vmatpush.msra.mxu0 %v484
        %3186 = vmatpush.msra.mxu0 %v483
        %3187 = vmatpush.msra.mxu0 %v482
        %3188 = vmatpush.msra.mxu0 %v481
        %3189 = vmatpush.msra.mxu0 %v480
        %3190 = vmatpush.msra.mxu0 %v479
        %3191 = vmatpush.msra.mxu0 %v478
        %3192 = vmatpush.msra.mxu0 %v477
        %3193 = vmatpush.msra.mxu0 %v476
        %3194 = vmatmul.f32.gmra.mxu0 %v2950
        %v3195 = vpop.f32.mrf.mxu0
        %v3196 = vadd.f32 %v3167, %v3195
        %3197 = vmatmul.f32.gmra.mxu0 %v2958
        %v3198 = vpop.f32.mrf.mxu0
        %v3199 = vadd.f32 %v3170, %v3198
        %3200 = vmatmul.f32.gmra.mxu0 %v2966
        %v3201 = vpop.f32.mrf.mxu0
        %v3202 = vadd.f32 %v3173, %v3201
        %3203 = vmatmul.f32.gmra.mxu0 %v2974
        %v3204 = vpop.f32.mrf.mxu0
        %v3205 = vadd.f32 %v3176, %v3204
        %3206 = vdwg.mxu0
        %v3207 = vmul.f32 %v2932, 0.00390625
        %v3208 = vmul.f32 %v2935, 0.00390625
        %v3209 = vmul.f32 %v2938, 0.00390625
        %v3210 = vmul.f32 %v2941, 0.00390625
        %v3211 = vmul.f32 %v3196, 0.00390625
        %v3212 = vmul.f32 %v3199, 0.00390625
        %v3213 = vmul.f32 %v3202, 0.00390625
        %v3214 = vmul.f32 %v3205, 0.00390625
        %v3215 = vmul.f32 %v3207, %v3207
        %v3216 = vmul.f32 %v3208, %v3208
        %v3217 = vmul.f32 %v3209, %v3209
        %v3218 = vmul.f32 %v3210, %v3210
        %v3219 = vsub.f32 %v3211, %v3215
        %v3220 = vsub.f32 %v3212, %v3216
        %v3221 = vsub.f32 %v3213, %v3217
        %v3222 = vsub.f32 %v3214, %v3218
        %v3223 = vadd.f32 %v3219, 1e-05
        %v3224 = vadd.f32 %v3220, 1e-05
        %v3225 = vadd.f32 %v3221, 1e-05
        %v3226 = vadd.f32 %v3222, 1e-05
        %v3227 = vrsqrt.pop %v3223
        %v3228 = vmul.f32 %v3227, %v3223
        %v3229 = vmul.f32 %v3228, %v3227
        %v3230 = vmul.f32 0.5, %v3229
        %v3231 = vsub.f32 1.5, %v3230
        %v3232 = vmul.f32 %v3227, %v3231
        %vm3233 = vweird.f32 %v3223
        %vm3234 = vweird.f32 %v3227
        %vm3235 = vmor %vm3233, %vm3234
        %v3236 = vsel %vm3235, %v3227, %v3232
        %v3237 = vrsqrt.pop %v3224
        %v3238 = vmul.f32 %v3237, %v3224
        %v3239 = vmul.f32 %v3238, %v3237
        %v3240 = vmul.f32 0.5, %v3239
        %v3241 = vsub.f32 1.5, %v3240
        %v3242 = vmul.f32 %v3237, %v3241
        %vm3243 = vweird.f32 %v3224
        %vm3244 = vweird.f32 %v3237
        %vm3245 = vmor %vm3243, %vm3244
        %v3246 = vsel %vm3245, %v3237, %v3242
        %v3247 = vrsqrt.pop %v3225
        %v3248 = vmul.f32 %v3247, %v3225
        %v3249 = vmul.f32 %v3248, %v3247
        %v3250 = vmul.f32 0.5, %v3249
        %v3251 = vsub.f32 1.5, %v3250
        %v3252 = vmul.f32 %v3247, %v3251
        %vm3253 = vweird.f32 %v3225
        %vm3254 = vweird.f32 %v3247
        %vm3255 = vmor %vm3253, %vm3254
        %v3256 = vsel %vm3255, %v3247, %v3252
        %v3257 = vrsqrt.pop %v3226
        %v3258 = vmul.f32 %v3257, %v3226
        %v3259 = vmul.f32 %v3258, %v3257
        %v3260 = vmul.f32 0.5, %v3259
        %v3261 = vsub.f32 1.5, %v3260
        %v3262 = vmul.f32 %v3257, %v3261
        %vm3263 = vweird.f32 %v3226
        %vm3264 = vweird.f32 %v3257
        %vm3265 = vmor %vm3263, %vm3264
        %v3266 = vsel %vm3265, %v3257, %v3262
        %3268 = vset.pattern.permute.xlu0 0
        %3269 = vperm.xlu0 %3268, %v3207
        %v3270 = vpop.permute.xlu0 %3269
        %3273 = vset.pattern.permute.xlu0 0
        %3274 = vperm.xlu0 %3273, %v3208
        %v3275 = vpop.permute.xlu0 %3274
        %3278 = vset.pattern.permute.xlu0 0
        %3279 = vperm.xlu0 %3278, %v3209
        %v3280 = vpop.permute.xlu0 %3279
        %3283 = vset.pattern.permute.xlu0 0
        %3284 = vperm.xlu0 %3283, %v3210
        %v3285 = vpop.permute.xlu0 %3284
        %v3287 = vsub.f32 %v1742, %v3270
        %v3288 = vsub.f32 %v1743, %v3270
        %v3289 = vsub.f32 %v1744, %v3270
        %v3290 = vsub.f32 %v1745, %v3270
        %v3291 = vsub.f32 %v1746, %v3270
        %v3292 = vsub.f32 %v1747, %v3270
        %v3293 = vsub.f32 %v1748, %v3270
        %v3294 = vsub.f32 %v1749, %v3270
        %v3295 = vsub.f32 %v2687, %v3275
        %v3296 = vsub.f32 %v2688, %v3275
        %v3297 = vsub.f32 %v2689, %v3275
        %v3298 = vsub.f32 %v2690, %v3275
        %v3299 = vsub.f32 %v2691, %v3275
        %v3300 = vsub.f32 %v2692, %v3275
        %v3301 = vsub.f32 %v2693, %v3275
        %v3302 = vsub.f32 %v2694, %v3275
        %v3303 = vsub.f32 %v2695, %v3280
        %v3304 = vsub.f32 %v2696, %v3280
        %v3305 = vsub.f32 %v2697, %v3280
        %v3306 = vsub.f32 %v2698, %v3280
        %v3307 = vsub.f32 %v2699, %v3280
        %v3308 = vsub.f32 %v2700, %v3280
        %v3309 = vsub.f32 %v2701, %v3280
        %v3310 = vsub.f32 %v2702, %v3280
        %v3311 = vsub.f32 %v2703, %v3285
        %v3312 = vsub.f32 %v2704, %v3285
        %v3313 = vsub.f32 %v2705, %v3285
        %v3314 = vsub.f32 %v2706, %v3285
        %v3315 = vsub.f32 %v2707, %v3285
        %v3316 = vsub.f32 %v2708, %v3285
        %v3317 = vsub.f32 %v2709, %v3285
        %v3318 = vsub.f32 %v2710, %v3285
        %3320 = vset.pattern.permute.xlu0 0
        %3321 = vperm.xlu0 %3320, %v3236
        %v3322 = vpop.permute.xlu0 %3321
        %3325 = vset.pattern.permute.xlu0 0
        %3326 = vperm.xlu0 %3325, %v3246
        %v3327 = vpop.permute.xlu0 %3326
        %3330 = vset.pattern.permute.xlu0 0
        %3331 = vperm.xlu0 %3330, %v3256
        %v3332 = vpop.permute.xlu0 %3331
        %3335 = vset.pattern.permute.xlu0 0
        %3336 = vperm.xlu0 %3335, %v3266
        %v3337 = vpop.permute.xlu0 %3336
        %v3339 = vmul.f32 %v3287, %v3322
        %v3340 = vmul.f32 %v3288, %v3322
        %v3341 = vmul.f32 %v3289, %v3322
        %v3342 = vmul.f32 %v3290, %v3322
        %v3343 = vmul.f32 %v3291, %v3322
        %v3344 = vmul.f32 %v3292, %v3322
        %v3345 = vmul.f32 %v3293, %v3322
        %v3346 = vmul.f32 %v3294, %v3322
        %v3347 = vmul.f32 %v3295, %v3327
        %v3348 = vmul.f32 %v3296, %v3327
        %v3349 = vmul.f32 %v3297, %v3327
        %v3350 = vmul.f32 %v3298, %v3327
        %v3351 = vmul.f32 %v3299, %v3327
        %v3352 = vmul.f32 %v3300, %v3327
        %v3353 = vmul.f32 %v3301, %v3327
        %v3354 = vmul.f32 %v3302, %v3327
        %v3355 = vmul.f32 %v3303, %v3332
        %v3356 = vmul.f32 %v3304, %v3332
        %v3357 = vmul.f32 %v3305, %v3332
        %v3358 = vmul.f32 %v3306, %v3332
        %v3359 = vmul.f32 %v3307, %v3332
        %v3360 = vmul.f32 %v3308, %v3332
        %v3361 = vmul.f32 %v3309, %v3332
        %v3362 = vmul.f32 %v3310, %v3332
        %v3363 = vmul.f32 %v3311, %v3337
        %v3364 = vmul.f32 %v3312, %v3337
        %v3365 = vmul.f32 %v3313, %v3337
        %v3366 = vmul.f32 %v3314, %v3337
        %v3367 = vmul.f32 %v3315, %v3337
        %v3368 = vmul.f32 %v3316, %v3337
        %v3369 = vmul.f32 %v3317, %v3337
        %v3370 = vmul.f32 %v3318, %v3337
        %v3371 = vmax.f32 %v3339, 0.0
        %v3372 = vmax.f32 %v3340, 0.0
        %v3373 = vmax.f32 %v3341, 0.0
        %v3374 = vmax.f32 %v3342, 0.0
        %v3375 = vmax.f32 %v3343, 0.0
        %v3376 = vmax.f32 %v3344, 0.0
        %v3377 = vmax.f32 %v3345, 0.0
        %v3378 = vmax.f32 %v3346, 0.0
        %v3379 = vmax.f32 %v3347, 0.0
        %v3380 = vmax.f32 %v3348, 0.0
        %v3381 = vmax.f32 %v3349, 0.0
        %v3382 = vmax.f32 %v3350, 0.0
        %v3383 = vmax.f32 %v3351, 0.0
        %v3384 = vmax.f32 %v3352, 0.0
        %v3385 = vmax.f32 %v3353, 0.0
        %v3386 = vmax.f32 %v3354, 0.0
        %v3387 = vmax.f32 %v3355, 0.0
        %v3388 = vmax.f32 %v3356, 0.0
        %v3389 = vmax.f32 %v3357, 0.0
        %v3390 = vmax.f32 %v3358, 0.0
        %v3391 = vmax.f32 %v3359, 0.0
        %v3392 = vmax.f32 %v3360, 0.0
        %v3393 = vmax.f32 %v3361, 0.0
        %v3394 = vmax.f32 %v3362, 0.0
        %v3395 = vmax.f32 %v3363, 0.0
        %v3396 = vmax.f32 %v3364, 0.0
        %v3397 = vmax.f32 %v3365, 0.0
        %v3398 = vmax.f32 %v3366, 0.0
        %v3399 = vmax.f32 %v3367, 0.0
        %v3400 = vmax.f32 %v3368, 0.0
        %v3401 = vmax.f32 %v3369, 0.0
        %v3402 = vmax.f32 %v3370, 0.0
        %v3403 = vld [vmem:[%s7] sm:$0xff]
        %v3404 = vld [vmem:[%s7 + $0x8] sm:$0xff]
        %v3405 = vld [vmem:[%s7 + $0x10] sm:$0xff]
        %v3406 = vld [vmem:[%s7 + $0x18] sm:$0xff]
        %v3407 = vld [vmem:[%s8] sm:$0xff]
        %v3408 = vld [vmem:[%s8 + $0x8] sm:$0xff]
        %v3409 = vld [vmem:[%s8 + $0x10] sm:$0xff]
        %v3410 = vld [vmem:[%s8 + $0x18] sm:$0xff]
        %3412 = vset.pattern.permute.xlu0 0
        %3413 = vperm.xlu0 %3412, %v3407
        %v3414 = vpop.permute.xlu0 %3413
        %3417 = vset.pattern.permute.xlu0 0
        %3418 = vperm.xlu0 %3417, %v3408
        %v3419 = vpop.permute.xlu0 %3418
        %3422 = vset.pattern.permute.xlu0 0
        %3423 = vperm.xlu0 %3422, %v3409
        %v3424 = vpop.permute.xlu0 %3423
        %3427 = vset.pattern.permute.xlu0 0
        %3428 = vperm.xlu0 %3427, %v3410
        %v3429 = vpop.permute.xlu0 %3428
        %vm3431 = vcmask 261120
        %v3433 = vsel %vm3431, %v3403, 0
        %v3436 = vsel %vm3431, %v3404, 0
        %v3439 = vsel %vm3431, %v3405, 0
        %v3442 = vsel %vm3431, %v3406, 0
        %3444 = vmatpush.msra.mxu0 0.0
        %3445 = vmatpush.msra.mxu0 0.0
        %3446 = vmatpush.msra.mxu0 0.0
        %3447 = vmatpush.msra.mxu0 0.0
        %3448 = vmatpush.msra.mxu0 0.0
        %3449 = vmatpush.msra.mxu0 0.0
        %3450 = vmatpush.msra.mxu0 0.0
        %3451 = vmatpush.msra.mxu0 0.0
        %3452 = vmatpush.msra.mxu0 0.0
        %3453 = vmatpush.msra.mxu0 0.0
        %3454 = vmatpush.msra.mxu0 0.0
        %3455 = vmatpush.msra.mxu0 0.0
        %3456 = vmatpush.msra.mxu0 %v3395
        %3457 = vmatpush.msra.mxu0 %v3387
        %3458 = vmatpush.msra.mxu0 %v3379
        %3459 = vmatpush.msra.mxu0 %v3371
        %3460 = vmatmul.f32.gmra.mxu0 %v3433
        %v3461 = vpop.f32.mrf.mxu0
        %v3462 = vadd.f32 %v3414, %v3461
        %3463 = vmatmul.f32.gmra.mxu0 %v3436
        %v3464 = vpop.f32.mrf.mxu0
        %v3465 = vadd.f32 %v3419, %v3464
        %3466 = vmatmul.f32.gmra.mxu0 %v3439
        %v3467 = vpop.f32.mrf.mxu0
        %v3468 = vadd.f32 %v3424, %v3467
        %3469 = vmatmul.f32.gmra.mxu0 %v3442
        %v3470 = vpop.f32.mrf.mxu0
        %v3471 = vadd.f32 %v3429, %v3470
        %3472 = vdwg.mxu0
        %3473 = vmatpush.msra.mxu0 0.0
        %3474 = vmatpush.msra.mxu0 0.0
        %3475 = vmatpush.msra.mxu0 0.0
        %3476 = vmatpush.msra.mxu0 0.0
        %3477 = vmatpush.msra.mxu0 0.0
        %3478 = vmatpush.msra.mxu0 0.0
        %3479 = vmatpush.msra.mxu0 0.0
        %3480 = vmatpush.msra.mxu0 0.0
        %3481 = vmatpush.msra.mxu0 0.0
        %3482 = vmatpush.msra.mxu0 0.0
        %3483 = vmatpush.msra.mxu0 0.0
        %3484 = vmatpush.msra.mxu0 0.0
        %3485 = vmatpush.msra.mxu0 %v3396
        %3486 = vmatpush.msra.mxu0 %v3388
        %3487 = vmatpush.msra.mxu0 %v3380
        %3488 = vmatpush.msra.mxu0 %v3372
        %3489 = vmatmul.f32.gmra.mxu0 %v3433
        %v3490 = vpop.f32.mrf.mxu0
        %v3491 = vadd.f32 %v3414, %v3490
        %3492 = vmatmul.f32.gmra.mxu0 %v3436
        %v3493 = vpop.f32.mrf.mxu0
        %v3494 = vadd.f32 %v3419, %v3493
        %3495 = vmatmul.f32.gmra.mxu0 %v3439
        %v3496 = vpop.f32.mrf.mxu0
        %v3497 = vadd.f32 %v3424, %v3496
        %3498 = vmatmul.f32.gmra.mxu0 %v3442
        %v3499 = vpop.f32.mrf.mxu0
        %v3500 = vadd.f32 %v3429, %v3499
        %3501 = vdwg.mxu0
        %3502 = vmatpush.msra.mxu0 0.0
        %3503 = vmatpush.msra.mxu0 0.0
        %3504 = vmatpush.msra.mxu0 0.0
        %3505 = vmatpush.msra.mxu0 0.0
        %3506 = vmatpush.msra.mxu0 0.0
        %3507 = vmatpush.msra.mxu0 0.0
        %3508 = vmatpush.msra.mxu0 0.0
        %3509 = vmatpush.msra.mxu0 0.0
        %3510 = vmatpush.msra.mxu0 0.0
        %3511 = vmatpush.msra.mxu0 0.0
        %3512 = vmatpush.msra.mxu0 0.0
        %3513 = vmatpush.msra.mxu0 0.0
        %3514 = vmatpush.msra.mxu0 %v3397
        %3515 = vmatpush.msra.mxu0 %v3389
        %3516 = vmatpush.msra.mxu0 %v3381
        %3517 = vmatpush.msra.mxu0 %v3373
        %3518 = vmatmul.f32.gmra.mxu0 %v3433
        %v3519 = vpop.f32.mrf.mxu0
        %v3520 = vadd.f32 %v3414, %v3519
        %3521 = vmatmul.f32.gmra.mxu0 %v3436
        %v3522 = vpop.f32.mrf.mxu0
        %v3523 = vadd.f32 %v3419, %v3522
        %3524 = vmatmul.f32.gmra.mxu0 %v3439
        %v3525 = vpop.f32.mrf.mxu0
        %v3526 = vadd.f32 %v3424, %v3525
        %3527 = vmatmul.f32.gmra.mxu0 %v3442
        %v3528 = vpop.f32.mrf.mxu0
        %v3529 = vadd.f32 %v3429, %v3528
        %3530 = vdwg.mxu0
        %3531 = vmatpush.msra.mxu0 0.0
        %3532 = vmatpush.msra.mxu0 0.0
        %3533 = vmatpush.msra.mxu0 0.0
        %3534 = vmatpush.msra.mxu0 0.0
        %3535 = vmatpush.msra.mxu0 0.0
        %3536 = vmatpush.msra.mxu0 0.0
        %3537 = vmatpush.msra.mxu0 0.0
        %3538 = vmatpush.msra.mxu0 0.0
        %3539 = vmatpush.msra.mxu0 0.0
        %3540 = vmatpush.msra.mxu0 0.0
        %3541 = vmatpush.msra.mxu0 0.0
        %3542 = vmatpush.msra.mxu0 0.0
        %3543 = vmatpush.msra.mxu0 %v3398
        %3544 = vmatpush.msra.mxu0 %v3390
        %3545 = vmatpush.msra.mxu0 %v3382
        %3546 = vmatpush.msra.mxu0 %v3374
        %3547 = vmatmul.f32.gmra.mxu0 %v3433
        %v3548 = vpop.f32.mrf.mxu0
        %v3549 = vadd.f32 %v3414, %v3548
        %3550 = vmatmul.f32.gmra.mxu0 %v3436
        %v3551 = vpop.f32.mrf.mxu0
        %v3552 = vadd.f32 %v3419, %v3551
        %3553 = vmatmul.f32.gmra.mxu0 %v3439
        %v3554 = vpop.f32.mrf.mxu0
        %v3555 = vadd.f32 %v3424, %v3554
        %3556 = vmatmul.f32.gmra.mxu0 %v3442
        %v3557 = vpop.f32.mrf.mxu0
        %v3558 = vadd.f32 %v3429, %v3557
        %3559 = vdwg.mxu0
        %3560 = vmatpush.msra.mxu0 0.0
        %3561 = vmatpush.msra.mxu0 0.0
        %3562 = vmatpush.msra.mxu0 0.0
        %3563 = vmatpush.msra.mxu0 0.0
        %3564 = vmatpush.msra.mxu0 0.0
        %3565 = vmatpush.msra.mxu0 0.0
        %3566 = vmatpush.msra.mxu0 0.0
        %3567 = vmatpush.msra.mxu0 0.0
        %3568 = vmatpush.msra.mxu0 0.0
        %3569 = vmatpush.msra.mxu0 0.0
        %3570 = vmatpush.msra.mxu0 0.0
        %3571 = vmatpush.msra.mxu0 0.0
        %3572 = vmatpush.msra.mxu0 %v3399
        %3573 = vmatpush.msra.mxu0 %v3391
        %3574 = vmatpush.msra.mxu0 %v3383
        %3575 = vmatpush.msra.mxu0 %v3375
        %3576 = vmatmul.f32.gmra.mxu0 %v3433
        %v3577 = vpop.f32.mrf.mxu0
        %v3578 = vadd.f32 %v3414, %v3577
        %3579 = vmatmul.f32.gmra.mxu0 %v3436
        %v3580 = vpop.f32.mrf.mxu0
        %v3581 = vadd.f32 %v3419, %v3580
        %3582 = vmatmul.f32.gmra.mxu0 %v3439
        %v3583 = vpop.f32.mrf.mxu0
        %v3584 = vadd.f32 %v3424, %v3583
        %3585 = vmatmul.f32.gmra.mxu0 %v3442
        %v3586 = vpop.f32.mrf.mxu0
        %v3587 = vadd.f32 %v3429, %v3586
        %3588 = vdwg.mxu0
        %3589 = vmatpush.msra.mxu0 0.0
        %3590 = vmatpush.msra.mxu0 0.0
        %3591 = vmatpush.msra.mxu0 0.0
        %3592 = vmatpush.msra.mxu0 0.0
        %3593 = vmatpush.msra.mxu0 0.0
        %3594 = vmatpush.msra.mxu0 0.0
        %3595 = vmatpush.msra.mxu0 0.0
        %3596 = vmatpush.msra.mxu0 0.0
        %3597 = vmatpush.msra.mxu0 0.0
        %3598 = vmatpush.msra.mxu0 0.0
        %3599 = vmatpush.msra.mxu0 0.0
        %3600 = vmatpush.msra.mxu0 0.0
        %3601 = vmatpush.msra.mxu0 %v3400
        %3602 = vmatpush.msra.mxu0 %v3392
        %3603 = vmatpush.msra.mxu0 %v3384
        %3604 = vmatpush.msra.mxu0 %v3376
        %3605 = vmatmul.f32.gmra.mxu0 %v3433
        %v3606 = vpop.f32.mrf.mxu0
        %v3607 = vadd.f32 %v3414, %v3606
        %3608 = vmatmul.f32.gmra.mxu0 %v3436
        %v3609 = vpop.f32.mrf.mxu0
        %v3610 = vadd.f32 %v3419, %v3609
        %3611 = vmatmul.f32.gmra.mxu0 %v3439
        %v3612 = vpop.f32.mrf.mxu0
        %v3613 = vadd.f32 %v3424, %v3612
        %3614 = vmatmul.f32.gmra.mxu0 %v3442
        %v3615 = vpop.f32.mrf.mxu0
        %v3616 = vadd.f32 %v3429, %v3615
        %3617 = vdwg.mxu0
        %3618 = vmatpush.msra.mxu0 0.0
        %3619 = vmatpush.msra.mxu0 0.0
        %3620 = vmatpush.msra.mxu0 0.0
        %3621 = vmatpush.msra.mxu0 0.0
        %3622 = vmatpush.msra.mxu0 0.0
        %3623 = vmatpush.msra.mxu0 0.0
        %3624 = vmatpush.msra.mxu0 0.0
        %3625 = vmatpush.msra.mxu0 0.0
        %3626 = vmatpush.msra.mxu0 0.0
        %3627 = vmatpush.msra.mxu0 0.0
        %3628 = vmatpush.msra.mxu0 0.0
        %3629 = vmatpush.msra.mxu0 0.0
        %3630 = vmatpush.msra.mxu0 %v3401
        %3631 = vmatpush.msra.mxu0 %v3393
        %3632 = vmatpush.msra.mxu0 %v3385
        %3633 = vmatpush.msra.mxu0 %v3377
        %3634 = vmatmul.f32.gmra.mxu0 %v3433
        %v3635 = vpop.f32.mrf.mxu0
        %v3636 = vadd.f32 %v3414, %v3635
        %3637 = vmatmul.f32.gmra.mxu0 %v3436
        %v3638 = vpop.f32.mrf.mxu0
        %v3639 = vadd.f32 %v3419, %v3638
        %3640 = vmatmul.f32.gmra.mxu0 %v3439
        %v3641 = vpop.f32.mrf.mxu0
        %v3642 = vadd.f32 %v3424, %v3641
        %3643 = vmatmul.f32.gmra.mxu0 %v3442
        %v3644 = vpop.f32.mrf.mxu0
        %v3645 = vadd.f32 %v3429, %v3644
        %3646 = vdwg.mxu0
        %3647 = vmatpush.msra.mxu0 0.0
        %3648 = vmatpush.msra.mxu0 0.0
        %3649 = vmatpush.msra.mxu0 0.0
        %3650 = vmatpush.msra.mxu0 0.0
        %3651 = vmatpush.msra.mxu0 0.0
        %3652 = vmatpush.msra.mxu0 0.0
        %3653 = vmatpush.msra.mxu0 0.0
        %3654 = vmatpush.msra.mxu0 0.0
        %3655 = vmatpush.msra.mxu0 0.0
        %3656 = vmatpush.msra.mxu0 0.0
        %3657 = vmatpush.msra.mxu0 0.0
        %3658 = vmatpush.msra.mxu0 0.0
        %3659 = vmatpush.msra.mxu0 %v3402
        %3660 = vmatpush.msra.mxu0 %v3394
        %3661 = vmatpush.msra.mxu0 %v3386
        %3662 = vmatpush.msra.mxu0 %v3378
        %3663 = vmatmul.f32.gmra.mxu0 %v3433
        %v3664 = vpop.f32.mrf.mxu0
        %v3665 = vadd.f32 %v3414, %v3664
        %3666 = vmatmul.f32.gmra.mxu0 %v3436
        %v3667 = vpop.f32.mrf.mxu0
        %v3668 = vadd.f32 %v3419, %v3667
        %3669 = vmatmul.f32.gmra.mxu0 %v3439
        %v3670 = vpop.f32.mrf.mxu0
        %v3671 = vadd.f32 %v3424, %v3670
        %3672 = vmatmul.f32.gmra.mxu0 %v3442
        %v3673 = vpop.f32.mrf.mxu0
        %v3674 = vadd.f32 %v3429, %v3673
        %3675 = vdwg.mxu0
        %3676 = vmatpush.msra.mxu0 %v379
        %3677 = vmatpush.msra.mxu0 %v378
        %3678 = vmatpush.msra.mxu0 %v377
        %3679 = vmatpush.msra.mxu0 %v376
        %3680 = vmatpush.msra.mxu0 %v375
        %3681 = vmatpush.msra.mxu0 %v374
        %3682 = vmatpush.msra.mxu0 %v373
        %3683 = vmatpush.msra.mxu0 %v372
        %3684 = vmatpush.msra.mxu0 %v371
        %3685 = vmatpush.msra.mxu0 %v370
        %3686 = vmatpush.msra.mxu0 %v369
        %3687 = vmatpush.msra.mxu0 %v368
        %3688 = vmatpush.msra.mxu0 %v367
        %3689 = vmatpush.msra.mxu0 %v366
        %3690 = vmatpush.msra.mxu0 %v365
        %3691 = vmatpush.msra.mxu0 %v364
        %3692 = vmatmul.f32.gmra.mxu0 %v3462
        %v3693 = vpop.f32.mrf.mxu0
        %v3694 = vadd.f32 0.0, %v3693
        %3695 = vmatmul.f32.gmra.mxu0 %v3465
        %v3696 = vpop.f32.mrf.mxu0
        %v3697 = vadd.f32 0.0, %v3696
        %3698 = vmatmul.f32.gmra.mxu0 %v3468
        %v3699 = vpop.f32.mrf.mxu0
        %v3700 = vadd.f32 0.0, %v3699
        %3701 = vmatmul.f32.gmra.mxu0 %v3471
        %v3702 = vpop.f32.mrf.mxu0
        %v3703 = vadd.f32 0.0, %v3702
        %3704 = vdwg.mxu0
        %3705 = vmatpush.msra.mxu0 %v395
        %3706 = vmatpush.msra.mxu0 %v394
        %3707 = vmatpush.msra.mxu0 %v393
        %3708 = vmatpush.msra.mxu0 %v392
        %3709 = vmatpush.msra.mxu0 %v391
        %3710 = vmatpush.msra.mxu0 %v390
        %3711 = vmatpush.msra.mxu0 %v389
        %3712 = vmatpush.msra.mxu0 %v388
        %3713 = vmatpush.msra.mxu0 %v387
        %3714 = vmatpush.msra.mxu0 %v386
        %3715 = vmatpush.msra.mxu0 %v385
        %3716 = vmatpush.msra.mxu0 %v384
        %3717 = vmatpush.msra.mxu0 %v383
        %3718 = vmatpush.msra.mxu0 %v382
        %3719 = vmatpush.msra.mxu0 %v381
        %3720 = vmatpush.msra.mxu0 %v380
        %3721 = vmatmul.f32.gmra.mxu0 %v3491
        %v3722 = vpop.f32.mrf.mxu0
        %v3723 = vadd.f32 %v3694, %v3722
        %3724 = vmatmul.f32.gmra.mxu0 %v3494
        %v3725 = vpop.f32.mrf.mxu0
        %v3726 = vadd.f32 %v3697, %v3725
        %3727 = vmatmul.f32.gmra.mxu0 %v3497
        %v3728 = vpop.f32.mrf.mxu0
        %v3729 = vadd.f32 %v3700, %v3728
        %3730 = vmatmul.f32.gmra.mxu0 %v3500
        %v3731 = vpop.f32.mrf.mxu0
        %v3732 = vadd.f32 %v3703, %v3731
        %3733 = vdwg.mxu0
        %3734 = vmatpush.msra.mxu0 %v411
        %3735 = vmatpush.msra.mxu0 %v410
        %3736 = vmatpush.msra.mxu0 %v409
        %3737 = vmatpush.msra.mxu0 %v408
        %3738 = vmatpush.msra.mxu0 %v407
        %3739 = vmatpush.msra.mxu0 %v406
        %3740 = vmatpush.msra.mxu0 %v405
        %3741 = vmatpush.msra.mxu0 %v404
        %3742 = vmatpush.msra.mxu0 %v403
        %3743 = vmatpush.msra.mxu0 %v402
        %3744 = vmatpush.msra.mxu0 %v401
        %3745 = vmatpush.msra.mxu0 %v400
        %3746 = vmatpush.msra.mxu0 %v399
        %3747 = vmatpush.msra.mxu0 %v398
        %3748 = vmatpush.msra.mxu0 %v397
        %3749 = vmatpush.msra.mxu0 %v396
        %3750 = vmatmul.f32.gmra.mxu0 %v3520
        %v3751 = vpop.f32.mrf.mxu0
        %v3752 = vadd.f32 %v3723, %v3751
        %3753 = vmatmul.f32.gmra.mxu0 %v3523
        %v3754 = vpop.f32.mrf.mxu0
        %v3755 = vadd.f32 %v3726, %v3754
        %3756 = vmatmul.f32.gmra.mxu0 %v3526
        %v3757 = vpop.f32.mrf.mxu0
        %v3758 = vadd.f32 %v3729, %v3757
        %3759 = vmatmul.f32.gmra.mxu0 %v3529
        %v3760 = vpop.f32.mrf.mxu0
        %v3761 = vadd.f32 %v3732, %v3760
        %3762 = vdwg.mxu0
        %3763 = vmatpush.msra.mxu0 %v427
        %3764 = vmatpush.msra.mxu0 %v426
        %3765 = vmatpush.msra.mxu0 %v425
        %3766 = vmatpush.msra.mxu0 %v424
        %3767 = vmatpush.msra.mxu0 %v423
        %3768 = vmatpush.msra.mxu0 %v422
        %3769 = vmatpush.msra.mxu0 %v421
        %3770 = vmatpush.msra.mxu0 %v420
        %3771 = vmatpush.msra.mxu0 %v419
        %3772 = vmatpush.msra.mxu0 %v418
        %3773 = vmatpush.msra.mxu0 %v417
        %3774 = vmatpush.msra.mxu0 %v416
        %3775 = vmatpush.msra.mxu0 %v415
        %3776 = vmatpush.msra.mxu0 %v414
        %3777 = vmatpush.msra.mxu0 %v413
        %3778 = vmatpush.msra.mxu0 %v412
        %3779 = vmatmul.f32.gmra.mxu0 %v3549
        %v3780 = vpop.f32.mrf.mxu0
        %v3781 = vadd.f32 %v3752, %v3780
        %3782 = vmatmul.f32.gmra.mxu0 %v3552
        %v3783 = vpop.f32.mrf.mxu0
        %v3784 = vadd.f32 %v3755, %v3783
        %3785 = vmatmul.f32.gmra.mxu0 %v3555
        %v3786 = vpop.f32.mrf.mxu0
        %v3787 = vadd.f32 %v3758, %v3786
        %3788 = vmatmul.f32.gmra.mxu0 %v3558
        %v3789 = vpop.f32.mrf.mxu0
        %v3790 = vadd.f32 %v3761, %v3789
        %3791 = vdwg.mxu0
        %3792 = vmatpush.msra.mxu0 %v443
        %3793 = vmatpush.msra.mxu0 %v442
        %3794 = vmatpush.msra.mxu0 %v441
        %3795 = vmatpush.msra.mxu0 %v440
        %3796 = vmatpush.msra.mxu0 %v439
        %3797 = vmatpush.msra.mxu0 %v438
        %3798 = vmatpush.msra.mxu0 %v437
        %3799 = vmatpush.msra.mxu0 %v436
        %3800 = vmatpush.msra.mxu0 %v435
        %3801 = vmatpush.msra.mxu0 %v434
        %3802 = vmatpush.msra.mxu0 %v433
        %3803 = vmatpush.msra.mxu0 %v432
        %3804 = vmatpush.msra.mxu0 %v431
        %3805 = vmatpush.msra.mxu0 %v430
        %3806 = vmatpush.msra.mxu0 %v429
        %3807 = vmatpush.msra.mxu0 %v428
        %3808 = vmatmul.f32.gmra.mxu0 %v3578
        %v3809 = vpop.f32.mrf.mxu0
        %v3810 = vadd.f32 %v3781, %v3809
        %3811 = vmatmul.f32.gmra.mxu0 %v3581
        %v3812 = vpop.f32.mrf.mxu0
        %v3813 = vadd.f32 %v3784, %v3812
        %3814 = vmatmul.f32.gmra.mxu0 %v3584
        %v3815 = vpop.f32.mrf.mxu0
        %v3816 = vadd.f32 %v3787, %v3815
        %3817 = vmatmul.f32.gmra.mxu0 %v3587
        %v3818 = vpop.f32.mrf.mxu0
        %v3819 = vadd.f32 %v3790, %v3818
        %3820 = vdwg.mxu0
        %3821 = vmatpush.msra.mxu0 %v459
        %3822 = vmatpush.msra.mxu0 %v458
        %3823 = vmatpush.msra.mxu0 %v457
        %3824 = vmatpush.msra.mxu0 %v456
        %3825 = vmatpush.msra.mxu0 %v455
        %3826 = vmatpush.msra.mxu0 %v454
        %3827 = vmatpush.msra.mxu0 %v453
        %3828 = vmatpush.msra.mxu0 %v452
        %3829 = vmatpush.msra.mxu0 %v451
        %3830 = vmatpush.msra.mxu0 %v450
        %3831 = vmatpush.msra.mxu0 %v449
        %3832 = vmatpush.msra.mxu0 %v448
        %3833 = vmatpush.msra.mxu0 %v447
        %3834 = vmatpush.msra.mxu0 %v446
        %3835 = vmatpush.msra.mxu0 %v445
        %3836 = vmatpush.msra.mxu0 %v444
        %3837 = vmatmul.f32.gmra.mxu0 %v3607
        %v3838 = vpop.f32.mrf.mxu0
        %v3839 = vadd.f32 %v3810, %v3838
        %3840 = vmatmul.f32.gmra.mxu0 %v3610
        %v3841 = vpop.f32.mrf.mxu0
        %v3842 = vadd.f32 %v3813, %v3841
        %3843 = vmatmul.f32.gmra.mxu0 %v3613
        %v3844 = vpop.f32.mrf.mxu0
        %v3845 = vadd.f32 %v3816, %v3844
        %3846 = vmatmul.f32.gmra.mxu0 %v3616
        %v3847 = vpop.f32.mrf.mxu0
        %v3848 = vadd.f32 %v3819, %v3847
        %3849 = vdwg.mxu0
        %3850 = vmatpush.msra.mxu0 %v475
        %3851 = vmatpush.msra.mxu0 %v474
        %3852 = vmatpush.msra.mxu0 %v473
        %3853 = vmatpush.msra.mxu0 %v472
        %3854 = vmatpush.msra.mxu0 %v471
        %3855 = vmatpush.msra.mxu0 %v470
        %3856 = vmatpush.msra.mxu0 %v469
        %3857 = vmatpush.msra.mxu0 %v468
        %3858 = vmatpush.msra.mxu0 %v467
        %3859 = vmatpush.msra.mxu0 %v466
        %3860 = vmatpush.msra.mxu0 %v465
        %3861 = vmatpush.msra.mxu0 %v464
        %3862 = vmatpush.msra.mxu0 %v463
        %3863 = vmatpush.msra.mxu0 %v462
        %3864 = vmatpush.msra.mxu0 %v461
        %3865 = vmatpush.msra.mxu0 %v460
        %3866 = vmatmul.f32.gmra.mxu0 %v3636
        %v3867 = vpop.f32.mrf.mxu0
        %v3868 = vadd.f32 %v3839, %v3867
        %3869 = vmatmul.f32.gmra.mxu0 %v3639
        %v3870 = vpop.f32.mrf.mxu0
        %v3871 = vadd.f32 %v3842, %v3870
        %3872 = vmatmul.f32.gmra.mxu0 %v3642
        %v3873 = vpop.f32.mrf.mxu0
        %v3874 = vadd.f32 %v3845, %v3873
        %3875 = vmatmul.f32.gmra.mxu0 %v3645
        %v3876 = vpop.f32.mrf.mxu0
        %v3877 = vadd.f32 %v3848, %v3876
        %3878 = vdwg.mxu0
        %3879 = vmatpush.msra.mxu0 %v491
        %3880 = vmatpush.msra.mxu0 %v490
        %3881 = vmatpush.msra.mxu0 %v489
        %3882 = vmatpush.msra.mxu0 %v488
        %3883 = vmatpush.msra.mxu0 %v487
        %3884 = vmatpush.msra.mxu0 %v486
        %3885 = vmatpush.msra.mxu0 %v485
        %3886 = vmatpush.msra.mxu0 %v484
        %3887 = vmatpush.msra.mxu0 %v483
        %3888 = vmatpush.msra.mxu0 %v482
        %3889 = vmatpush.msra.mxu0 %v481
        %3890 = vmatpush.msra.mxu0 %v480
        %3891 = vmatpush.msra.mxu0 %v479
        %3892 = vmatpush.msra.mxu0 %v478
        %3893 = vmatpush.msra.mxu0 %v477
        %3894 = vmatpush.msra.mxu0 %v476
        %3895 = vmatmul.f32.gmra.mxu0 %v3665
        %v3896 = vpop.f32.mrf.mxu0
        %v3897 = vadd.f32 %v3868, %v3896
        %3898 = vmatmul.f32.gmra.mxu0 %v3668
        %v3899 = vpop.f32.mrf.mxu0
        %v3900 = vadd.f32 %v3871, %v3899
        %3901 = vmatmul.f32.gmra.mxu0 %v3671
        %v3902 = vpop.f32.mrf.mxu0
        %v3903 = vadd.f32 %v3874, %v3902
        %3904 = vmatmul.f32.gmra.mxu0 %v3674
        %v3905 = vpop.f32.mrf.mxu0
        %v3906 = vadd.f32 %v3877, %v3905
        %3907 = vdwg.mxu0
        %v3908 = vmul.f32 %v3462, %v3462
        %v3909 = vmul.f32 %v3491, %v3491
        %v3910 = vmul.f32 %v3520, %v3520
        %v3911 = vmul.f32 %v3549, %v3549
        %v3912 = vmul.f32 %v3578, %v3578
        %v3913 = vmul.f32 %v3607, %v3607
        %v3914 = vmul.f32 %v3636, %v3636
        %v3915 = vmul.f32 %v3665, %v3665
        %v3916 = vmul.f32 %v3465, %v3465
        %v3917 = vmul.f32 %v3494, %v3494
        %v3918 = vmul.f32 %v3523, %v3523
        %v3919 = vmul.f32 %v3552, %v3552
        %v3920 = vmul.f32 %v3581, %v3581
        %v3921 = vmul.f32 %v3610, %v3610
        %v3922 = vmul.f32 %v3639, %v3639
        %v3923 = vmul.f32 %v3668, %v3668
        %v3924 = vmul.f32 %v3468, %v3468
        %v3925 = vmul.f32 %v3497, %v3497
        %v3926 = vmul.f32 %v3526, %v3526
        %v3927 = vmul.f32 %v3555, %v3555
        %v3928 = vmul.f32 %v3584, %v3584
        %v3929 = vmul.f32 %v3613, %v3613
        %v3930 = vmul.f32 %v3642, %v3642
        %v3931 = vmul.f32 %v3671, %v3671
        %v3932 = vmul.f32 %v3471, %v3471
        %v3933 = vmul.f32 %v3500, %v3500
        %v3934 = vmul.f32 %v3529, %v3529
        %v3935 = vmul.f32 %v3558, %v3558
        %v3936 = vmul.f32 %v3587, %v3587
        %v3937 = vmul.f32 %v3616, %v3616
        %v3938 = vmul.f32 %v3645, %v3645
        %v3939 = vmul.f32 %v3674, %v3674
        %3940 = vmatpush.msra.mxu0 %v379
        %3941 = vmatpush.msra.mxu0 %v378
        %3942 = vmatpush.msra.mxu0 %v377
        %3943 = vmatpush.msra.mxu0 %v376
        %3944 = vmatpush.msra.mxu0 %v375
        %3945 = vmatpush.msra.mxu0 %v374
        %3946 = vmatpush.msra.mxu0 %v373
        %3947 = vmatpush.msra.mxu0 %v372
        %3948 = vmatpush.msra.mxu0 %v371
        %3949 = vmatpush.msra.mxu0 %v370
        %3950 = vmatpush.msra.mxu0 %v369
        %3951 = vmatpush.msra.mxu0 %v368
        %3952 = vmatpush.msra.mxu0 %v367
        %3953 = vmatpush.msra.mxu0 %v366
        %3954 = vmatpush.msra.mxu0 %v365
        %3955 = vmatpush.msra.mxu0 %v364
        %3956 = vmatmul.f32.gmra.mxu0 %v3908
        %v3957 = vpop.f32.mrf.mxu0
        %v3958 = vadd.f32 0.0, %v3957
        %3959 = vmatmul.f32.gmra.mxu0 %v3916
        %v3960 = vpop.f32.mrf.mxu0
        %v3961 = vadd.f32 0.0, %v3960
        %3962 = vmatmul.f32.gmra.mxu0 %v3924
        %v3963 = vpop.f32.mrf.mxu0
        %v3964 = vadd.f32 0.0, %v3963
        %3965 = vmatmul.f32.gmra.mxu0 %v3932
        %v3966 = vpop.f32.mrf.mxu0
        %v3967 = vadd.f32 0.0, %v3966
        %3968 = vdwg.mxu0
        %3969 = vmatpush.msra.mxu0 %v395
        %3970 = vmatpush.msra.mxu0 %v394
        %3971 = vmatpush.msra.mxu0 %v393
        %3972 = vmatpush.msra.mxu0 %v392
        %3973 = vmatpush.msra.mxu0 %v391
        %3974 = vmatpush.msra.mxu0 %v390
        %3975 = vmatpush.msra.mxu0 %v389
        %3976 = vmatpush.msra.mxu0 %v388
        %3977 = vmatpush.msra.mxu0 %v387
        %3978 = vmatpush.msra.mxu0 %v386
        %3979 = vmatpush.msra.mxu0 %v385
        %3980 = vmatpush.msra.mxu0 %v384
        %3981 = vmatpush.msra.mxu0 %v383
        %3982 = vmatpush.msra.mxu0 %v382
        %3983 = vmatpush.msra.mxu0 %v381
        %3984 = vmatpush.msra.mxu0 %v380
        %3985 = vmatmul.f32.gmra.mxu0 %v3909
        %v3986 = vpop.f32.mrf.mxu0
        %v3987 = vadd.f32 %v3958, %v3986
        %3988 = vmatmul.f32.gmra.mxu0 %v3917
        %v3989 = vpop.f32.mrf.mxu0
        %v3990 = vadd.f32 %v3961, %v3989
        %3991 = vmatmul.f32.gmra.mxu0 %v3925
        %v3992 = vpop.f32.mrf.mxu0
        %v3993 = vadd.f32 %v3964, %v3992
        %3994 = vmatmul.f32.gmra.mxu0 %v3933
        %v3995 = vpop.f32.mrf.mxu0
        %v3996 = vadd.f32 %v3967, %v3995
        %3997 = vdwg.mxu0
        %3998 = vmatpush.msra.mxu0 %v411
        %3999 = vmatpush.msra.mxu0 %v410
        %4000 = vmatpush.msra.mxu0 %v409
        %4001 = vmatpush.msra.mxu0 %v408
        %4002 = vmatpush.msra.mxu0 %v407
        %4003 = vmatpush.msra.mxu0 %v406
        %4004 = vmatpush.msra.mxu0 %v405
        %4005 = vmatpush.msra.mxu0 %v404
        %4006 = vmatpush.msra.mxu0 %v403
        %4007 = vmatpush.msra.mxu0 %v402
        %4008 = vmatpush.msra.mxu0 %v401
        %4009 = vmatpush.msra.mxu0 %v400
        %4010 = vmatpush.msra.mxu0 %v399
        %4011 = vmatpush.msra.mxu0 %v398
        %4012 = vmatpush.msra.mxu0 %v397
        %4013 = vmatpush.msra.mxu0 %v396
        %4014 = vmatmul.f32.gmra.mxu0 %v3910
        %v4015 = vpop.f32.mrf.mxu0
        %v4016 = vadd.f32 %v3987, %v4015
        %4017 = vmatmul.f32.gmra.mxu0 %v3918
        %v4018 = vpop.f32.mrf.mxu0
        %v4019 = vadd.f32 %v3990, %v4018
        %4020 = vmatmul.f32.gmra.mxu0 %v3926
        %v4021 = vpop.f32.mrf.mxu0
        %v4022 = vadd.f32 %v3993, %v4021
        %4023 = vmatmul.f32.gmra.mxu0 %v3934
        %v4024 = vpop.f32.mrf.mxu0
        %v4025 = vadd.f32 %v3996, %v4024
        %4026 = vdwg.mxu0
        %4027 = vmatpush.msra.mxu0 %v427
        %4028 = vmatpush.msra.mxu0 %v426
        %4029 = vmatpush.msra.mxu0 %v425
        %4030 = vmatpush.msra.mxu0 %v424
        %4031 = vmatpush.msra.mxu0 %v423
        %4032 = vmatpush.msra.mxu0 %v422
        %4033 = vmatpush.msra.mxu0 %v421
        %4034 = vmatpush.msra.mxu0 %v420
        %4035 = vmatpush.msra.mxu0 %v419
        %4036 = vmatpush.msra.mxu0 %v418
        %4037 = vmatpush.msra.mxu0 %v417
        %4038 = vmatpush.msra.mxu0 %v416
        %4039 = vmatpush.msra.mxu0 %v415
        %4040 = vmatpush.msra.mxu0 %v414
        %4041 = vmatpush.msra.mxu0 %v413
        %4042 = vmatpush.msra.mxu0 %v412
        %4043 = vmatmul.f32.gmra.mxu0 %v3911
        %v4044 = vpop.f32.mrf.mxu0
        %v4045 = vadd.f32 %v4016, %v4044
        %4046 = vmatmul.f32.gmra.mxu0 %v3919
        %v4047 = vpop.f32.mrf.mxu0
        %v4048 = vadd.f32 %v4019, %v4047
        %4049 = vmatmul.f32.gmra.mxu0 %v3927
        %v4050 = vpop.f32.mrf.mxu0
        %v4051 = vadd.f32 %v4022, %v4050
        %4052 = vmatmul.f32.gmra.mxu0 %v3935
        %v4053 = vpop.f32.mrf.mxu0
        %v4054 = vadd.f32 %v4025, %v4053
        %4055 = vdwg.mxu0
        %4056 = vmatpush.msra.mxu0 %v443
        %4057 = vmatpush.msra.mxu0 %v442
        %4058 = vmatpush.msra.mxu0 %v441
        %4059 = vmatpush.msra.mxu0 %v440
        %4060 = vmatpush.msra.mxu0 %v439
        %4061 = vmatpush.msra.mxu0 %v438
        %4062 = vmatpush.msra.mxu0 %v437
        %4063 = vmatpush.msra.mxu0 %v436
        %4064 = vmatpush.msra.mxu0 %v435
        %4065 = vmatpush.msra.mxu0 %v434
        %4066 = vmatpush.msra.mxu0 %v433
        %4067 = vmatpush.msra.mxu0 %v432
        %4068 = vmatpush.msra.mxu0 %v431
        %4069 = vmatpush.msra.mxu0 %v430
        %4070 = vmatpush.msra.mxu0 %v429
        %4071 = vmatpush.msra.mxu0 %v428
        %4072 = vmatmul.f32.gmra.mxu0 %v3912
        %v4073 = vpop.f32.mrf.mxu0
        %v4074 = vadd.f32 %v4045, %v4073
        %4075 = vmatmul.f32.gmra.mxu0 %v3920
        %v4076 = vpop.f32.mrf.mxu0
        %v4077 = vadd.f32 %v4048, %v4076
        %4078 = vmatmul.f32.gmra.mxu0 %v3928
        %v4079 = vpop.f32.mrf.mxu0
        %v4080 = vadd.f32 %v4051, %v4079
        %4081 = vmatmul.f32.gmra.mxu0 %v3936
        %v4082 = vpop.f32.mrf.mxu0
        %v4083 = vadd.f32 %v4054, %v4082
        %4084 = vdwg.mxu0
        %4085 = vmatpush.msra.mxu0 %v459
        %4086 = vmatpush.msra.mxu0 %v458
        %4087 = vmatpush.msra.mxu0 %v457
        %4088 = vmatpush.msra.mxu0 %v456
        %4089 = vmatpush.msra.mxu0 %v455
        %4090 = vmatpush.msra.mxu0 %v454
        %4091 = vmatpush.msra.mxu0 %v453
        %4092 = vmatpush.msra.mxu0 %v452
        %4093 = vmatpush.msra.mxu0 %v451
        %4094 = vmatpush.msra.mxu0 %v450
        %4095 = vmatpush.msra.mxu0 %v449
        %4096 = vmatpush.msra.mxu0 %v448
        %4097 = vmatpush.msra.mxu0 %v447
        %4098 = vmatpush.msra.mxu0 %v446
        %4099 = vmatpush.msra.mxu0 %v445
        %4100 = vmatpush.msra.mxu0 %v444
        %4101 = vmatmul.f32.gmra.mxu0 %v3913
        %v4102 = vpop.f32.mrf.mxu0
        %v4103 = vadd.f32 %v4074, %v4102
        %4104 = vmatmul.f32.gmra.mxu0 %v3921
        %v4105 = vpop.f32.mrf.mxu0
        %v4106 = vadd.f32 %v4077, %v4105
        %4107 = vmatmul.f32.gmra.mxu0 %v3929
        %v4108 = vpop.f32.mrf.mxu0
        %v4109 = vadd.f32 %v4080, %v4108
        %4110 = vmatmul.f32.gmra.mxu0 %v3937
        %v4111 = vpop.f32.mrf.mxu0
        %v4112 = vadd.f32 %v4083, %v4111
        %4113 = vdwg.mxu0
        %4114 = vmatpush.msra.mxu0 %v475
        %4115 = vmatpush.msra.mxu0 %v474
        %4116 = vmatpush.msra.mxu0 %v473
        %4117 = vmatpush.msra.mxu0 %v472
        %4118 = vmatpush.msra.mxu0 %v471
        %4119 = vmatpush.msra.mxu0 %v470
        %4120 = vmatpush.msra.mxu0 %v469
        %4121 = vmatpush.msra.mxu0 %v468
        %4122 = vmatpush.msra.mxu0 %v467
        %4123 = vmatpush.msra.mxu0 %v466
        %4124 = vmatpush.msra.mxu0 %v465
        %4125 = vmatpush.msra.mxu0 %v464
        %4126 = vmatpush.msra.mxu0 %v463
        %4127 = vmatpush.msra.mxu0 %v462
        %4128 = vmatpush.msra.mxu0 %v461
        %4129 = vmatpush.msra.mxu0 %v460
        %4130 = vmatmul.f32.gmra.mxu0 %v3914
        %v4131 = vpop.f32.mrf.mxu0
        %v4132 = vadd.f32 %v4103, %v4131
        %4133 = vmatmul.f32.gmra.mxu0 %v3922
        %v4134 = vpop.f32.mrf.mxu0
        %v4135 = vadd.f32 %v4106, %v4134
        %4136 = vmatmul.f32.gmra.mxu0 %v3930
        %v4137 = vpop.f32.mrf.mxu0
        %v4138 = vadd.f32 %v4109, %v4137
        %4139 = vmatmul.f32.gmra.mxu0 %v3938
        %v4140 = vpop.f32.mrf.mxu0
        %v4141 = vadd.f32 %v4112, %v4140
        %4142 = vdwg.mxu0
        %4143 = vmatpush.msra.mxu0 %v491
        %4144 = vmatpush.msra.mxu0 %v490
        %4145 = vmatpush.msra.mxu0 %v489
        %4146 = vmatpush.msra.mxu0 %v488
        %4147 = vmatpush.msra.mxu0 %v487
        %4148 = vmatpush.msra.mxu0 %v486
        %4149 = vmatpush.msra.mxu0 %v485
        %4150 = vmatpush.msra.mxu0 %v484
        %4151 = vmatpush.msra.mxu0 %v483
        %4152 = vmatpush.msra.mxu0 %v482
        %4153 = vmatpush.msra.mxu0 %v481
        %4154 = vmatpush.msra.mxu0 %v480
        %4155 = vmatpush.msra.mxu0 %v479
        %4156 = vmatpush.msra.mxu0 %v478
        %4157 = vmatpush.msra.mxu0 %v477
        %4158 = vmatpush.msra.mxu0 %v476
        %4159 = vmatmul.f32.gmra.mxu0 %v3915
        %v4160 = vpop.f32.mrf.mxu0
        %v4161 = vadd.f32 %v4132, %v4160
        %4162 = vmatmul.f32.gmra.mxu0 %v3923
        %v4163 = vpop.f32.mrf.mxu0
        %v4164 = vadd.f32 %v4135, %v4163
        %4165 = vmatmul.f32.gmra.mxu0 %v3931
        %v4166 = vpop.f32.mrf.mxu0
        %v4167 = vadd.f32 %v4138, %v4166
        %4168 = vmatmul.f32.gmra.mxu0 %v3939
        %v4169 = vpop.f32.mrf.mxu0
        %v4170 = vadd.f32 %v4141, %v4169
        %4171 = vdwg.mxu0
        %v4172 = vmul.f32 %v3897, 0.00390625
        %v4173 = vmul.f32 %v3900, 0.00390625
        %v4174 = vmul.f32 %v3903, 0.00390625
        %v4175 = vmul.f32 %v3906, 0.00390625
        %v4176 = vmul.f32 %v4161, 0.00390625
        %v4177 = vmul.f32 %v4164, 0.00390625
        %v4178 = vmul.f32 %v4167, 0.00390625
        %v4179 = vmul.f32 %v4170, 0.00390625
        %v4180 = vmul.f32 %v4172, %v4172
        %v4181 = vmul.f32 %v4173, %v4173
        %v4182 = vmul.f32 %v4174, %v4174
        %v4183 = vmul.f32 %v4175, %v4175
        %v4184 = vsub.f32 %v4176, %v4180
        %v4185 = vsub.f32 %v4177, %v4181
        %v4186 = vsub.f32 %v4178, %v4182
        %v4187 = vsub.f32 %v4179, %v4183
        %v4188 = vadd.f32 %v4184, 1e-05
        %v4189 = vadd.f32 %v4185, 1e-05
        %v4190 = vadd.f32 %v4186, 1e-05
        %v4191 = vadd.f32 %v4187, 1e-05
        %v4192 = vrsqrt.pop %v4188
        %v4193 = vmul.f32 %v4192, %v4188
        %v4194 = vmul.f32 %v4193, %v4192
        %v4195 = vmul.f32 0.5, %v4194
        %v4196 = vsub.f32 1.5, %v4195
        %v4197 = vmul.f32 %v4192, %v4196
        %vm4198 = vweird.f32 %v4188
        %vm4199 = vweird.f32 %v4192
        %vm4200 = vmor %vm4198, %vm4199
        %v4201 = vsel %vm4200, %v4192, %v4197
        %v4202 = vrsqrt.pop %v4189
        %v4203 = vmul.f32 %v4202, %v4189
        %v4204 = vmul.f32 %v4203, %v4202
        %v4205 = vmul.f32 0.5, %v4204
        %v4206 = vsub.f32 1.5, %v4205
        %v4207 = vmul.f32 %v4202, %v4206
        %vm4208 = vweird.f32 %v4189
        %vm4209 = vweird.f32 %v4202
        %vm4210 = vmor %vm4208, %vm4209
        %v4211 = vsel %vm4210, %v4202, %v4207
        %v4212 = vrsqrt.pop %v4190
        %v4213 = vmul.f32 %v4212, %v4190
        %v4214 = vmul.f32 %v4213, %v4212
        %v4215 = vmul.f32 0.5, %v4214
        %v4216 = vsub.f32 1.5, %v4215
        %v4217 = vmul.f32 %v4212, %v4216
        %vm4218 = vweird.f32 %v4190
        %vm4219 = vweird.f32 %v4212
        %vm4220 = vmor %vm4218, %vm4219
        %v4221 = vsel %vm4220, %v4212, %v4217
        %v4222 = vrsqrt.pop %v4191
        %v4223 = vmul.f32 %v4222, %v4191
        %v4224 = vmul.f32 %v4223, %v4222
        %v4225 = vmul.f32 0.5, %v4224
        %v4226 = vsub.f32 1.5, %v4225
        %v4227 = vmul.f32 %v4222, %v4226
        %vm4228 = vweird.f32 %v4191
        %vm4229 = vweird.f32 %v4222
        %vm4230 = vmor %vm4228, %vm4229
        %v4231 = vsel %vm4230, %v4222, %v4227
        %4233 = vset.pattern.permute.xlu0 0
        %4234 = vperm.xlu0 %4233, %v4172
        %v4235 = vpop.permute.xlu0 %4234
        %4238 = vset.pattern.permute.xlu0 0
        %4239 = vperm.xlu0 %4238, %v4173
        %v4240 = vpop.permute.xlu0 %4239
        %4243 = vset.pattern.permute.xlu0 0
        %4244 = vperm.xlu0 %4243, %v4174
        %v4245 = vpop.permute.xlu0 %4244
        %4248 = vset.pattern.permute.xlu0 0
        %4249 = vperm.xlu0 %4248, %v4175
        %v4250 = vpop.permute.xlu0 %4249
        %v4252 = vsub.f32 %v3462, %v4235
        %v4253 = vsub.f32 %v3491, %v4235
        %v4254 = vsub.f32 %v3520, %v4235
        %v4255 = vsub.f32 %v3549, %v4235
        %v4256 = vsub.f32 %v3578, %v4235
        %v4257 = vsub.f32 %v3607, %v4235
        %v4258 = vsub.f32 %v3636, %v4235
        %v4259 = vsub.f32 %v3665, %v4235
        %v4260 = vsub.f32 %v3465, %v4240
        %v4261 = vsub.f32 %v3494, %v4240
        %v4262 = vsub.f32 %v3523, %v4240
        %v4263 = vsub.f32 %v3552, %v4240
        %v4264 = vsub.f32 %v3581, %v4240
        %v4265 = vsub.f32 %v3610, %v4240
        %v4266 = vsub.f32 %v3639, %v4240
        %v4267 = vsub.f32 %v3668, %v4240
        %v4268 = vsub.f32 %v3468, %v4245
        %v4269 = vsub.f32 %v3497, %v4245
        %v4270 = vsub.f32 %v3526, %v4245
        %v4271 = vsub.f32 %v3555, %v4245
        %v4272 = vsub.f32 %v3584, %v4245
        %v4273 = vsub.f32 %v3613, %v4245
        %v4274 = vsub.f32 %v3642, %v4245
        %v4275 = vsub.f32 %v3671, %v4245
        %v4276 = vsub.f32 %v3471, %v4250
        %v4277 = vsub.f32 %v3500, %v4250
        %v4278 = vsub.f32 %v3529, %v4250
        %v4279 = vsub.f32 %v3558, %v4250
        %v4280 = vsub.f32 %v3587, %v4250
        %v4281 = vsub.f32 %v3616, %v4250
        %v4282 = vsub.f32 %v3645, %v4250
        %v4283 = vsub.f32 %v3674, %v4250
        %4285 = vset.pattern.permute.xlu0 0
        %4286 = vperm.xlu0 %4285, %v4201
        %v4287 = vpop.permute.xlu0 %4286
        %4290 = vset.pattern.permute.xlu0 0
        %4291 = vperm.xlu0 %4290, %v4211
        %v4292 = vpop.permute.xlu0 %4291
        %4295 = vset.pattern.permute.xlu0 0
        %4296 = vperm.xlu0 %4295, %v4221
        %v4297 = vpop.permute.xlu0 %4296
        %4300 = vset.pattern.permute.xlu0 0
        %4301 = vperm.xlu0 %4300, %v4231
        %v4302 = vpop.permute.xlu0 %4301
        %v4304 = vmul.f32 %v4252, %v4287
        %v4305 = vmul.f32 %v4253, %v4287
        %v4306 = vmul.f32 %v4254, %v4287
        %v4307 = vmul.f32 %v4255, %v4287
        %v4308 = vmul.f32 %v4256, %v4287
        %v4309 = vmul.f32 %v4257, %v4287
        %v4310 = vmul.f32 %v4258, %v4287
        %v4311 = vmul.f32 %v4259, %v4287
        %v4312 = vmul.f32 %v4260, %v4292
        %v4313 = vmul.f32 %v4261, %v4292
        %v4314 = vmul.f32 %v4262, %v4292
        %v4315 = vmul.f32 %v4263, %v4292
        %v4316 = vmul.f32 %v4264, %v4292
        %v4317 = vmul.f32 %v4265, %v4292
        %v4318 = vmul.f32 %v4266, %v4292
        %v4319 = vmul.f32 %v4267, %v4292
        %v4320 = vmul.f32 %v4268, %v4297
        %v4321 = vmul.f32 %v4269, %v4297
        %v4322 = vmul.f32 %v4270, %v4297
        %v4323 = vmul.f32 %v4271, %v4297
        %v4324 = vmul.f32 %v4272, %v4297
        %v4325 = vmul.f32 %v4273, %v4297
        %v4326 = vmul.f32 %v4274, %v4297
        %v4327 = vmul.f32 %v4275, %v4297
        %v4328 = vmul.f32 %v4276, %v4302
        %v4329 = vmul.f32 %v4277, %v4302
        %v4330 = vmul.f32 %v4278, %v4302
        %v4331 = vmul.f32 %v4279, %v4302
        %v4332 = vmul.f32 %v4280, %v4302
        %v4333 = vmul.f32 %v4281, %v4302
        %v4334 = vmul.f32 %v4282, %v4302
        %v4335 = vmul.f32 %v4283, %v4302
        %v4336 = vadd.f32 %v331, %v4304
        %v4337 = vadd.f32 %v332, %v4305
        %v4338 = vadd.f32 %v333, %v4306
        %v4339 = vadd.f32 %v334, %v4307
        %v4340 = vadd.f32 %v335, %v4308
        %v4341 = vadd.f32 %v336, %v4309
        %v4342 = vadd.f32 %v337, %v4310
        %v4343 = vadd.f32 %v338, %v4311
        %v4344 = vadd.f32 %v339, %v4312
        %v4345 = vadd.f32 %v340, %v4313
        %v4346 = vadd.f32 %v341, %v4314
        %v4347 = vadd.f32 %v342, %v4315
        %v4348 = vadd.f32 %v343, %v4316
        %v4349 = vadd.f32 %v344, %v4317
        %v4350 = vadd.f32 %v345, %v4318
        %v4351 = vadd.f32 %v346, %v4319
        %v4352 = vadd.f32 %v347, %v4320
        %v4353 = vadd.f32 %v348, %v4321
        %v4354 = vadd.f32 %v349, %v4322
        %v4355 = vadd.f32 %v350, %v4323
        %v4356 = vadd.f32 %v351, %v4324
        %v4357 = vadd.f32 %v352, %v4325
        %v4358 = vadd.f32 %v353, %v4326
        %v4359 = vadd.f32 %v354, %v4327
        %v4360 = vadd.f32 %v355, %v4328
        %v4361 = vadd.f32 %v356, %v4329
        %v4362 = vadd.f32 %v357, %v4330
        %v4363 = vadd.f32 %v358, %v4331
        %v4364 = vadd.f32 %v359, %v4332
        %v4365 = vadd.f32 %v360, %v4333
        %v4366 = vadd.f32 %v361, %v4334
        %v4367 = vadd.f32 %v362, %v4335
        %4368 = vst [vmem:[%s325] sm:$0xff] %v4336
        %4369 = vst [vmem:[%s325 + $0x8] sm:$0xff] %v4337
        %4370 = vst [vmem:[%s325 + $0x10] sm:$0xff] %v4338
        %4371 = vst [vmem:[%s325 + $0x18] sm:$0xff] %v4339
        %4372 = vst [vmem:[%s325 + $0x20] sm:$0xff] %v4340
        %4373 = vst [vmem:[%s325 + $0x28] sm:$0xff] %v4341
        %4374 = vst [vmem:[%s325 + $0x30] sm:$0xff] %v4342
        %4375 = vst [vmem:[%s325 + $0x38] sm:$0xff] %v4343
        %4376 = vst [vmem:[%s325 + $0x40] sm:$0xff] %v4344
        %4377 = vst [vmem:[%s325 + $0x48] sm:$0xff] %v4345
        %4378 = vst [vmem:[%s325 + $0x50] sm:$0xff] %v4346
        %4379 = vst [vmem:[%s325 + $0x58] sm:$0xff] %v4347
        %4380 = vst [vmem:[%s325 + $0x60] sm:$0xff] %v4348
        %4381 = vst [vmem:[%s325 + $0x68] sm:$0xff] %v4349
        %4382 = vst [vmem:[%s325 + $0x70] sm:$0xff] %v4350
        %4383 = vst [vmem:[%s325 + $0x78] sm:$0xff] %v4351
        %4384 = vst [vmem:[%s325 + $0x80] sm:$0xff] %v4352
        %4385 = vst [vmem:[%s325 + $0x88] sm:$0xff] %v4353
        %4386 = vst [vmem:[%s325 + $0x90] sm:$0xff] %v4354
        %4387 = vst [vmem:[%s325 + $0x98] sm:$0xff] %v4355
        %4388 = vst [vmem:[%s325 + $0xa0] sm:$0xff] %v4356
        %4389 = vst [vmem:[%s325 + $0xa8] sm:$0xff] %v4357
        %4390 = vst [vmem:[%s325 + $0xb0] sm:$0xff] %v4358
        %4391 = vst [vmem:[%s325 + $0xb8] sm:$0xff] %v4359
        %4392 = vst [vmem:[%s325 + $0xc0] sm:$0xff] %v4360
        %4393 = vst [vmem:[%s325 + $0xc8] sm:$0xff] %v4361
        %4394 = vst [vmem:[%s325 + $0xd0] sm:$0xff] %v4362
        %4395 = vst [vmem:[%s325 + $0xd8] sm:$0xff] %v4363
        %4396 = vst [vmem:[%s325 + $0xe0] sm:$0xff] %v4364
        %4397 = vst [vmem:[%s325 + $0xe8] sm:$0xff] %v4365
        %4398 = vst [vmem:[%s325 + $0xf0] sm:$0xff] %v4366
        %4399 = vst [vmem:[%s325 + $0xf8] sm:$0xff] %v4367
        %s4400 = sand.u32 %s225, 1
        %s4401 = scalar_lea.sflag [#allocation3], %s4400
        %s4402 = sand.u32 %s225, 1
        %s4403 = smul.addr %s4402, 256
        %s4404 = scalar_lea.vmem [#allocation2], %s4403
        // Predicated region
        $region57: #{tpu_custom_call.1} parent=55 // pred_check
          %p4405 = pneg %p235
        $region58: #{tpu_custom_call.1} parent=55 // pred_check_branch
          %4407 = sbr.rel (%p4405) target = $region60
        $region59: #{tpu_custom_call.1} parent=55 // pred_region
          %4409 = vsyncadd %s4401, 0
          %s4410 = smul.addr %s23, 32
          %s4411 = smul.addr %s4410, 8
          %s4412 = scalar_lea.hbm %s9, %s4411
          %s4413 = sshll.u32 %s4404, 4
          %s4414 = int_to_ptr.vmem [resolvable:$true] %s4413
          %s4415 = sshll.u32 %s4412, 4
          %s4416 = int_to_ptr.hbm [resolvable:$true] %s4415
          %4421 = dma.vmem_to_hbm [thread:$0]  %s4414, 4096, %s4416, %s4401, 1024, 1024, 64
        $region60: #{tpu_custom_call.1} parent=55 // pred_fallthru
          _
      $region56: #{tpu_custom_call.1} parent=5 // pred_fallthru
        _
      %p4422 = scmp.le.s32.totalorder 2, %s18
      // Predicated region
      $region61: #{tpu_custom_call.1} parent=5 // pred_check
        %p4423 = pneg %p4422
      $region62: #{tpu_custom_call.1} parent=5 // pred_check_branch
        %4425 = sbr.rel (%p4423) target = $region64
      $region63: #{tpu_custom_call.1} parent=5 // pred_region
        %s4426 = ssub.s32 %s18, 2
        // Predicated region
        $region65: #{tpu_custom_call.1} parent=63 // pred_check
          %p4427 = pneg %p241
        $region66: #{tpu_custom_call.1} parent=63 // pred_check_branch
          %4429 = sbr.rel (%p4427) target = $region68
        $region67: #{tpu_custom_call.1} parent=63 // pred_region
          %s4430 = sand.u32 %s226, 1
          %s4431 = scalar_lea.sflag [#allocation3], %s4430
          %s4432 = sand.u32 %s226, 1
          %s4433 = smul.addr %s4432, 256
          %s4434 = scalar_lea.vmem [#allocation2], %s4433
          %4436 = dma.done %s4431, 4096
        $region68: #{tpu_custom_call.1} parent=63 // pred_fallthru
          _
      $region64: #{tpu_custom_call.1} parent=5 // pred_fallthru
        _
    $region6: #{tpu_custom_call.1} parent=1 // loop_footer
      %s22 = sadd.s32 1, %s18
    $region7: #{tpu_custom_call.1} parent=1 // loop_footer_branch
      %17 = sbr.rel target = $region3
    $region8: #{tpu_custom_call.1} parent=1 // loop_exit
      _
    %4437 = vsyncpa [#allocation3], 1
    %s4438 = scalar_lea.sflag [#allocation3], 1
    %4439 = vsyncpa %s4438, 1

</llo_original>
